<compile_context>
chip_gen: v5e
topology: v5e:2x2
jax: 0.10.0
libtpu: 0.0.40
codegen_flags: <defaults>
</compile_context>

<pallas_src>
import jax
import jax.numpy as jnp
from jax.experimental import pallas as pl
from jax.experimental.pallas import tpu as pltpu

NEG_SLOPE = 0.01   # nn.LeakyReLU default
EPS = 1e-5         # InstanceNorm default eps


def _lrelu(x):
    return jnp.where(x >= 0, x, NEG_SLOPE * x)


def _inorm(x, g, b):
    # x: (H*W, C) for a single instance; per-channel stats over the spatial axis.
    m = jnp.mean(x, axis=0, keepdims=True)
    v = jnp.mean((x - m) ** 2, axis=0, keepdims=True)
    return (x - m) * jax.lax.rsqrt(v + EPS) * g + b


# ---------------------------------------------------------------------------
# Fused kernel: one batch element per grid step.
#   transp-conv(K,K,stride K) upsample -> concat(skip) -> pad
#   -> conv3x3 -> IN -> LeakyReLU -> conv3x3 -> IN
#   residual: conv1x1 -> IN ; add ; LeakyReLU
# ---------------------------------------------------------------------------
def _fused_up_block_kernel(x_ref, skip_ref, wup_ref, w1_ref, w2_ref, nrm_ref,
                           o_ref, xcat_pad, y1_pad):
    h, w, _cin = x_ref.shape
    H, W, C = o_ref.shape
    C2 = xcat_pad.shape[-1]
    K = H // h
    HW = H * W

    nrm = nrm_ref[...]                              # (6, C): g1,b1,g2,b2,g3,b3

    # ---- zero only the 1-px halo of the padded scratches (interior is overwritten below).
    #      Done every step so that sharding the "parallel" grid across cores stays correct.
    xcat_pad[0:1, :, :] = jnp.zeros((1, W + 2, C2), jnp.float32)
    xcat_pad[H + 1:H + 2, :, :] = jnp.zeros((1, W + 2, C2), jnp.float32)
    xcat_pad[:, 0:1, :] = jnp.zeros((H + 2, 1, C2), jnp.float32)
    xcat_pad[:, W + 1:W + 2, :] = jnp.zeros((H + 2, 1, C2), jnp.float32)
    y1_pad[0:1, :, :] = jnp.zeros((1, W + 2, C), jnp.float32)
    y1_pad[H + 1:H + 2, :, :] = jnp.zeros((1, W + 2, C), jnp.float32)
    y1_pad[:, 0:1, :] = jnp.zeros((H + 2, 1, C), jnp.float32)
    y1_pad[:, W + 1:W + 2, :] = jnp.zeros((H + 2, 1, C), jnp.float32)

    # ---- transposed conv (kernel == stride == K), fused in VMEM ------------------------------
    # One matmul produces every sub-pixel tap; phases are then interleaved into (H, W, C).
    x2d = x_ref[...].reshape(h * w, _cin)                                   # (h*w, Cin)
    zall = jnp.dot(x2d, wup_ref[...], preferred_element_type=jnp.float32)   # (h*w, K*K*C)

    # Row-phase interleave (pure leading-dim concat + merge), one array per column phase kx.
    cols = []
    for kx in range(K):
        rows = []
        for ky in range(K):
            t = ky * K + kx
            z = zall[:, t * C:(t + 1) * C].reshape(h, w, C)                 # (h, w, C)
            rows.append(z[:, None])                                         # (h, 1, w, C)
        cols.append(jnp.concatenate(rows, axis=1).reshape(H, w, C))         # (H, w, C)

    # Column-phase interleave: nearest-neighbour expand along W + phase select.
    cx = jax.lax.broadcasted_iota(jnp.int32, (H, W, 1), 1) % K
    up = jnp.zeros((H, W, C), jnp.float32)
    for kx in range(K):
        zrep = jnp.broadcast_to(cols[kx][:, :, None, :], (H, w, K, C)).reshape(H, W, C)
        up = jnp.where(cx == kx, zrep, up)

    # ---- concat([up, skip]) along channels straight into the padded VMEM scratch -------------
    xcat = jnp.concatenate([up, skip_ref[...]], axis=-1)                    # (H, W, 2C)
    xcat_pad[1:H + 1, 1:W + 1, :] = xcat

    # ---- conv1 (3x3) + fused 1x1 residual conv: a single bf16 im2col matmul ------------------
    taps = [(ky, kx) for ky in range(3) for kx in range(3)]
    p1 = jnp.concatenate([xcat_pad[ky:ky + H, kx:kx + W, :] for ky, kx in taps],
                         axis=-1)                                           # (H, W, 9*C2)
    p1 = p1.reshape(HW, 9 * C2).astype(jnp.bfloat16)
    big = jnp.dot(p1, w1_ref[...], preferred_element_type=jnp.float32)      # (HW, 2C)
    y1 = _lrelu(_inorm(big[:, 0:C], nrm[0:1], nrm[1:2]))
    res = _inorm(big[:, C:2 * C], nrm[4:5], nrm[5:6])

    # ---- conv2 (3x3): same im2col form --------------------------------------------------------
    y1_pad[1:H + 1, 1:W + 1, :] = y1.reshape(H, W, C)
    p2 = jnp.concatenate([y1_pad[ky:ky + H, kx:kx + W, :] for ky, kx in taps],
                         axis=-1)                                           # (H, W, 9*C)
    p2 = p2.reshape(HW, 9 * C).astype(jnp.bfloat16)
    y2 = _inorm(jnp.dot(p2, w2_ref[...], preferred_element_type=jnp.float32),
                nrm[2:3], nrm[3:4])

    o_ref[...] = _lrelu(y2 + res).reshape(H, W, C)


# ---------------------------------------------------------------------------
# Wrapper (NCHW in / NCHW out, like the PyTorch module)
# ---------------------------------------------------------------------------
def unetr_up_block(inp_nchw, skip_nchw, p):
    wt = p["wt"]                                   # (Cin, Cout, K, K) - ConvTranspose2d weight
    Cin, C, K, _ = wt.shape
    N, _, h, w = inp_nchw.shape
    H, W = h * K, w * K
    C2 = 2 * C

    x = jnp.transpose(inp_nchw, (0, 2, 3, 1)).astype(jnp.float32)           # (N, h, w, Cin)
    skip = jnp.transpose(skip_nchw, (0, 2, 3, 1)).astype(jnp.float32)       # (N, H, W, C)

    # transp-conv weight regrouped so a single matmul yields all K*K sub-pixel taps:
    #   wup[ci, (ky*K + kx)*C + co] = wt[ci, co, ky, kx]
    wup = jnp.transpose(wt, (0, 2, 3, 1)).reshape(Cin, K * K * C)

    # conv1 im2col weight with the 1x1 residual conv folded in as extra output columns
    # (the residual only sees the centre tap of the 3x3 im2col patch == the unpadded input).
    w1col = p["w1"].reshape(9 * C2, C)
    w3aug = jnp.zeros((9 * C2, C), jnp.float32).at[4 * C2:5 * C2, :].set(p["w3"])
    w1aug = jnp.concatenate([w1col, w3aug], axis=1).astype(jnp.bfloat16)    # (9*C2, 2C)
    w2col = p["w2"].reshape(9 * C, C).astype(jnp.bfloat16)                  # (9*C, C)

    nrm = jnp.stack([p["g1"], p["b1"], p["g2"], p["b2"], p["g3"], p["b3"]], axis=0)

    out = pl.pallas_call(
        _fused_up_block_kernel,
        out_shape=jax.ShapeDtypeStruct((N, H, W, C), jnp.float32),
        grid_spec=pltpu.PrefetchScalarGridSpec(
            num_scalar_prefetch=0,
            grid=(N,),
            in_specs=[
                pl.BlockSpec((None, h, w, Cin), lambda n: (n, 0, 0, 0)),
                pl.BlockSpec((None, H, W, C), lambda n: (n, 0, 0, 0)),
                pl.BlockSpec((Cin, K * K * C), lambda n: (0, 0)),
                pl.BlockSpec((9 * C2, 2 * C), lambda n: (0, 0)),
                pl.BlockSpec((9 * C, C), lambda n: (0, 0)),
                pl.BlockSpec((6, C), lambda n: (0, 0)),
            ],
            out_specs=pl.BlockSpec((None, H, W, C), lambda n: (n, 0, 0, 0)),
            scratch_shapes=[pltpu.VMEM((H + 2, W + 2, C2), jnp.float32),
                            pltpu.VMEM((H + 2, W + 2, C), jnp.float32)]),
        compiler_params=pltpu.CompilerParams(
            dimension_semantics=("parallel",),
            vmem_limit_bytes=32 * 1024 * 1024),
    )(x, skip, wup, w1aug, w2col, nrm)

    return jnp.transpose(out, (0, 3, 1, 2))                                 # back to NCHW


# ---------------------------------------------------------------------------
# Deterministic parameter init + pure-JAX reference for a correctness check
# ---------------------------------------------------------------------------
def init_params(key, in_channels, out_channels, k_up):
    ks = jax.random.split(key, 10)
    s = 0.1
    p = {
        "wt": s * jax.random.normal(ks[0], (in_channels, out_channels, k_up, k_up), jnp.float32),
        "w1": s * jax.random.normal(ks[1], (3, 3, 2 * out_channels, out_channels), jnp.float32),
        "w2": s * jax.random.normal(ks[2], (3, 3, out_channels, out_channels), jnp.float32),
        "w3": s * jax.random.normal(ks[3], (2 * out_channels, out_channels), jnp.float32),
        "g1": 1.0 + 0.1 * jax.random.normal(ks[4], (out_channels,), jnp.float32),
        "b1": 0.1 * jax.random.normal(ks[5], (out_channels,), jnp.float32),
        "g2": 1.0 + 0.1 * jax.random.normal(ks[6], (out_channels,), jnp.float32),
        "b2": 0.1 * jax.random.normal(ks[7], (out_channels,), jnp.float32),
        "g3": 1.0 + 0.1 * jax.random.normal(ks[8], (out_channels,), jnp.float32),
        "b3": 0.1 * jax.random.normal(ks[9], (out_channels,), jnp.float32),
    }
    return p


def ref_forward(inp_nchw, skip_nchw, p):
    x = jnp.transpose(inp_nchw, (0, 2, 3, 1)).astype(jnp.float32)
    N, h, w, _ = x.shape
    wt = p["wt"]
    Cout, K = wt.shape[1], wt.shape[2]
    up = jnp.einsum("nhwc,cokl->nhkwlo", x, wt).reshape(N, h * K, w * K, Cout)
    skip = jnp.transpose(skip_nchw, (0, 2, 3, 1)).astype(jnp.float32)
    xcat = jnp.concatenate([up, skip], axis=-1)

    def conv(a, wgt):
        return jax.lax.conv_general_dilated(a, wgt, (1, 1), "SAME",
                                            dimension_numbers=("NHWC", "HWIO", "NHWC"))

    def inorm(a, g, b):
        m = a.mean(axis=(1, 2), keepdims=True)
        v = ((a - m) ** 2).mean(axis=(1, 2), keepdims=True)
        return (a - m) / jnp.sqrt(v + EPS) * g + b

    lrelu = lambda a: jnp.where(a >= 0, a, NEG_SLOPE * a)

    y = lrelu(inorm(conv(xcat, p["w1"]), p["g1"], p["b1"]))
    y = inorm(conv(y, p["w2"]), p["g2"], p["b2"])
    r = inorm(jnp.einsum("nhwc,cd->nhwd", xcat, p["w3"]), p["g3"], p["b3"])
    return jnp.transpose(lrelu(y + r), (0, 3, 1, 2))


if __name__ == "__main__":
    key = jax.random.PRNGKey(0)
    k_inp, k_skip, k_par = jax.random.split(key, 3)

    # UnetrUpBlock(spatial_dims=2, in_channels=8, out_channels=4,
    #              kernel_size=3, upsample_kernel_size=2)
    N, Cin, Cout, hs, K_up = 2, 8, 4, 8, 2
    H = hs * K_up

    inp = jax.random.normal(k_inp, (N, Cin, hs, hs), jnp.float32)       # NCHW
    skip = jax.random.normal(k_skip, (N, Cout, H, H), jnp.float32)      # NCHW
    params = init_params(k_par, Cin, Cout, K_up)

    out = jax.block_until_ready(unetr_up_block(inp, skip, params))
    ref = jax.block_until_ready(ref_forward(inp, skip, params))

    assert out.shape == (N, Cout, H, H), out.shape
    assert bool(jnp.allclose(out, ref, rtol=5e-2, atol=5e-2)), "mismatch vs reference"
    print("KERNEL_OK")
</pallas_src>

<mosaic_0001>
module attributes {stable_mosaic.version = 11 : i64} {
  func.func @_fused_up_block_kernel(%arg0: i32, %arg1: memref<1x8x8x8xf32, #tpu.memory_space<vmem>>, %arg2: memref<1x16x16x4xf32, #tpu.memory_space<vmem>>, %arg3: memref<8x16xf32, #tpu.memory_space<vmem>>, %arg4: memref<72x8xbf16, #tpu.memory_space<vmem>>, %arg5: memref<36x4xbf16, #tpu.memory_space<vmem>>, %arg6: memref<6x4xf32, #tpu.memory_space<vmem>>, %arg7: memref<1x16x16x4xf32, #tpu.memory_space<vmem>>, %arg8: memref<18x18x8xf32, #tpu.memory_space<vmem>>, %arg9: memref<18x18x4xf32, #tpu.memory_space<vmem>>) attributes {dimension_semantics = [#tpu.dimension_semantics<parallel>], iteration_bounds = array<i64: 2>, scalar_prefetch = 0 : i64, scratch_operands = 2 : i64, tpu.core_type = #tpu.core_type<tc>, window_params = [{transform_indices = @transform_0, window_bounds = array<i64: 1, 8, 8, 8>}, {transform_indices = @transform_1, window_bounds = array<i64: 1, 16, 16, 4>}, {pipeline_mode = #tpu.pipeline_mode<synchronous>, transform_indices = @transform_2, window_bounds = array<i64: 8, 16>}, {pipeline_mode = #tpu.pipeline_mode<synchronous>, transform_indices = @transform_3, window_bounds = array<i64: 72, 8>}, {pipeline_mode = #tpu.pipeline_mode<synchronous>, transform_indices = @transform_4, window_bounds = array<i64: 36, 4>}, {pipeline_mode = #tpu.pipeline_mode<synchronous>, transform_indices = @transform_5, window_bounds = array<i64: 6, 4>}, {transform_indices = @transform_6, window_bounds = array<i64: 1, 16, 16, 4>}]} {
    %c0 = arith.constant 0 : index
    %c0_0 = arith.constant 0 : index
    %0 = vector.load %arg6[%c0, %c0_0] : memref<6x4xf32, #tpu.memory_space<vmem>>, vector<6x4xf32>
    %cst = arith.constant 0.000000e+00 : f32
    %1 = vector.broadcast %cst : f32 to vector<1x18x8xf32>
    %c0_1 = arith.constant 0 : index
    %c0_2 = arith.constant 0 : index
    %c0_3 = arith.constant 0 : index
    %2 = vector.load %arg8[%c0_1, %c0_2, %c0_3] : memref<18x18x8xf32, #tpu.memory_space<vmem>>, vector<1x18x8xf32>
    tpu.vector_store %arg8[%c0_1, %c0_2, %c0_3], %1 {strides = array<i32>} : memref<18x18x8xf32, #tpu.memory_space<vmem>>, vector<1x18x8xf32>,
    %cst_4 = arith.constant 0.000000e+00 : f32
    %3 = vector.broadcast %cst_4 : f32 to vector<1x18x8xf32>
    %c17 = arith.constant 17 : index
    %c0_5 = arith.constant 0 : index
    %c0_6 = arith.constant 0 : index
    %4 = vector.load %arg8[%c17, %c0_5, %c0_6] : memref<18x18x8xf32, #tpu.memory_space<vmem>>, vector<1x18x8xf32>
    tpu.vector_store %arg8[%c17, %c0_5, %c0_6], %3 {strides = array<i32>} : memref<18x18x8xf32, #tpu.memory_space<vmem>>, vector<1x18x8xf32>,
    %cst_7 = arith.constant 0.000000e+00 : f32
    %5 = vector.broadcast %cst_7 : f32 to vector<18x1x8xf32>
    %c0_8 = arith.constant 0 : index
    %c0_9 = arith.constant 0 : index
    %c0_10 = arith.constant 0 : index
    %6 = vector.load %arg8[%c0_8, %c0_9, %c0_10] : memref<18x18x8xf32, #tpu.memory_space<vmem>>, vector<18x1x8xf32>
    tpu.vector_store %arg8[%c0_8, %c0_9, %c0_10], %5 {strides = array<i32>} : memref<18x18x8xf32, #tpu.memory_space<vmem>>, vector<18x1x8xf32>,
    %cst_11 = arith.constant 0.000000e+00 : f32
    %7 = vector.broadcast %cst_11 : f32 to vector<18x1x8xf32>
    %c0_12 = arith.constant 0 : index
    %c17_13 = arith.constant 17 : index
    %c0_14 = arith.constant 0 : index
    %8 = vector.load %arg8[%c0_12, %c17_13, %c0_14] : memref<18x18x8xf32, #tpu.memory_space<vmem>>, vector<18x1x8xf32>
    tpu.vector_store %arg8[%c0_12, %c17_13, %c0_14], %7 {strides = array<i32>} : memref<18x18x8xf32, #tpu.memory_space<vmem>>, vector<18x1x8xf32>,
    %cst_15 = arith.constant 0.000000e+00 : f32
    %9 = vector.broadcast %cst_15 : f32 to vector<1x18x4xf32>
    %c0_16 = arith.constant 0 : index
    %c0_17 = arith.constant 0 : index
    %c0_18 = arith.constant 0 : index
    %10 = vector.load %arg9[%c0_16, %c0_17, %c0_18] : memref<18x18x4xf32, #tpu.memory_space<vmem>>, vector<1x18x4xf32>
    tpu.vector_store %arg9[%c0_16, %c0_17, %c0_18], %9 {strides = array<i32>} : memref<18x18x4xf32, #tpu.memory_space<vmem>>, vector<1x18x4xf32>,
    %cst_19 = arith.constant 0.000000e+00 : f32
    %11 = vector.broadcast %cst_19 : f32 to vector<1x18x4xf32>
    %c17_20 = arith.constant 17 : index
    %c0_21 = arith.constant 0 : index
    %c0_22 = arith.constant 0 : index
    %12 = vector.load %arg9[%c17_20, %c0_21, %c0_22] : memref<18x18x4xf32, #tpu.memory_space<vmem>>, vector<1x18x4xf32>
    tpu.vector_store %arg9[%c17_20, %c0_21, %c0_22], %11 {strides = array<i32>} : memref<18x18x4xf32, #tpu.memory_space<vmem>>, vector<1x18x4xf32>,
    %cst_23 = arith.constant 0.000000e+00 : f32
    %13 = vector.broadcast %cst_23 : f32 to vector<18x1x4xf32>
    %c0_24 = arith.constant 0 : index
    %c0_25 = arith.constant 0 : index
    %c0_26 = arith.constant 0 : index
    %14 = vector.load %arg9[%c0_24, %c0_25, %c0_26] : memref<18x18x4xf32, #tpu.memory_space<vmem>>, vector<18x1x4xf32>
    tpu.vector_store %arg9[%c0_24, %c0_25, %c0_26], %13 {strides = array<i32>} : memref<18x18x4xf32, #tpu.memory_space<vmem>>, vector<18x1x4xf32>,
    %cst_27 = arith.constant 0.000000e+00 : f32
    %15 = vector.broadcast %cst_27 : f32 to vector<18x1x4xf32>
    %c0_28 = arith.constant 0 : index
    %c17_29 = arith.constant 17 : index
    %c0_30 = arith.constant 0 : index
    %16 = vector.load %arg9[%c0_28, %c17_29, %c0_30] : memref<18x18x4xf32, #tpu.memory_space<vmem>>, vector<18x1x4xf32>
    tpu.vector_store %arg9[%c0_28, %c17_29, %c0_30], %15 {strides = array<i32>} : memref<18x18x4xf32, #tpu.memory_space<vmem>>, vector<18x1x4xf32>,
    %c0_31 = arith.constant 0 : index
    %c0_32 = arith.constant 0 : index
    %c0_33 = arith.constant 0 : index
    %c0_34 = arith.constant 0 : index
    %17 = vector.load %arg1[%c0_31, %c0_32, %c0_33, %c0_34] : memref<1x8x8x8xf32, #tpu.memory_space<vmem>>, vector<1x8x8x8xf32>
    %18 = vector.shape_cast %17 : vector<1x8x8x8xf32> to vector<8x8x8xf32>
    %19 = vector.shape_cast %18 : vector<8x8x8xf32> to vector<64x8xf32>
    %c0_35 = arith.constant 0 : index
    %c0_36 = arith.constant 0 : index
    %20 = vector.load %arg3[%c0_35, %c0_36] : memref<8x16xf32, #tpu.memory_space<vmem>>, vector<8x16xf32>
    %cst_37 = arith.constant dense<0.000000e+00> : vector<64x16xf32>
    %21 = tpu.matmul %19, %20, %cst_37 {dimension_numbers = #tpu.dot_dimension_numbers<[1], [0], [0], [1], [0, 0, 1, 1], [], []>} : vector<64x8xf32>, vector<8x16xf32>, vector<64x16xf32> -> vector<64x16xf32>
    %22 = vector.extract_strided_slice %21 {offsets = [0, 0], sizes = [64, 4], strides = [1, 1]} : vector<64x16xf32> to vector<64x4xf32>
    %23 = vector.shape_cast %22 : vector<64x4xf32> to vector<8x8x4xf32>
    %24 = vector.shape_cast %23 : vector<8x8x4xf32> to vector<8x1x8x4xf32>
    %25 = vector.extract_strided_slice %21 {offsets = [0, 8], sizes = [64, 4], strides = [1, 1]} : vector<64x16xf32> to vector<64x4xf32>
    %26 = vector.shape_cast %25 : vector<64x4xf32> to vector<8x8x4xf32>
    %27 = vector.shape_cast %26 : vector<8x8x4xf32> to vector<8x1x8x4xf32>
    %28 = tpu.concatenate %24, %27 in 1 : vector<8x1x8x4xf32>, vector<8x1x8x4xf32> -> vector<8x2x8x4xf32>
    %29 = vector.shape_cast %28 : vector<8x2x8x4xf32> to vector<16x8x4xf32>
    %30 = vector.extract_strided_slice %21 {offsets = [0, 4], sizes = [64, 4], strides = [1, 1]} : vector<64x16xf32> to vector<64x4xf32>
    %31 = vector.shape_cast %30 : vector<64x4xf32> to vector<8x8x4xf32>
    %32 = vector.shape_cast %31 : vector<8x8x4xf32> to vector<8x1x8x4xf32>
    %33 = vector.extract_strided_slice %21 {offsets = [0, 12], sizes = [64, 4], strides = [1, 1]} : vector<64x16xf32> to vector<64x4xf32>
    %34 = vector.shape_cast %33 : vector<64x4xf32> to vector<8x8x4xf32>
    %35 = vector.shape_cast %34 : vector<8x8x4xf32> to vector<8x1x8x4xf32>
    %36 = tpu.concatenate %32, %35 in 1 : vector<8x1x8x4xf32>, vector<8x1x8x4xf32> -> vector<8x2x8x4xf32>
    %37 = vector.shape_cast %36 : vector<8x2x8x4xf32> to vector<16x8x4xf32>
    %38 = tpu.iota {dimensions = array<i32: 1>} : vector<16x16x1xi32>
    %c2_i32 = arith.constant 2 : i32
    %c0_i32 = arith.constant 0 : i32
    %39 = arith.cmpi eq, %c2_i32, %c0_i32 : i32
    %c1_i32 = arith.constant 1 : i32
    %40 = arith.select %39, %c1_i32, %c2_i32 : i32
    %41 = vector.broadcast %40 : i32 to vector<16x16x1xi32>
    %42 = arith.remsi %38, %41 : vector<16x16x1xi32>
    %c0_i32_38 = arith.constant 0 : i32
    %43 = vector.broadcast %c0_i32_38 : i32 to vector<16x16x1xi32>
    %44 = arith.cmpi ne, %42, %43 : vector<16x16x1xi32>
    %c0_i32_39 = arith.constant 0 : i32
    %45 = vector.broadcast %c0_i32_39 : i32 to vector<16x16x1xi32>
    %46 = arith.cmpi slt, %42, %45 : vector<16x16x1xi32>
    %c0_i32_40 = arith.constant 0 : i32
    %47 = arith.cmpi slt, %40, %c0_i32_40 : i32
    %48 = vector.broadcast %47 : i1 to vector<16x16x1xi1>
    %49 = vector.broadcast %48 : vector<16x16x1xi1> to vector<16x16x1xi1>
    %50 = arith.xori %46, %49 : vector<16x16x1xi1>
    %51 = arith.andi %50, %44 : vector<16x16x1xi1>
    %52 = vector.broadcast %40 : i32 to vector<16x16x1xi32>
    %53 = arith.addi %42, %52 : vector<16x16x1xi32>
    %54 = arith.select %51, %53, %42 : vector<16x16x1xi1>, vector<16x16x1xi32>
    %cst_41 = arith.constant 0.000000e+00 : f32
    %55 = vector.broadcast %cst_41 : f32 to vector<16x16x4xf32>
    %56 = vector.shape_cast %29 : vector<16x8x4xf32> to vector<16x8x1x4xf32>
    %57 = vector.shape_cast %56 : vector<16x8x1x4xf32> to vector<16x8x1x4xf32>
    %58 = vector.broadcast %57 : vector<16x8x1x4xf32> to vector<16x8x2x4xf32>
    %59 = vector.shape_cast %58 : vector<16x8x2x4xf32> to vector<16x16x4xf32>
    %c0_i32_42 = arith.constant 0 : i32
    %60 = vector.broadcast %c0_i32_42 : i32 to vector<16x16x1xi32>
    %61 = arith.cmpi eq, %54, %60 : vector<16x16x1xi32>
    %62 = vector.shape_cast %61 : vector<16x16x1xi1> to vector<16x16x1xi1>
    %63 = vector.broadcast %62 : vector<16x16x1xi1> to vector<16x16x4xi1>
    %64 = arith.select %63, %59, %55 : vector<16x16x4xi1>, vector<16x16x4xf32>
    %65 = vector.shape_cast %37 : vector<16x8x4xf32> to vector<16x8x1x4xf32>
    %66 = vector.shape_cast %65 : vector<16x8x1x4xf32> to vector<16x8x1x4xf32>
    %67 = vector.broadcast %66 : vector<16x8x1x4xf32> to vector<16x8x2x4xf32>
    %68 = vector.shape_cast %67 : vector<16x8x2x4xf32> to vector<16x16x4xf32>
    %c1_i32_43 = arith.constant 1 : i32
    %69 = vector.broadcast %c1_i32_43 : i32 to vector<16x16x1xi32>
    %70 = arith.cmpi eq, %54, %69 : vector<16x16x1xi32>
    %71 = vector.shape_cast %70 : vector<16x16x1xi1> to vector<16x16x1xi1>
    %72 = vector.broadcast %71 : vector<16x16x1xi1> to vector<16x16x4xi1>
    %73 = arith.select %72, %68, %64 : vector<16x16x4xi1>, vector<16x16x4xf32>
    %c0_44 = arith.constant 0 : index
    %c0_45 = arith.constant 0 : index
    %c0_46 = arith.constant 0 : index
    %c0_47 = arith.constant 0 : index
    %74 = vector.load %arg2[%c0_44, %c0_45, %c0_46, %c0_47] : memref<1x16x16x4xf32, #tpu.memory_space<vmem>>, vector<1x16x16x4xf32>
    %75 = vector.shape_cast %74 : vector<1x16x16x4xf32> to vector<16x16x4xf32>
    %76 = tpu.concatenate %73, %75 in 2 : vector<16x16x4xf32>, vector<16x16x4xf32> -> vector<16x16x8xf32>
    %c1 = arith.constant 1 : index
    %c1_48 = arith.constant 1 : index
    %c0_49 = arith.constant 0 : index
    %77 = vector.load %arg8[%c1, %c1_48, %c0_49] : memref<18x18x8xf32, #tpu.memory_space<vmem>>, vector<16x16x8xf32>
    tpu.vector_store %arg8[%c1, %c1_48, %c0_49], %76 {strides = array<i32>} : memref<18x18x8xf32, #tpu.memory_space<vmem>>, vector<16x16x8xf32>,
    %c0_50 = arith.constant 0 : index
    %c0_51 = arith.constant 0 : index
    %c0_52 = arith.constant 0 : index
    %78 = vector.load %arg8[%c0_50, %c0_51, %c0_52] : memref<18x18x8xf32, #tpu.memory_space<vmem>>, vector<16x16x8xf32>
    %c0_53 = arith.constant 0 : index
    %c1_54 = arith.constant 1 : index
    %c0_55 = arith.constant 0 : index
    %79 = vector.load %arg8[%c0_53, %c1_54, %c0_55] : memref<18x18x8xf32, #tpu.memory_space<vmem>>, vector<16x16x8xf32>
    %c0_56 = arith.constant 0 : index
    %c2 = arith.constant 2 : index
    %c0_57 = arith.constant 0 : index
    %80 = vector.load %arg8[%c0_56, %c2, %c0_57] : memref<18x18x8xf32, #tpu.memory_space<vmem>>, vector<16x16x8xf32>
    %c1_58 = arith.constant 1 : index
    %c0_59 = arith.constant 0 : index
    %c0_60 = arith.constant 0 : index
    %81 = vector.load %arg8[%c1_58, %c0_59, %c0_60] : memref<18x18x8xf32, #tpu.memory_space<vmem>>, vector<16x16x8xf32>
    %c1_61 = arith.constant 1 : index
    %c1_62 = arith.constant 1 : index
    %c0_63 = arith.constant 0 : index
    %82 = vector.load %arg8[%c1_61, %c1_62, %c0_63] : memref<18x18x8xf32, #tpu.memory_space<vmem>>, vector<16x16x8xf32>
    %c1_64 = arith.constant 1 : index
    %c2_65 = arith.constant 2 : index
    %c0_66 = arith.constant 0 : index
    %83 = vector.load %arg8[%c1_64, %c2_65, %c0_66] : memref<18x18x8xf32, #tpu.memory_space<vmem>>, vector<16x16x8xf32>
    %c2_67 = arith.constant 2 : index
    %c0_68 = arith.constant 0 : index
    %c0_69 = arith.constant 0 : index
    %84 = vector.load %arg8[%c2_67, %c0_68, %c0_69] : memref<18x18x8xf32, #tpu.memory_space<vmem>>, vector<16x16x8xf32>
    %c2_70 = arith.constant 2 : index
    %c1_71 = arith.constant 1 : index
    %c0_72 = arith.constant 0 : index
    %85 = vector.load %arg8[%c2_70, %c1_71, %c0_72] : memref<18x18x8xf32, #tpu.memory_space<vmem>>, vector<16x16x8xf32>
    %c2_73 = arith.constant 2 : index
    %c2_74 = arith.constant 2 : index
    %c0_75 = arith.constant 0 : index
    %86 = vector.load %arg8[%c2_73, %c2_74, %c0_75] : memref<18x18x8xf32, #tpu.memory_space<vmem>>, vector<16x16x8xf32>
    %87 = tpu.concatenate %78, %79, %80, %81, %82, %83, %84, %85, %86 in 2 : vector<16x16x8xf32>, vector<16x16x8xf32>, vector<16x16x8xf32>, vector<16x16x8xf32>, vector<16x16x8xf32>, vector<16x16x8xf32>, vector<16x16x8xf32>, vector<16x16x8xf32>, vector<16x16x8xf32> -> vector<16x16x72xf32>
    %88 = vector.shape_cast %87 : vector<16x16x72xf32> to vector<256x72xf32>
    %89 = arith.truncf %88 : vector<256x72xf32> to vector<256x72xbf16>
    %c0_76 = arith.constant 0 : index
    %c0_77 = arith.constant 0 : index
    %90 = vector.load %arg4[%c0_76, %c0_77] : memref<72x8xbf16, #tpu.memory_space<vmem>>, vector<72x8xbf16>
    %cst_78 = arith.constant dense<0.000000e+00> : vector<256x8xf32>
    %91 = tpu.matmul %89, %90, %cst_78 {dimension_numbers = #tpu.dot_dimension_numbers<[1], [0], [0], [1], [0, 0, 1, 1], [], []>} : vector<256x72xbf16>, vector<72x8xbf16>, vector<256x8xf32> -> vector<256x8xf32>
    %92 = vector.extract_strided_slice %91 {offsets = [0, 0], sizes = [256, 4], strides = [1, 1]} : vector<256x8xf32> to vector<256x4xf32>
    %93 = vector.extract_strided_slice %0 {offsets = [0, 0], sizes = [1, 4], strides = [1, 1]} : vector<6x4xf32> to vector<1x4xf32>
    %94 = vector.extract_strided_slice %0 {offsets = [1, 0], sizes = [1, 4], strides = [1, 1]} : vector<6x4xf32> to vector<1x4xf32>
    %cst_79 = arith.constant dense<0.000000e+00> : vector<4xf32>
    %95 = vector.multi_reduction <add>, %92, %cst_79 [0] : vector<256x4xf32> to vector<4xf32>
    %96 = vector.shape_cast %95 : vector<4xf32> to vector<1x4xf32>
    %cst_80 = arith.constant 2.560000e+02 : f32
    %97 = vector.broadcast %cst_80 : f32 to vector<1x4xf32>
    %98 = arith.divf %96, %97 : vector<1x4xf32>
    %99 = vector.broadcast %98 : vector<1x4xf32> to vector<256x4xf32>
    %100 = arith.subf %92, %99 : vector<256x4xf32>
    %101 = arith.mulf %100, %100 : vector<256x4xf32>
    %cst_81 = arith.constant dense<0.000000e+00> : vector<4xf32>
    %102 = vector.multi_reduction <add>, %101, %cst_81 [0] : vector<256x4xf32> to vector<4xf32>
    %103 = vector.shape_cast %102 : vector<4xf32> to vector<1x4xf32>
    %cst_82 = arith.constant 2.560000e+02 : f32
    %104 = vector.broadcast %cst_82 : f32 to vector<1x4xf32>
    %105 = arith.divf %103, %104 : vector<1x4xf32>
    %106 = vector.broadcast %98 : vector<1x4xf32> to vector<256x4xf32>
    %107 = arith.subf %92, %106 : vector<256x4xf32>
    %cst_83 = arith.constant 9.99999974E-6 : f32
    %108 = vector.broadcast %cst_83 : f32 to vector<1x4xf32>
    %109 = arith.addf %105, %108 : vector<1x4xf32>
    %110 = math.rsqrt %109 : vector<1x4xf32>
    %111 = vector.broadcast %110 : vector<1x4xf32> to vector<256x4xf32>
    %112 = arith.mulf %107, %111 : vector<256x4xf32>
    %113 = vector.broadcast %93 : vector<1x4xf32> to vector<256x4xf32>
    %114 = arith.mulf %112, %113 : vector<256x4xf32>
    %115 = vector.broadcast %94 : vector<1x4xf32> to vector<256x4xf32>
    %116 = arith.addf %114, %115 : vector<256x4xf32>
    %cst_84 = arith.constant 0.000000e+00 : f32
    %117 = vector.broadcast %cst_84 : f32 to vector<256x4xf32>
    %118 = arith.cmpf oge, %116, %117 : vector<256x4xf32>
    %cst_85 = arith.constant 0.00999999977 : f32
    %119 = vector.broadcast %cst_85 : f32 to vector<256x4xf32>
    %120 = arith.mulf %119, %116 : vector<256x4xf32>
    %121 = arith.select %118, %116, %120 : vector<256x4xi1>, vector<256x4xf32>
    %122 = vector.extract_strided_slice %91 {offsets = [0, 4], sizes = [256, 4], strides = [1, 1]} : vector<256x8xf32> to vector<256x4xf32>
    %123 = vector.extract_strided_slice %0 {offsets = [4, 0], sizes = [1, 4], strides = [1, 1]} : vector<6x4xf32> to vector<1x4xf32>
    %124 = vector.extract_strided_slice %0 {offsets = [5, 0], sizes = [1, 4], strides = [1, 1]} : vector<6x4xf32> to vector<1x4xf32>
    %cst_86 = arith.constant dense<0.000000e+00> : vector<4xf32>
    %125 = vector.multi_reduction <add>, %122, %cst_86 [0] : vector<256x4xf32> to vector<4xf32>
    %126 = vector.shape_cast %125 : vector<4xf32> to vector<1x4xf32>
    %cst_87 = arith.constant 2.560000e+02 : f32
    %127 = vector.broadcast %cst_87 : f32 to vector<1x4xf32>
    %128 = arith.divf %126, %127 : vector<1x4xf32>
    %129 = vector.broadcast %128 : vector<1x4xf32> to vector<256x4xf32>
    %130 = arith.subf %122, %129 : vector<256x4xf32>
    %131 = arith.mulf %130, %130 : vector<256x4xf32>
    %cst_88 = arith.constant dense<0.000000e+00> : vector<4xf32>
    %132 = vector.multi_reduction <add>, %131, %cst_88 [0] : vector<256x4xf32> to vector<4xf32>
    %133 = vector.shape_cast %132 : vector<4xf32> to vector<1x4xf32>
    %cst_89 = arith.constant 2.560000e+02 : f32
    %134 = vector.broadcast %cst_89 : f32 to vector<1x4xf32>
    %135 = arith.divf %133, %134 : vector<1x4xf32>
    %136 = vector.broadcast %128 : vector<1x4xf32> to vector<256x4xf32>
    %137 = arith.subf %122, %136 : vector<256x4xf32>
    %cst_90 = arith.constant 9.99999974E-6 : f32
    %138 = vector.broadcast %cst_90 : f32 to vector<1x4xf32>
    %139 = arith.addf %135, %138 : vector<1x4xf32>
    %140 = math.rsqrt %139 : vector<1x4xf32>
    %141 = vector.broadcast %140 : vector<1x4xf32> to vector<256x4xf32>
    %142 = arith.mulf %137, %141 : vector<256x4xf32>
    %143 = vector.broadcast %123 : vector<1x4xf32> to vector<256x4xf32>
    %144 = arith.mulf %142, %143 : vector<256x4xf32>
    %145 = vector.broadcast %124 : vector<1x4xf32> to vector<256x4xf32>
    %146 = arith.addf %144, %145 : vector<256x4xf32>
    %147 = vector.shape_cast %121 : vector<256x4xf32> to vector<16x16x4xf32>
    %c1_91 = arith.constant 1 : index
    %c1_92 = arith.constant 1 : index
    %c0_93 = arith.constant 0 : index
    %148 = vector.load %arg9[%c1_91, %c1_92, %c0_93] : memref<18x18x4xf32, #tpu.memory_space<vmem>>, vector<16x16x4xf32>
    tpu.vector_store %arg9[%c1_91, %c1_92, %c0_93], %147 {strides = array<i32>} : memref<18x18x4xf32, #tpu.memory_space<vmem>>, vector<16x16x4xf32>,
    %c0_94 = arith.constant 0 : index
    %c0_95 = arith.constant 0 : index
    %c0_96 = arith.constant 0 : index
    %149 = vector.load %arg9[%c0_94, %c0_95, %c0_96] : memref<18x18x4xf32, #tpu.memory_space<vmem>>, vector<16x16x4xf32>
    %c0_97 = arith.constant 0 : index
    %c1_98 = arith.constant 1 : index
    %c0_99 = arith.constant 0 : index
    %150 = vector.load %arg9[%c0_97, %c1_98, %c0_99] : memref<18x18x4xf32, #tpu.memory_space<vmem>>, vector<16x16x4xf32>
    %c0_100 = arith.constant 0 : index
    %c2_101 = arith.constant 2 : index
    %c0_102 = arith.constant 0 : index
    %151 = vector.load %arg9[%c0_100, %c2_101, %c0_102] : memref<18x18x4xf32, #tpu.memory_space<vmem>>, vector<16x16x4xf32>
    %c1_103 = arith.constant 1 : index
    %c0_104 = arith.constant 0 : index
    %c0_105 = arith.constant 0 : index
    %152 = vector.load %arg9[%c1_103, %c0_104, %c0_105] : memref<18x18x4xf32, #tpu.memory_space<vmem>>, vector<16x16x4xf32>
    %c1_106 = arith.constant 1 : index
    %c1_107 = arith.constant 1 : index
    %c0_108 = arith.constant 0 : index
    %153 = vector.load %arg9[%c1_106, %c1_107, %c0_108] : memref<18x18x4xf32, #tpu.memory_space<vmem>>, vector<16x16x4xf32>
    %c1_109 = arith.constant 1 : index
    %c2_110 = arith.constant 2 : index
    %c0_111 = arith.constant 0 : index
    %154 = vector.load %arg9[%c1_109, %c2_110, %c0_111] : memref<18x18x4xf32, #tpu.memory_space<vmem>>, vector<16x16x4xf32>
    %c2_112 = arith.constant 2 : index
    %c0_113 = arith.constant 0 : index
    %c0_114 = arith.constant 0 : index
    %155 = vector.load %arg9[%c2_112, %c0_113, %c0_114] : memref<18x18x4xf32, #tpu.memory_space<vmem>>, vector<16x16x4xf32>
    %c2_115 = arith.constant 2 : index
    %c1_116 = arith.constant 1 : index
    %c0_117 = arith.constant 0 : index
    %156 = vector.load %arg9[%c2_115, %c1_116, %c0_117] : memref<18x18x4xf32, #tpu.memory_space<vmem>>, vector<16x16x4xf32>
    %c2_118 = arith.constant 2 : index
    %c2_119 = arith.constant 2 : index
    %c0_120 = arith.constant 0 : index
    %157 = vector.load %arg9[%c2_118, %c2_119, %c0_120] : memref<18x18x4xf32, #tpu.memory_space<vmem>>, vector<16x16x4xf32>
    %158 = tpu.concatenate %149, %150, %151, %152, %153, %154, %155, %156, %157 in 2 : vector<16x16x4xf32>, vector<16x16x4xf32>, vector<16x16x4xf32>, vector<16x16x4xf32>, vector<16x16x4xf32>, vector<16x16x4xf32>, vector<16x16x4xf32>, vector<16x16x4xf32>, vector<16x16x4xf32> -> vector<16x16x36xf32>
    %159 = vector.shape_cast %158 : vector<16x16x36xf32> to vector<256x36xf32>
    %160 = arith.truncf %159 : vector<256x36xf32> to vector<256x36xbf16>
    %c0_121 = arith.constant 0 : index
    %c0_122 = arith.constant 0 : index
    %161 = vector.load %arg5[%c0_121, %c0_122] : memref<36x4xbf16, #tpu.memory_space<vmem>>, vector<36x4xbf16>
    %cst_123 = arith.constant dense<0.000000e+00> : vector<256x4xf32>
    %162 = tpu.matmul %160, %161, %cst_123 {dimension_numbers = #tpu.dot_dimension_numbers<[1], [0], [0], [1], [0, 0, 1, 1], [], []>} : vector<256x36xbf16>, vector<36x4xbf16>, vector<256x4xf32> -> vector<256x4xf32>
    %163 = vector.extract_strided_slice %0 {offsets = [2, 0], sizes = [1, 4], strides = [1, 1]} : vector<6x4xf32> to vector<1x4xf32>
    %164 = vector.extract_strided_slice %0 {offsets = [3, 0], sizes = [1, 4], strides = [1, 1]} : vector<6x4xf32> to vector<1x4xf32>
    %cst_124 = arith.constant dense<0.000000e+00> : vector<4xf32>
    %165 = vector.multi_reduction <add>, %162, %cst_124 [0] : vector<256x4xf32> to vector<4xf32>
    %166 = vector.shape_cast %165 : vector<4xf32> to vector<1x4xf32>
    %cst_125 = arith.constant 2.560000e+02 : f32
    %167 = vector.broadcast %cst_125 : f32 to vector<1x4xf32>
    %168 = arith.divf %166, %167 : vector<1x4xf32>
    %169 = vector.broadcast %168 : vector<1x4xf32> to vector<256x4xf32>
    %170 = arith.subf %162, %169 : vector<256x4xf32>
    %171 = arith.mulf %170, %170 : vector<256x4xf32>
    %cst_126 = arith.constant dense<0.000000e+00> : vector<4xf32>
    %172 = vector.multi_reduction <add>, %171, %cst_126 [0] : vector<256x4xf32> to vector<4xf32>
    %173 = vector.shape_cast %172 : vector<4xf32> to vector<1x4xf32>
    %cst_127 = arith.constant 2.560000e+02 : f32
    %174 = vector.broadcast %cst_127 : f32 to vector<1x4xf32>
    %175 = arith.divf %173, %174 : vector<1x4xf32>
    %176 = vector.broadcast %168 : vector<1x4xf32> to vector<256x4xf32>
    %177 = arith.subf %162, %176 : vector<256x4xf32>
    %cst_128 = arith.constant 9.99999974E-6 : f32
    %178 = vector.broadcast %cst_128 : f32 to vector<1x4xf32>
    %179 = arith.addf %175, %178 : vector<1x4xf32>
    %180 = math.rsqrt %179 : vector<1x4xf32>
    %181 = vector.broadcast %180 : vector<1x4xf32> to vector<256x4xf32>
    %182 = arith.mulf %177, %181 : vector<256x4xf32>
    %183 = vector.broadcast %163 : vector<1x4xf32> to vector<256x4xf32>
    %184 = arith.mulf %182, %183 : vector<256x4xf32>
    %185 = vector.broadcast %164 : vector<1x4xf32> to vector<256x4xf32>
    %186 = arith.addf %184, %185 : vector<256x4xf32>
    %187 = arith.addf %186, %146 : vector<256x4xf32>
    %cst_129 = arith.constant 0.000000e+00 : f32
    %188 = vector.broadcast %cst_129 : f32 to vector<256x4xf32>
    %189 = arith.cmpf oge, %187, %188 : vector<256x4xf32>
    %cst_130 = arith.constant 0.00999999977 : f32
    %190 = vector.broadcast %cst_130 : f32 to vector<256x4xf32>
    %191 = arith.mulf %190, %187 : vector<256x4xf32>
    %192 = arith.select %189, %187, %191 : vector<256x4xi1>, vector<256x4xf32>
    %193 = vector.shape_cast %192 : vector<256x4xf32> to vector<16x16x4xf32>
    %c0_131 = arith.constant 0 : index
    %c0_132 = arith.constant 0 : index
    %c0_133 = arith.constant 0 : index
    %c0_134 = arith.constant 0 : index
    %194 = vector.load %arg7[%c0_131, %c0_132, %c0_133, %c0_134] : memref<1x16x16x4xf32, #tpu.memory_space<vmem>>, vector<1x16x16x4xf32>
    %195 = vector.shape_cast %194 : vector<1x16x16x4xf32> to vector<16x16x4xf32>
    %196 = vector.shape_cast %193 : vector<16x16x4xf32> to vector<1x16x16x4xf32>
    tpu.vector_store %arg7[%c0_131, %c0_132, %c0_133, %c0_134], %196 {strides = array<i32>} : memref<1x16x16x4xf32, #tpu.memory_space<vmem>>, vector<1x16x16x4xf32>,
    return
  }
  func.func @transform_0(%arg0: i32) -> (i32, i32, i32, i32) {
    %c0_i32 = arith.constant 0 : i32
    %c0_i32_0 = arith.constant 0 : i32
    %c0_i32_1 = arith.constant 0 : i32
    %c0_i32_2 = arith.constant 0 : i32
    return %arg0, %c0_i32, %c0_i32_0, %c0_i32_1 : i32, i32, i32, i32
  }
  func.func @transform_1(%arg0: i32) -> (i32, i32, i32, i32) {
    %c0_i32 = arith.constant 0 : i32
    %c0_i32_0 = arith.constant 0 : i32
    %c0_i32_1 = arith.constant 0 : i32
    %c0_i32_2 = arith.constant 0 : i32
    return %arg0, %c0_i32, %c0_i32_0, %c0_i32_1 : i32, i32, i32, i32
  }
  func.func @transform_2(%arg0: i32) -> (i32, i32) {
    %c0_i32 = arith.constant 0 : i32
    %c0_i32_0 = arith.constant 0 : i32
    %c0_i32_1 = arith.constant 0 : i32
    return %c0_i32, %c0_i32_0 : i32, i32
  }
  func.func @transform_3(%arg0: i32) -> (i32, i32) {
    %c0_i32 = arith.constant 0 : i32
    %c0_i32_0 = arith.constant 0 : i32
    %c0_i32_1 = arith.constant 0 : i32
    return %c0_i32, %c0_i32_0 : i32, i32
  }
  func.func @transform_4(%arg0: i32) -> (i32, i32) {
    %c0_i32 = arith.constant 0 : i32
    %c0_i32_0 = arith.constant 0 : i32
    %c0_i32_1 = arith.constant 0 : i32
    return %c0_i32, %c0_i32_0 : i32, i32
  }
  func.func @transform_5(%arg0: i32) -> (i32, i32) {
    %c0_i32 = arith.constant 0 : i32
    %c0_i32_0 = arith.constant 0 : i32
    %c0_i32_1 = arith.constant 0 : i32
    return %c0_i32, %c0_i32_0 : i32, i32
  }
  func.func @transform_6(%arg0: i32) -> (i32, i32, i32, i32) {
    %c0_i32 = arith.constant 0 : i32
    %c0_i32_0 = arith.constant 0 : i32
    %c0_i32_1 = arith.constant 0 : i32
    %c0_i32_2 = arith.constant 0 : i32
    return %arg0, %c0_i32, %c0_i32_0, %c0_i32_1 : i32, i32, i32, i32
  }
}

</mosaic_0001>

<llo_original>
// kernel: tpu_custom_call.1
$region0: #{tpu_custom_call.1}
  #allocation0 [shape = 'u32[]', space=smem, size = 0x4, offset = 0x4, fixed_abs, tag = 'smem constant byte address 0x4 - core index']
  #allocation1 [shape = 'u32[72,128]{1,0:T(1,128)}', space=vmem, size = 0x9000, scoped, tag = 'internal scratch']
  #allocation2 [shape = 'f32[18,18,8]{2,1,0:T(8,128)}', space=vmem, size = 0x36000, scoped, tag = 'scratch operand']
  #allocation3 [shape = 'f32[18,18,4]{2,1,0:T(8,128)}', space=vmem, size = 0x36000, scoped, tag = 'scratch operand']
  %s0 = inlined_call_operand.vmem [shape: f32[2,8,8,8], index: 0, kind: input, shape index: {}]
  %s1 = inlined_call_operand.vmem [shape: f32[2,16,16,4], index: 1, kind: input, shape index: {}]
  %s2 = inlined_call_operand.vmem [shape: f32[8,16], index: 2, kind: input, shape index: {}]
  %s3 = inlined_call_operand.vmem [shape: bf16[72,8], index: 3, kind: input, shape index: {}]
  %s4 = inlined_call_operand.vmem [shape: bf16[36,4], index: 4, kind: input, shape index: {}]
  %s5 = inlined_call_operand.vmem [shape: f32[6,4], index: 5, kind: input, shape index: {}]
  %s6 = inlined_call_operand.vmem [shape: f32[2,16,16,4], index: 6, kind: output, shape index: {}]
  %s7 = sld [smem:[#allocation0]]
  $region57: #{tpu_custom_call.1} parent=0
    _
  %s9 = ssub.s32 1, %s7
  %s10 = scalar_select 0, %s9, %s7
  loop: start=0, step=1, limit=4
  $region2: #{tpu_custom_call.1} parent=0 // loop_pre_header
    _
  $region3: #{tpu_custom_call.1} parent=0 // loop_header
    %s12 = sphi 0, %s16
    %p13 = scmp.ge.s32.totalorder %s12, 4
    %s22 = sphi 0, %s24
    %s25 = sphi 0, %s22
    %s26 = sphi 0, %s25
    %s42 = sphi 0, %s26
    %s48 = sphi 0, %s50
    %s51 = sphi 0, %s48
    %s52 = sphi 0, %s51
    %s68 = sphi 0, %s52
    %s72 = sphi 0, %s72
    %s74 = sphi 0, %s72
    %s75 = sphi 0, %s74
    %s89 = sphi 0, %s75
    %s93 = sphi 0, %s93
    %s95 = sphi 0, %s93
    %s96 = sphi 0, %s95
    %s110 = sphi 0, %s96
    %s114 = sphi 0, %s114
    %s116 = sphi 0, %s114
    %s117 = sphi 0, %s116
    %s131 = sphi 0, %s117
    %s135 = sphi 0, %s135
    %s137 = sphi 0, %s135
    %s138 = sphi 0, %s137
    %s152 = sphi 0, %s138
    %s158 = sphi 0, %s160
    %s161 = sphi 0, %s158
    %s162 = sphi 0, %s161
    %s178 = sphi 0, %s162
  $region4: #{tpu_custom_call.1} parent=0 // loop_header_branch
    %15 = sbr.rel (%p13) target = $region8
  $region5: #{tpu_custom_call.1} parent=0 // loop_body
    %s17 = ssub.s32 %s12, 1
    %s18 = ssub.s32 %s12, 2
    %s19 = sadd.s32 %s12, 1
    %s20 = ssub.s32 %s12, %s19
    %p21 = scmp.eq.s32.totalorder %s20, 0
    %s23 = sadd.s32 %s22, 1
    %s24 = scalar_select %p21, %s22, %s23
    %p27 = pneg %p21
    %p28 = scmp.eq.s32.totalorder %s12, 1
    %p29 = por %p27, %p28
    %p30 = scmp.ne.s32.totalorder %s22, %s25
    %p31 = scmp.eq.s32.totalorder %s12, 0
    %p32 = por %p30, %p31
    %p33 = scmp.ne.s32.totalorder %s22, %s25
    %p34 = scmp.eq.s32.totalorder %s17, 1
    %p35 = por %p33, %p34
    %p36 = scmp.ne.s32.totalorder %s25, %s26
    %p37 = scmp.eq.s32.totalorder %s17, 0
    %p38 = por %p36, %p37
    %p39 = scmp.ne.s32.totalorder %s25, %s26
    %p40 = scmp.eq.s32.totalorder %s18, 1
    %p41 = por %p39, %p40
    %p43 = scmp.ne.s32.totalorder %s26, %s42
    %p44 = scmp.eq.s32.totalorder %s18, 0
    %p45 = por %p43, %p44
    %s46 = ssub.s32 %s12, %s19
    %p47 = scmp.eq.s32.totalorder %s46, 0
    %s49 = sadd.s32 %s48, 1
    %s50 = scalar_select %p47, %s48, %s49
    %p53 = pneg %p47
    %p54 = scmp.eq.s32.totalorder %s12, 1
    %p55 = por %p53, %p54
    %p56 = scmp.ne.s32.totalorder %s48, %s51
    %p57 = scmp.eq.s32.totalorder %s12, 0
    %p58 = por %p56, %p57
    %p59 = scmp.ne.s32.totalorder %s48, %s51
    %p60 = scmp.eq.s32.totalorder %s17, 1
    %p61 = por %p59, %p60
    %p62 = scmp.ne.s32.totalorder %s51, %s52
    %p63 = scmp.eq.s32.totalorder %s17, 0
    %p64 = por %p62, %p63
    %p65 = scmp.ne.s32.totalorder %s51, %s52
    %p66 = scmp.eq.s32.totalorder %s18, 1
    %p67 = por %p65, %p66
    %p69 = scmp.ne.s32.totalorder %s52, %s68
    %p70 = scmp.eq.s32.totalorder %s18, 0
    %p71 = por %p69, %p70
    %s73 = sadd.s32 %s72, 1
    %p76 = scmp.eq.s32.totalorder %s12, 1
    %p77 = scmp.ne.s32.totalorder %s72, %s74
    %p78 = scmp.eq.s32.totalorder %s12, 0
    %p79 = por %p77, %p78
    %p80 = scmp.ne.s32.totalorder %s72, %s74
    %p81 = scmp.eq.s32.totalorder %s17, 1
    %p82 = por %p80, %p81
    %p83 = scmp.ne.s32.totalorder %s74, %s75
    %p84 = scmp.eq.s32.totalorder %s17, 0
    %p85 = por %p83, %p84
    %p86 = scmp.ne.s32.totalorder %s74, %s75
    %p87 = scmp.eq.s32.totalorder %s18, 1
    %p88 = por %p86, %p87
    %p90 = scmp.ne.s32.totalorder %s75, %s89
    %p91 = scmp.eq.s32.totalorder %s18, 0
    %p92 = por %p90, %p91
    %s94 = sadd.s32 %s93, 1
    %p97 = scmp.eq.s32.totalorder %s12, 1
    %p98 = scmp.ne.s32.totalorder %s93, %s95
    %p99 = scmp.eq.s32.totalorder %s12, 0
    %p100 = por %p98, %p99
    %p101 = scmp.ne.s32.totalorder %s93, %s95
    %p102 = scmp.eq.s32.totalorder %s17, 1
    %p103 = por %p101, %p102
    %p104 = scmp.ne.s32.totalorder %s95, %s96
    %p105 = scmp.eq.s32.totalorder %s17, 0
    %p106 = por %p104, %p105
    %p107 = scmp.ne.s32.totalorder %s95, %s96
    %p108 = scmp.eq.s32.totalorder %s18, 1
    %p109 = por %p107, %p108
    %p111 = scmp.ne.s32.totalorder %s96, %s110
    %p112 = scmp.eq.s32.totalorder %s18, 0
    %p113 = por %p111, %p112
    %s115 = sadd.s32 %s114, 1
    %p118 = scmp.eq.s32.totalorder %s12, 1
    %p119 = scmp.ne.s32.totalorder %s114, %s116
    %p120 = scmp.eq.s32.totalorder %s12, 0
    %p121 = por %p119, %p120
    %p122 = scmp.ne.s32.totalorder %s114, %s116
    %p123 = scmp.eq.s32.totalorder %s17, 1
    %p124 = por %p122, %p123
    %p125 = scmp.ne.s32.totalorder %s116, %s117
    %p126 = scmp.eq.s32.totalorder %s17, 0
    %p127 = por %p125, %p126
    %p128 = scmp.ne.s32.totalorder %s116, %s117
    %p129 = scmp.eq.s32.totalorder %s18, 1
    %p130 = por %p128, %p129
    %p132 = scmp.ne.s32.totalorder %s117, %s131
    %p133 = scmp.eq.s32.totalorder %s18, 0
    %p134 = por %p132, %p133
    %s136 = sadd.s32 %s135, 1
    %p139 = scmp.eq.s32.totalorder %s12, 1
    %p140 = scmp.ne.s32.totalorder %s135, %s137
    %p141 = scmp.eq.s32.totalorder %s12, 0
    %p142 = por %p140, %p141
    %p143 = scmp.ne.s32.totalorder %s135, %s137
    %p144 = scmp.eq.s32.totalorder %s17, 1
    %p145 = por %p143, %p144
    %p146 = scmp.ne.s32.totalorder %s137, %s138
    %p147 = scmp.eq.s32.totalorder %s17, 0
    %p148 = por %p146, %p147
    %p149 = scmp.ne.s32.totalorder %s137, %s138
    %p150 = scmp.eq.s32.totalorder %s18, 1
    %p151 = por %p149, %p150
    %p153 = scmp.ne.s32.totalorder %s138, %s152
    %p154 = scmp.eq.s32.totalorder %s18, 0
    %p155 = por %p153, %p154
    %s156 = ssub.s32 %s12, %s19
    %p157 = scmp.eq.s32.totalorder %s156, 0
    %s159 = sadd.s32 %s158, 1
    %s160 = scalar_select %p157, %s158, %s159
    %p163 = pneg %p157
    %p164 = scmp.eq.s32.totalorder %s12, 1
    %p165 = por %p163, %p164
    %p166 = scmp.ne.s32.totalorder %s158, %s161
    %p167 = scmp.eq.s32.totalorder %s12, 0
    %p168 = por %p166, %p167
    %p169 = scmp.ne.s32.totalorder %s158, %s161
    %p170 = scmp.eq.s32.totalorder %s17, 1
    %p171 = por %p169, %p170
    %p172 = scmp.ne.s32.totalorder %s161, %s162
    %p173 = scmp.eq.s32.totalorder %s17, 0
    %p174 = por %p172, %p173
    %p175 = scmp.ne.s32.totalorder %s161, %s162
    %p176 = scmp.eq.s32.totalorder %s18, 1
    %p177 = por %p175, %p176
    %p179 = scmp.ne.s32.totalorder %s162, %s178
    %p180 = scmp.eq.s32.totalorder %s18, 0
    %p181 = por %p179, %p180
    %p182 = scmp.le.s32.totalorder 1, %s12
    %p183 = scmp.lt.s32.totalorder %s12, 3
    %p184 = pnand %p182, %p183
    %p185 = pneg %p184
    // Predicated region
    $region9: #{tpu_custom_call.1} parent=5 // pred_check
      _
    $region10: #{tpu_custom_call.1} parent=5 // pred_check_branch
      %187 = sbr.rel (%p184) target = $region12
    $region11: #{tpu_custom_call.1} parent=5 // pred_region
      %s188 = ssub.s32 %s12, 1
      // Predicated region
      $region13: #{tpu_custom_call.1} parent=11 // pred_check
        %p189 = pneg %p85
      $region14: #{tpu_custom_call.1} parent=11 // pred_check_branch
        %191 = sbr.rel (%p189) target = $region16
      $region15: #{tpu_custom_call.1} parent=11 // pred_region
        _
      $region16: #{tpu_custom_call.1} parent=11 // pred_fallthru
        _
      // Predicated region
      $region17: #{tpu_custom_call.1} parent=11 // pred_check
        %p192 = pneg %p106
      $region18: #{tpu_custom_call.1} parent=11 // pred_check_branch
        %194 = sbr.rel (%p192) target = $region20
      $region19: #{tpu_custom_call.1} parent=11 // pred_region
        _
      $region20: #{tpu_custom_call.1} parent=11 // pred_fallthru
        _
      // Predicated region
      $region21: #{tpu_custom_call.1} parent=11 // pred_check
        %p195 = pneg %p127
      $region22: #{tpu_custom_call.1} parent=11 // pred_check_branch
        %197 = sbr.rel (%p195) target = $region24
      $region23: #{tpu_custom_call.1} parent=11 // pred_region
        _
      $region24: #{tpu_custom_call.1} parent=11 // pred_fallthru
        _
      // Predicated region
      $region25: #{tpu_custom_call.1} parent=11 // pred_check
        %p198 = pneg %p148
      $region26: #{tpu_custom_call.1} parent=11 // pred_check_branch
        %200 = sbr.rel (%p198) target = $region28
      $region27: #{tpu_custom_call.1} parent=11 // pred_region
        _
      $region28: #{tpu_custom_call.1} parent=11 // pred_fallthru
        _
    $region12: #{tpu_custom_call.1} parent=5 // pred_fallthru
      _
    %p201 = scmp.lt.s32.totalorder %s12, 2
    // Predicated region
    $region29: #{tpu_custom_call.1} parent=5 // pred_check
      %p202 = pneg %p201
    $region30: #{tpu_custom_call.1} parent=5 // pred_check_branch
      %204 = sbr.rel (%p202) target = $region32
    $region31: #{tpu_custom_call.1} parent=5 // pred_region
      // Predicated region
      $region33: #{tpu_custom_call.1} parent=31 // pred_check
        %p205 = pneg %p32
      $region34: #{tpu_custom_call.1} parent=31 // pred_check_branch
        %207 = sbr.rel (%p205) target = $region36
      $region35: #{tpu_custom_call.1} parent=31 // pred_region
        %p208 = scmp.lt.s32.totalorder %s12, 1
        %s209 = scalar_select %p208, %s12, 1
        %s210 = smul.addr %s209, 8
        %s211 = smul.addr %s210, 8
        %s212 = scalar_lea.vmem %s0, %s211
      $region36: #{tpu_custom_call.1} parent=31 // pred_fallthru
        _
      // Predicated region
      $region37: #{tpu_custom_call.1} parent=31 // pred_check
        %p213 = pneg %p58
      $region38: #{tpu_custom_call.1} parent=31 // pred_check_branch
        %215 = sbr.rel (%p213) target = $region40
      $region39: #{tpu_custom_call.1} parent=31 // pred_region
        %p216 = scmp.lt.s32.totalorder %s12, 1
        %s217 = scalar_select %p216, %s12, 1
        %s218 = smul.addr %s217, 32
        %s219 = smul.addr %s218, 8
        %s220 = scalar_lea.vmem %s1, %s219
      $region40: #{tpu_custom_call.1} parent=31 // pred_fallthru
        _
    $region32: #{tpu_custom_call.1} parent=5 // pred_fallthru
      _
    %p221 = scmp.le.s32.totalorder 1, %s12
    %p222 = scmp.lt.s32.totalorder %s12, 3
    %p223 = pnand %p221, %p222
    %p224 = pneg %p223
    // Predicated region
    $region41: #{tpu_custom_call.1} parent=5 // pred_check
      _
    $region42: #{tpu_custom_call.1} parent=5 // pred_check_branch
      %226 = sbr.rel (%p223) target = $region44
    $region43: #{tpu_custom_call.1} parent=5 // pred_region
      %s227 = ssub.s32 %s12, 1
      %p228 = scmp.lt.s32.totalorder %s17, 1
      %s229 = scalar_select %p228, %s17, 1
      %s230 = smul.addr %s229, 8
      %s231 = smul.addr %s230, 8
      %s232 = scalar_lea.vmem %s0, %s231
      %p233 = pneg %p38
      %p234 = pneg %p35
      %p235 = scmp.lt.s32.totalorder %s17, 1
      %s236 = scalar_select %p235, %s17, 1
      %s237 = smul.addr %s236, 32
      %s238 = smul.addr %s237, 8
      %s239 = scalar_lea.vmem %s1, %s238
      %p240 = pneg %p64
      %p241 = pneg %p61
      %p242 = pneg %p85
      %p243 = pneg %p82
      %p244 = pneg %p106
      %p245 = pneg %p103
      %p246 = pneg %p127
      %p247 = pneg %p124
      %p248 = pneg %p148
      %p249 = pneg %p145
      %p250 = pneg %p174
      %p251 = pneg %p171
      %p252 = scmp.lt.s32.totalorder %s17, 1
      %s253 = scalar_select %p252, %s17, 1
      %s254 = smul.addr %s253, 32
      %s255 = smul.addr %s254, 8
      %s256 = scalar_lea.vmem %s6, %s255
      %p257 = scmp.lt.s32.totalorder %s17, 1
      %s258 = scalar_select %p257, %s17, 1
      %s259 = smul.addr %s258, 8
      %s260 = smul.addr %s259, 8
      %s261 = scalar_lea.vmem %s0, %s260
      %p262 = scmp.lt.s32.totalorder %s17, 1
      %s263 = scalar_select %p262, %s17, 1
      %s264 = smul.addr %s263, 32
      %s265 = smul.addr %s264, 8
      %s266 = scalar_lea.vmem %s1, %s265
      %p267 = scmp.lt.s32.totalorder %s17, 1
      %s268 = scalar_select %p267, %s17, 1
      %s269 = smul.addr %s268, 32
      %s270 = smul.addr %s269, 8
      %s271 = scalar_lea.vmem %s6, %s270
      %v273 = vld [vmem:[%s5] sm:$0x3f]
      %vm274 = vcmask 64512
      %275 = vst.msk [vmem:[#allocation2] sm:$0xff] %vm274, 0.0
      %276 = vst.msk [vmem:[#allocation2 + $0x8] sm:$0xff] %vm274, 0.0
      %vm277 = vcmask 58368
      %278 = vst.msk [vmem:[#allocation2 + $0x10] sm:$0x3] %vm277, 0.0
      %s279 = scalar_lea.vmem [#allocation2], 408
      %280 = vst.msk [vmem:[%s279] sm:$0xff] %vm274, 0.0
      %281 = vst.msk [vmem:[%s279 + $0x8] sm:$0xff] %vm274, 0.0
      %282 = vst.msk [vmem:[%s279 + $0x10] sm:$0x3] %vm277, 0.0
      %vm283 = vcmask 57344
      %284 = vst.msk [vmem:[#allocation2] sm:$0x1] %vm283, 0.0
      %285 = vst.msk [vmem:[#allocation2 + $0x18] sm:$0x1] %vm283, 0.0
      %286 = vst.msk [vmem:[#allocation2 + $0x30] sm:$0x1] %vm283, 0.0
      %287 = vst.msk [vmem:[#allocation2 + $0x48] sm:$0x1] %vm283, 0.0
      %288 = vst.msk [vmem:[#allocation2 + $0x60] sm:$0x1] %vm283, 0.0
      %289 = vst.msk [vmem:[#allocation2 + $0x78] sm:$0x1] %vm283, 0.0
      %290 = vst.msk [vmem:[#allocation2 + $0x90] sm:$0x1] %vm283, 0.0
      %291 = vst.msk [vmem:[#allocation2 + $0xa8] sm:$0x1] %vm283, 0.0
      %292 = vst.msk [vmem:[#allocation2 + $0xc0] sm:$0x1] %vm283, 0.0
      %293 = vst.msk [vmem:[#allocation2 + $0xd8] sm:$0x1] %vm283, 0.0
      %294 = vst.msk [vmem:[#allocation2 + $0xf0] sm:$0x1] %vm283, 0.0
      %295 = vst.msk [vmem:[#allocation2 + $0x108] sm:$0x1] %vm283, 0.0
      %296 = vst.msk [vmem:[#allocation2 + $0x120] sm:$0x1] %vm283, 0.0
      %297 = vst.msk [vmem:[#allocation2 + $0x138] sm:$0x1] %vm283, 0.0
      %298 = vst.msk [vmem:[#allocation2 + $0x150] sm:$0x1] %vm283, 0.0
      %299 = vst.msk [vmem:[#allocation2 + $0x168] sm:$0x1] %vm283, 0.0
      %300 = vst.msk [vmem:[#allocation2 + $0x180] sm:$0x1] %vm283, 0.0
      %301 = vst.msk [vmem:[#allocation2 + $0x198] sm:$0x1] %vm283, 0.0
      %302 = vst.msk [vmem:[#allocation2 + $0x11] sm:$0x1] %vm283, 0.0
      %303 = vst.msk [vmem:[#allocation2 + $0x29] sm:$0x1] %vm283, 0.0
      %304 = vst.msk [vmem:[#allocation2 + $0x41] sm:$0x1] %vm283, 0.0
      %305 = vst.msk [vmem:[#allocation2 + $0x59] sm:$0x1] %vm283, 0.0
      %306 = vst.msk [vmem:[#allocation2 + $0x71] sm:$0x1] %vm283, 0.0
      %307 = vst.msk [vmem:[#allocation2 + $0x89] sm:$0x1] %vm283, 0.0
      %308 = vst.msk [vmem:[#allocation2 + $0xa1] sm:$0x1] %vm283, 0.0
      %309 = vst.msk [vmem:[#allocation2 + $0xb9] sm:$0x1] %vm283, 0.0
      %310 = vst.msk [vmem:[#allocation2 + $0xd1] sm:$0x1] %vm283, 0.0
      %311 = vst.msk [vmem:[#allocation2 + $0xe9] sm:$0x1] %vm283, 0.0
      %312 = vst.msk [vmem:[#allocation2 + $0x101] sm:$0x1] %vm283, 0.0
      %313 = vst.msk [vmem:[#allocation2 + $0x119] sm:$0x1] %vm283, 0.0
      %314 = vst.msk [vmem:[#allocation2 + $0x131] sm:$0x1] %vm283, 0.0
      %315 = vst.msk [vmem:[#allocation2 + $0x149] sm:$0x1] %vm283, 0.0
      %316 = vst.msk [vmem:[#allocation2 + $0x161] sm:$0x1] %vm283, 0.0
      %317 = vst.msk [vmem:[#allocation2 + $0x179] sm:$0x1] %vm283, 0.0
      %318 = vst.msk [vmem:[#allocation2 + $0x191] sm:$0x1] %vm283, 0.0
      %319 = vst.msk [vmem:[#allocation2 + $0x1a9] sm:$0x1] %vm283, 0.0
      %vm320 = vcmask 31744
      %321 = vst.msk [vmem:[#allocation3] sm:$0xff] %vm320, 0.0
      %322 = vst.msk [vmem:[#allocation3 + $0x8] sm:$0xff] %vm320, 0.0
      %vm323 = vcmask 25600
      %324 = vst.msk [vmem:[#allocation3 + $0x10] sm:$0x3] %vm323, 0.0
      %s325 = scalar_lea.vmem [#allocation3], 408
      %326 = vst.msk [vmem:[%s325] sm:$0xff] %vm320, 0.0
      %327 = vst.msk [vmem:[%s325 + $0x8] sm:$0xff] %vm320, 0.0
      %328 = vst.msk [vmem:[%s325 + $0x10] sm:$0x3] %vm323, 0.0
      %vm329 = vcmask 24576
      %330 = vst.msk [vmem:[#allocation3] sm:$0x1] %vm329, 0.0
      %331 = vst.msk [vmem:[#allocation3 + $0x18] sm:$0x1] %vm329, 0.0
      %332 = vst.msk [vmem:[#allocation3 + $0x30] sm:$0x1] %vm329, 0.0
      %333 = vst.msk [vmem:[#allocation3 + $0x48] sm:$0x1] %vm329, 0.0
      %334 = vst.msk [vmem:[#allocation3 + $0x60] sm:$0x1] %vm329, 0.0
      %335 = vst.msk [vmem:[#allocation3 + $0x78] sm:$0x1] %vm329, 0.0
      %336 = vst.msk [vmem:[#allocation3 + $0x90] sm:$0x1] %vm329, 0.0
      %337 = vst.msk [vmem:[#allocation3 + $0xa8] sm:$0x1] %vm329, 0.0
      %338 = vst.msk [vmem:[#allocation3 + $0xc0] sm:$0x1] %vm329, 0.0
      %339 = vst.msk [vmem:[#allocation3 + $0xd8] sm:$0x1] %vm329, 0.0
      %340 = vst.msk [vmem:[#allocation3 + $0xf0] sm:$0x1] %vm329, 0.0
      %341 = vst.msk [vmem:[#allocation3 + $0x108] sm:$0x1] %vm329, 0.0
      %342 = vst.msk [vmem:[#allocation3 + $0x120] sm:$0x1] %vm329, 0.0
      %343 = vst.msk [vmem:[#allocation3 + $0x138] sm:$0x1] %vm329, 0.0
      %344 = vst.msk [vmem:[#allocation3 + $0x150] sm:$0x1] %vm329, 0.0
      %345 = vst.msk [vmem:[#allocation3 + $0x168] sm:$0x1] %vm329, 0.0
      %346 = vst.msk [vmem:[#allocation3 + $0x180] sm:$0x1] %vm329, 0.0
      %347 = vst.msk [vmem:[#allocation3 + $0x198] sm:$0x1] %vm329, 0.0
      %348 = vst.msk [vmem:[#allocation3 + $0x11] sm:$0x1] %vm329, 0.0
      %349 = vst.msk [vmem:[#allocation3 + $0x29] sm:$0x1] %vm329, 0.0
      %350 = vst.msk [vmem:[#allocation3 + $0x41] sm:$0x1] %vm329, 0.0
      %351 = vst.msk [vmem:[#allocation3 + $0x59] sm:$0x1] %vm329, 0.0
      %352 = vst.msk [vmem:[#allocation3 + $0x71] sm:$0x1] %vm329, 0.0
      %353 = vst.msk [vmem:[#allocation3 + $0x89] sm:$0x1] %vm329, 0.0
      %354 = vst.msk [vmem:[#allocation3 + $0xa1] sm:$0x1] %vm329, 0.0
      %355 = vst.msk [vmem:[#allocation3 + $0xb9] sm:$0x1] %vm329, 0.0
      %356 = vst.msk [vmem:[#allocation3 + $0xd1] sm:$0x1] %vm329, 0.0
      %357 = vst.msk [vmem:[#allocation3 + $0xe9] sm:$0x1] %vm329, 0.0
      %358 = vst.msk [vmem:[#allocation3 + $0x101] sm:$0x1] %vm329, 0.0
      %359 = vst.msk [vmem:[#allocation3 + $0x119] sm:$0x1] %vm329, 0.0
      %360 = vst.msk [vmem:[#allocation3 + $0x131] sm:$0x1] %vm329, 0.0
      %361 = vst.msk [vmem:[#allocation3 + $0x149] sm:$0x1] %vm329, 0.0
      %362 = vst.msk [vmem:[#allocation3 + $0x161] sm:$0x1] %vm329, 0.0
      %363 = vst.msk [vmem:[#allocation3 + $0x179] sm:$0x1] %vm329, 0.0
      %364 = vst.msk [vmem:[#allocation3 + $0x191] sm:$0x1] %vm329, 0.0
      %365 = vst.msk [vmem:[#allocation3 + $0x1a9] sm:$0x1] %vm329, 0.0
      %v366 = vld [vmem:[%s261] sm:$0xff]
      %v367 = vld [vmem:[%s261 + $0x8] sm:$0xff]
      %v368 = vld [vmem:[%s261 + $0x10] sm:$0xff]
      %v369 = vld [vmem:[%s261 + $0x18] sm:$0xff]
      %v370 = vld [vmem:[%s261 + $0x20] sm:$0xff]
      %v371 = vld [vmem:[%s261 + $0x28] sm:$0xff]
      %v372 = vld [vmem:[%s261 + $0x30] sm:$0xff]
      %v373 = vld [vmem:[%s261 + $0x38] sm:$0xff]
      %v374 = vld [vmem:[%s2] sm:$0xff]
      %v376 = vsel %vm274, %v366, 0
      %v379 = vsel %vm274, %v367, 0
      %v382 = vsel %vm274, %v368, 0
      %v385 = vsel %vm274, %v369, 0
      %v388 = vsel %vm274, %v370, 0
      %v391 = vsel %vm274, %v371, 0
      %v394 = vsel %vm274, %v372, 0
      %v397 = vsel %vm274, %v373, 0
      %399 = vmatpush.msra.mxu0 0.0
      %400 = vmatpush.msra.mxu0 0.0
      %401 = vmatpush.msra.mxu0 0.0
      %402 = vmatpush.msra.mxu0 0.0
      %403 = vmatpush.msra.mxu0 0.0
      %404 = vmatpush.msra.mxu0 0.0
      %405 = vmatpush.msra.mxu0 0.0
      %406 = vmatpush.msra.mxu0 0.0
      %407 = vmatpush.msra.mxu0 0.0
      %408 = vmatpush.msra.mxu0 0.0
      %409 = vmatpush.msra.mxu0 0.0
      %410 = vmatpush.msra.mxu0 0.0
      %411 = vmatpush.msra.mxu0 0.0
      %412 = vmatpush.msra.mxu0 0.0
      %413 = vmatpush.msra.mxu0 0.0
      %414 = vmatpush.msra.mxu0 %v374
      %415 = vmatmul.f32.gmra.mxu0 %v376
      %v416 = vpop.f32.mrf.mxu0
      %v417 = vadd.f32 0.0, %v416
      %418 = vmatmul.f32.gmra.mxu0 %v379
      %v419 = vpop.f32.mrf.mxu0
      %v420 = vadd.f32 0.0, %v419
      %421 = vmatmul.f32.gmra.mxu0 %v382
      %v422 = vpop.f32.mrf.mxu0
      %v423 = vadd.f32 0.0, %v422
      %424 = vmatmul.f32.gmra.mxu0 %v385
      %v425 = vpop.f32.mrf.mxu0
      %v426 = vadd.f32 0.0, %v425
      %427 = vmatmul.f32.gmra.mxu0 %v388
      %v428 = vpop.f32.mrf.mxu0
      %v429 = vadd.f32 0.0, %v428
      %430 = vmatmul.f32.gmra.mxu0 %v391
      %v431 = vpop.f32.mrf.mxu0
      %v432 = vadd.f32 0.0, %v431
      %433 = vmatmul.f32.gmra.mxu0 %v394
      %v434 = vpop.f32.mrf.mxu0
      %v435 = vadd.f32 0.0, %v434
      %436 = vmatmul.f32.gmra.mxu0 %v397
      %v437 = vpop.f32.mrf.mxu0
      %v438 = vadd.f32 0.0, %v437
      %439 = vdwg.mxu0
      %448 = vrot.lane.b32.xlu0 %v417, 120
      %v449 = vpop.permute.xlu0 %448
      %450 = vrot.lane.b32.xlu0 %v420, 120
      %v451 = vpop.permute.xlu0 %450
      %452 = vrot.lane.b32.xlu0 %v423, 120
      %v453 = vpop.permute.xlu0 %452
      %454 = vrot.lane.b32.xlu0 %v426, 120
      %v455 = vpop.permute.xlu0 %454
      %456 = vrot.lane.b32.xlu0 %v429, 120
      %v457 = vpop.permute.xlu0 %456
      %458 = vrot.lane.b32.xlu0 %v432, 120
      %v459 = vpop.permute.xlu0 %458
      %460 = vrot.lane.b32.xlu0 %v435, 120
      %v461 = vpop.permute.xlu0 %460
      %462 = vrot.lane.b32.xlu0 %v438, 120
      %v463 = vpop.permute.xlu0 %462
      %v464 = vlaneseq
      %v465 = vshrl.u32 %v464, 7
      %v466 = vadd.s32 %v465, 8
      %vm467 = vcmp.lt.s32.totalorder %v465, 0
      %v468 = vsub.s32 0, %v465
      %v469 = vsel %vm467, %v468, %v465
      %v470 = vshrl.u32 %v469, 1
      %v471 = vand.u32 %v469, 1
      %v472 = vsub.s32 0, %v471
      %v473 = vsel %vm467, %v472, %v471
      %vm474 = vcmp.lt.s32.totalorder %v466, 0
      %v475 = vsub.s32 0, %v466
      %v476 = vsel %vm474, %v475, %v466
      %v477 = vshrl.u32 %v476, 1
      %v478 = vand.u32 %v476, 1
      %v479 = vsub.s32 0, %v478
      %v480 = vsel %vm474, %v479, %v478
      %vm481 = vcmp.ne.s32.totalorder %v473, 0
      %vm482 = vcmp.ne.s32.totalorder %v480, 0
      %vm483 = vcmp.lt.s32.totalorder %v473, 0
      %vm484 = vcmp.lt.s32.totalorder %v480, 0
      %vm485 = vmand %vm483, %vm481
      %vm486 = vmand %vm484, %vm482
      %v487 = vadd.s32 %v473, 2
      %v488 = vadd.s32 %v480, 2
      %v489 = vsel %vm485, %v487, %v473
      %v490 = vsel %vm486, %v488, %v480
      %v491 = vrot.slane %v417, 1
      %v492 = vrot.slane %v417, 2
      %v493 = vrot.slane %v417, 3
      %v494 = vrot.slane %v417, 4
      %v495 = vrot.slane %v417, 5
      %v496 = vrot.slane %v417, 6
      %v497 = vrot.slane %v417, 7
      %v498 = vrot.slane %v449, 1
      %v499 = vrot.slane %v449, 2
      %v500 = vrot.slane %v449, 3
      %v501 = vrot.slane %v449, 4
      %v502 = vrot.slane %v449, 5
      %v503 = vrot.slane %v449, 6
      %v504 = vrot.slane %v449, 7
      %v505 = vrot.slane %v420, 1
      %v506 = vrot.slane %v420, 2
      %v507 = vrot.slane %v420, 3
      %v508 = vrot.slane %v420, 4
      %v509 = vrot.slane %v420, 5
      %v510 = vrot.slane %v420, 6
      %v511 = vrot.slane %v420, 7
      %v512 = vrot.slane %v451, 1
      %v513 = vrot.slane %v451, 2
      %v514 = vrot.slane %v451, 3
      %v515 = vrot.slane %v451, 4
      %v516 = vrot.slane %v451, 5
      %v517 = vrot.slane %v451, 6
      %v518 = vrot.slane %v451, 7
      %v519 = vrot.slane %v423, 1
      %v520 = vrot.slane %v423, 2
      %v521 = vrot.slane %v423, 3
      %v522 = vrot.slane %v423, 4
      %v523 = vrot.slane %v423, 5
      %v524 = vrot.slane %v423, 6
      %v525 = vrot.slane %v423, 7
      %v526 = vrot.slane %v453, 1
      %v527 = vrot.slane %v453, 2
      %v528 = vrot.slane %v453, 3
      %v529 = vrot.slane %v453, 4
      %v530 = vrot.slane %v453, 5
      %v531 = vrot.slane %v453, 6
      %v532 = vrot.slane %v453, 7
      %v533 = vrot.slane %v426, 1
      %v534 = vrot.slane %v426, 2
      %v535 = vrot.slane %v426, 3
      %v536 = vrot.slane %v426, 4
      %v537 = vrot.slane %v426, 5
      %v538 = vrot.slane %v426, 6
      %v539 = vrot.slane %v426, 7
      %v540 = vrot.slane %v455, 1
      %v541 = vrot.slane %v455, 2
      %v542 = vrot.slane %v455, 3
      %v543 = vrot.slane %v455, 4
      %v544 = vrot.slane %v455, 5
      %v545 = vrot.slane %v455, 6
      %v546 = vrot.slane %v455, 7
      %v547 = vrot.slane %v429, 1
      %v548 = vrot.slane %v429, 2
      %v549 = vrot.slane %v429, 3
      %v550 = vrot.slane %v429, 4
      %v551 = vrot.slane %v429, 5
      %v552 = vrot.slane %v429, 6
      %v553 = vrot.slane %v429, 7
      %v554 = vrot.slane %v457, 1
      %v555 = vrot.slane %v457, 2
      %v556 = vrot.slane %v457, 3
      %v557 = vrot.slane %v457, 4
      %v558 = vrot.slane %v457, 5
      %v559 = vrot.slane %v457, 6
      %v560 = vrot.slane %v457, 7
      %v561 = vrot.slane %v432, 1
      %v562 = vrot.slane %v432, 2
      %v563 = vrot.slane %v432, 3
      %v564 = vrot.slane %v432, 4
      %v565 = vrot.slane %v432, 5
      %v566 = vrot.slane %v432, 6
      %v567 = vrot.slane %v432, 7
      %v568 = vrot.slane %v459, 1
      %v569 = vrot.slane %v459, 2
      %v570 = vrot.slane %v459, 3
      %v571 = vrot.slane %v459, 4
      %v572 = vrot.slane %v459, 5
      %v573 = vrot.slane %v459, 6
      %v574 = vrot.slane %v459, 7
      %v575 = vrot.slane %v435, 1
      %v576 = vrot.slane %v435, 2
      %v577 = vrot.slane %v435, 3
      %v578 = vrot.slane %v435, 4
      %v579 = vrot.slane %v435, 5
      %v580 = vrot.slane %v435, 6
      %v581 = vrot.slane %v435, 7
      %v582 = vrot.slane %v461, 1
      %v583 = vrot.slane %v461, 2
      %v584 = vrot.slane %v461, 3
      %v585 = vrot.slane %v461, 4
      %v586 = vrot.slane %v461, 5
      %v587 = vrot.slane %v461, 6
      %v588 = vrot.slane %v461, 7
      %v589 = vrot.slane %v438, 1
      %v590 = vrot.slane %v438, 2
      %v591 = vrot.slane %v438, 3
      %v592 = vrot.slane %v438, 4
      %v593 = vrot.slane %v438, 5
      %v594 = vrot.slane %v438, 6
      %v595 = vrot.slane %v438, 7
      %v596 = vrot.slane %v463, 1
      %v597 = vrot.slane %v463, 2
      %v598 = vrot.slane %v463, 3
      %v599 = vrot.slane %v463, 4
      %v600 = vrot.slane %v463, 5
      %v601 = vrot.slane %v463, 6
      %v602 = vrot.slane %v463, 7
      %v603 = vperm.slane %v417, 0
      %v604 = vperm.slane %v491, 0
      %v605 = vperm.slane %v492, 0
      %v606 = vperm.slane %v493, 0
      %v607 = vperm.slane %v494, 0
      %v608 = vperm.slane %v495, 0
      %v609 = vperm.slane %v496, 0
      %v610 = vperm.slane %v497, 0
      %v611 = vperm.slane %v449, 0
      %v612 = vperm.slane %v498, 0
      %v613 = vperm.slane %v499, 0
      %v614 = vperm.slane %v500, 0
      %v615 = vperm.slane %v501, 0
      %v616 = vperm.slane %v502, 0
      %v617 = vperm.slane %v503, 0
      %v618 = vperm.slane %v504, 0
      %v619 = vperm.slane %v420, 0
      %v620 = vperm.slane %v505, 0
      %v621 = vperm.slane %v506, 0
      %v622 = vperm.slane %v507, 0
      %v623 = vperm.slane %v508, 0
      %v624 = vperm.slane %v509, 0
      %v625 = vperm.slane %v510, 0
      %v626 = vperm.slane %v511, 0
      %v627 = vperm.slane %v451, 0
      %v628 = vperm.slane %v512, 0
      %v629 = vperm.slane %v513, 0
      %v630 = vperm.slane %v514, 0
      %v631 = vperm.slane %v515, 0
      %v632 = vperm.slane %v516, 0
      %v633 = vperm.slane %v517, 0
      %v634 = vperm.slane %v518, 0
      %v635 = vperm.slane %v423, 0
      %v636 = vperm.slane %v519, 0
      %v637 = vperm.slane %v520, 0
      %v638 = vperm.slane %v521, 0
      %v639 = vperm.slane %v522, 0
      %v640 = vperm.slane %v523, 0
      %v641 = vperm.slane %v524, 0
      %v642 = vperm.slane %v525, 0
      %v643 = vperm.slane %v453, 0
      %v644 = vperm.slane %v526, 0
      %v645 = vperm.slane %v527, 0
      %v646 = vperm.slane %v528, 0
      %v647 = vperm.slane %v529, 0
      %v648 = vperm.slane %v530, 0
      %v649 = vperm.slane %v531, 0
      %v650 = vperm.slane %v532, 0
      %v651 = vperm.slane %v426, 0
      %v652 = vperm.slane %v533, 0
      %v653 = vperm.slane %v534, 0
      %v654 = vperm.slane %v535, 0
      %v655 = vperm.slane %v536, 0
      %v656 = vperm.slane %v537, 0
      %v657 = vperm.slane %v538, 0
      %v658 = vperm.slane %v539, 0
      %v659 = vperm.slane %v455, 0
      %v660 = vperm.slane %v540, 0
      %v661 = vperm.slane %v541, 0
      %v662 = vperm.slane %v542, 0
      %v663 = vperm.slane %v543, 0
      %v664 = vperm.slane %v544, 0
      %v665 = vperm.slane %v545, 0
      %v666 = vperm.slane %v546, 0
      %v667 = vperm.slane %v429, 0
      %v668 = vperm.slane %v547, 0
      %v669 = vperm.slane %v548, 0
      %v670 = vperm.slane %v549, 0
      %v671 = vperm.slane %v550, 0
      %v672 = vperm.slane %v551, 0
      %v673 = vperm.slane %v552, 0
      %v674 = vperm.slane %v553, 0
      %v675 = vperm.slane %v457, 0
      %v676 = vperm.slane %v554, 0
      %v677 = vperm.slane %v555, 0
      %v678 = vperm.slane %v556, 0
      %v679 = vperm.slane %v557, 0
      %v680 = vperm.slane %v558, 0
      %v681 = vperm.slane %v559, 0
      %v682 = vperm.slane %v560, 0
      %v683 = vperm.slane %v432, 0
      %v684 = vperm.slane %v561, 0
      %v685 = vperm.slane %v562, 0
      %v686 = vperm.slane %v563, 0
      %v687 = vperm.slane %v564, 0
      %v688 = vperm.slane %v565, 0
      %v689 = vperm.slane %v566, 0
      %v690 = vperm.slane %v567, 0
      %v691 = vperm.slane %v459, 0
      %v692 = vperm.slane %v568, 0
      %v693 = vperm.slane %v569, 0
      %v694 = vperm.slane %v570, 0
      %v695 = vperm.slane %v571, 0
      %v696 = vperm.slane %v572, 0
      %v697 = vperm.slane %v573, 0
      %v698 = vperm.slane %v574, 0
      %v699 = vperm.slane %v435, 0
      %v700 = vperm.slane %v575, 0
      %v701 = vperm.slane %v576, 0
      %v702 = vperm.slane %v577, 0
      %v703 = vperm.slane %v578, 0
      %v704 = vperm.slane %v579, 0
      %v705 = vperm.slane %v580, 0
      %v706 = vperm.slane %v581, 0
      %v707 = vperm.slane %v461, 0
      %v708 = vperm.slane %v582, 0
      %v709 = vperm.slane %v583, 0
      %v710 = vperm.slane %v584, 0
      %v711 = vperm.slane %v585, 0
      %v712 = vperm.slane %v586, 0
      %v713 = vperm.slane %v587, 0
      %v714 = vperm.slane %v588, 0
      %v715 = vperm.slane %v438, 0
      %v716 = vperm.slane %v589, 0
      %v717 = vperm.slane %v590, 0
      %v718 = vperm.slane %v591, 0
      %v719 = vperm.slane %v592, 0
      %v720 = vperm.slane %v593, 0
      %v721 = vperm.slane %v594, 0
      %v722 = vperm.slane %v595, 0
      %v723 = vperm.slane %v463, 0
      %v724 = vperm.slane %v596, 0
      %v725 = vperm.slane %v597, 0
      %v726 = vperm.slane %v598, 0
      %v727 = vperm.slane %v599, 0
      %v728 = vperm.slane %v600, 0
      %v729 = vperm.slane %v601, 0
      %v730 = vperm.slane %v602, 0
      %vm731 = vcmp.eq.s32.totalorder %v489, 0
      %vm732 = vcmp.eq.s32.totalorder %v490, 0
      %v733 = vsel %vm731, 1, 0
      %v734 = vsel %vm732, 1, 0
      %vm735 = vcmp.eq.s32.totalorder %v733, 1
      %vm736 = vcmp.eq.s32.totalorder %v734, 1
      %737 = vst [vmem:[#allocation1] ss:$4 sm:$0xff] %v603
      %s738 = scalar_lea.vmem [#allocation1], 1
      %739 = vst [vmem:[%s738] ss:$4 sm:$0xff] %v604
      %s740 = scalar_lea.vmem [#allocation1], 2
      %741 = vst [vmem:[%s740] ss:$4 sm:$0xff] %v605
      %s742 = scalar_lea.vmem [#allocation1], 3
      %743 = vst [vmem:[%s742] ss:$4 sm:$0xff] %v606
      %s744 = scalar_lea.vmem [#allocation1], 32
      %745 = vst [vmem:[%s744] ss:$4 sm:$0xff] %v607
      %s746 = scalar_lea.vmem [#allocation1], 33
      %747 = vst [vmem:[%s746] ss:$4 sm:$0xff] %v608
      %s748 = scalar_lea.vmem [#allocation1], 34
      %749 = vst [vmem:[%s748] ss:$4 sm:$0xff] %v609
      %s750 = scalar_lea.vmem [#allocation1], 35
      %751 = vst [vmem:[%s750] ss:$4 sm:$0xff] %v610
      %v752 = vld.sshfl [vmem:[#allocation1] sm:$0xff pattern:$0x73625140]
      %v753 = vld.sshfl [vmem:[#allocation1 + $0x20] sm:$0xff pattern:$0x73625140]
      %754 = vst [vmem:[#allocation1] ss:$4 sm:$0xff] %v611
      %755 = vst [vmem:[%s738] ss:$4 sm:$0xff] %v612
      %756 = vst [vmem:[%s740] ss:$4 sm:$0xff] %v613
      %757 = vst [vmem:[%s742] ss:$4 sm:$0xff] %v614
      %758 = vst [vmem:[%s744] ss:$4 sm:$0xff] %v615
      %759 = vst [vmem:[%s746] ss:$4 sm:$0xff] %v616
      %760 = vst [vmem:[%s748] ss:$4 sm:$0xff] %v617
      %761 = vst [vmem:[%s750] ss:$4 sm:$0xff] %v618
      %v762 = vld.sshfl [vmem:[#allocation1] sm:$0xff pattern:$0x73625140]
      %v763 = vld.sshfl [vmem:[#allocation1 + $0x20] sm:$0xff pattern:$0x73625140]
      %764 = vst [vmem:[#allocation1] ss:$4 sm:$0xff] %v619
      %765 = vst [vmem:[%s738] ss:$4 sm:$0xff] %v620
      %766 = vst [vmem:[%s740] ss:$4 sm:$0xff] %v621
      %767 = vst [vmem:[%s742] ss:$4 sm:$0xff] %v622
      %768 = vst [vmem:[%s744] ss:$4 sm:$0xff] %v623
      %769 = vst [vmem:[%s746] ss:$4 sm:$0xff] %v624
      %770 = vst [vmem:[%s748] ss:$4 sm:$0xff] %v625
      %771 = vst [vmem:[%s750] ss:$4 sm:$0xff] %v626
      %v772 = vld.sshfl [vmem:[#allocation1] sm:$0xff pattern:$0x73625140]
      %v773 = vld.sshfl [vmem:[#allocation1 + $0x20] sm:$0xff pattern:$0x73625140]
      %774 = vst [vmem:[#allocation1] ss:$4 sm:$0xff] %v627
      %775 = vst [vmem:[%s738] ss:$4 sm:$0xff] %v628
      %776 = vst [vmem:[%s740] ss:$4 sm:$0xff] %v629
      %777 = vst [vmem:[%s742] ss:$4 sm:$0xff] %v630
      %778 = vst [vmem:[%s744] ss:$4 sm:$0xff] %v631
      %779 = vst [vmem:[%s746] ss:$4 sm:$0xff] %v632
      %780 = vst [vmem:[%s748] ss:$4 sm:$0xff] %v633
      %781 = vst [vmem:[%s750] ss:$4 sm:$0xff] %v634
      %v782 = vld.sshfl [vmem:[#allocation1] sm:$0xff pattern:$0x73625140]
      %v783 = vld.sshfl [vmem:[#allocation1 + $0x20] sm:$0xff pattern:$0x73625140]
      %784 = vst [vmem:[#allocation1] ss:$4 sm:$0xff] %v635
      %785 = vst [vmem:[%s738] ss:$4 sm:$0xff] %v636
      %786 = vst [vmem:[%s740] ss:$4 sm:$0xff] %v637
      %787 = vst [vmem:[%s742] ss:$4 sm:$0xff] %v638
      %788 = vst [vmem:[%s744] ss:$4 sm:$0xff] %v639
      %789 = vst [vmem:[%s746] ss:$4 sm:$0xff] %v640
      %790 = vst [vmem:[%s748] ss:$4 sm:$0xff] %v641
      %791 = vst [vmem:[%s750] ss:$4 sm:$0xff] %v642
      %v792 = vld.sshfl [vmem:[#allocation1] sm:$0xff pattern:$0x73625140]
      %v793 = vld.sshfl [vmem:[#allocation1 + $0x20] sm:$0xff pattern:$0x73625140]
      %794 = vst [vmem:[#allocation1] ss:$4 sm:$0xff] %v643
      %795 = vst [vmem:[%s738] ss:$4 sm:$0xff] %v644
      %796 = vst [vmem:[%s740] ss:$4 sm:$0xff] %v645
      %797 = vst [vmem:[%s742] ss:$4 sm:$0xff] %v646
      %798 = vst [vmem:[%s744] ss:$4 sm:$0xff] %v647
      %799 = vst [vmem:[%s746] ss:$4 sm:$0xff] %v648
      %800 = vst [vmem:[%s748] ss:$4 sm:$0xff] %v649
      %801 = vst [vmem:[%s750] ss:$4 sm:$0xff] %v650
      %v802 = vld.sshfl [vmem:[#allocation1] sm:$0xff pattern:$0x73625140]
      %v803 = vld.sshfl [vmem:[#allocation1 + $0x20] sm:$0xff pattern:$0x73625140]
      %804 = vst [vmem:[#allocation1] ss:$4 sm:$0xff] %v651
      %805 = vst [vmem:[%s738] ss:$4 sm:$0xff] %v652
      %806 = vst [vmem:[%s740] ss:$4 sm:$0xff] %v653
      %807 = vst [vmem:[%s742] ss:$4 sm:$0xff] %v654
      %808 = vst [vmem:[%s744] ss:$4 sm:$0xff] %v655
      %809 = vst [vmem:[%s746] ss:$4 sm:$0xff] %v656
      %810 = vst [vmem:[%s748] ss:$4 sm:$0xff] %v657
      %811 = vst [vmem:[%s750] ss:$4 sm:$0xff] %v658
      %v812 = vld.sshfl [vmem:[#allocation1] sm:$0xff pattern:$0x73625140]
      %v813 = vld.sshfl [vmem:[#allocation1 + $0x20] sm:$0xff pattern:$0x73625140]
      %814 = vst [vmem:[#allocation1] ss:$4 sm:$0xff] %v659
      %815 = vst [vmem:[%s738] ss:$4 sm:$0xff] %v660
      %816 = vst [vmem:[%s740] ss:$4 sm:$0xff] %v661
      %817 = vst [vmem:[%s742] ss:$4 sm:$0xff] %v662
      %818 = vst [vmem:[%s744] ss:$4 sm:$0xff] %v663
      %819 = vst [vmem:[%s746] ss:$4 sm:$0xff] %v664
      %820 = vst [vmem:[%s748] ss:$4 sm:$0xff] %v665
      %821 = vst [vmem:[%s750] ss:$4 sm:$0xff] %v666
      %v822 = vld.sshfl [vmem:[#allocation1] sm:$0xff pattern:$0x73625140]
      %v823 = vld.sshfl [vmem:[#allocation1 + $0x20] sm:$0xff pattern:$0x73625140]
      %824 = vst [vmem:[#allocation1] ss:$4 sm:$0xff] %v667
      %825 = vst [vmem:[%s738] ss:$4 sm:$0xff] %v668
      %826 = vst [vmem:[%s740] ss:$4 sm:$0xff] %v669
      %827 = vst [vmem:[%s742] ss:$4 sm:$0xff] %v670
      %828 = vst [vmem:[%s744] ss:$4 sm:$0xff] %v671
      %829 = vst [vmem:[%s746] ss:$4 sm:$0xff] %v672
      %830 = vst [vmem:[%s748] ss:$4 sm:$0xff] %v673
      %831 = vst [vmem:[%s750] ss:$4 sm:$0xff] %v674
      %v832 = vld.sshfl [vmem:[#allocation1] sm:$0xff pattern:$0x73625140]
      %v833 = vld.sshfl [vmem:[#allocation1 + $0x20] sm:$0xff pattern:$0x73625140]
      %834 = vst [vmem:[#allocation1] ss:$4 sm:$0xff] %v675
      %835 = vst [vmem:[%s738] ss:$4 sm:$0xff] %v676
      %836 = vst [vmem:[%s740] ss:$4 sm:$0xff] %v677
      %837 = vst [vmem:[%s742] ss:$4 sm:$0xff] %v678
      %838 = vst [vmem:[%s744] ss:$4 sm:$0xff] %v679
      %839 = vst [vmem:[%s746] ss:$4 sm:$0xff] %v680
      %840 = vst [vmem:[%s748] ss:$4 sm:$0xff] %v681
      %841 = vst [vmem:[%s750] ss:$4 sm:$0xff] %v682
      %v842 = vld.sshfl [vmem:[#allocation1] sm:$0xff pattern:$0x73625140]
      %v843 = vld.sshfl [vmem:[#allocation1 + $0x20] sm:$0xff pattern:$0x73625140]
      %844 = vst [vmem:[#allocation1] ss:$4 sm:$0xff] %v683
      %845 = vst [vmem:[%s738] ss:$4 sm:$0xff] %v684
      %846 = vst [vmem:[%s740] ss:$4 sm:$0xff] %v685
      %847 = vst [vmem:[%s742] ss:$4 sm:$0xff] %v686
      %848 = vst [vmem:[%s744] ss:$4 sm:$0xff] %v687
      %849 = vst [vmem:[%s746] ss:$4 sm:$0xff] %v688
      %850 = vst [vmem:[%s748] ss:$4 sm:$0xff] %v689
      %851 = vst [vmem:[%s750] ss:$4 sm:$0xff] %v690
      %v852 = vld.sshfl [vmem:[#allocation1] sm:$0xff pattern:$0x73625140]
      %v853 = vld.sshfl [vmem:[#allocation1 + $0x20] sm:$0xff pattern:$0x73625140]
      %854 = vst [vmem:[#allocation1] ss:$4 sm:$0xff] %v691
      %855 = vst [vmem:[%s738] ss:$4 sm:$0xff] %v692
      %856 = vst [vmem:[%s740] ss:$4 sm:$0xff] %v693
      %857 = vst [vmem:[%s742] ss:$4 sm:$0xff] %v694
      %858 = vst [vmem:[%s744] ss:$4 sm:$0xff] %v695
      %859 = vst [vmem:[%s746] ss:$4 sm:$0xff] %v696
      %860 = vst [vmem:[%s748] ss:$4 sm:$0xff] %v697
      %861 = vst [vmem:[%s750] ss:$4 sm:$0xff] %v698
      %v862 = vld.sshfl [vmem:[#allocation1] sm:$0xff pattern:$0x73625140]
      %v863 = vld.sshfl [vmem:[#allocation1 + $0x20] sm:$0xff pattern:$0x73625140]
      %864 = vst [vmem:[#allocation1] ss:$4 sm:$0xff] %v699
      %865 = vst [vmem:[%s738] ss:$4 sm:$0xff] %v700
      %866 = vst [vmem:[%s740] ss:$4 sm:$0xff] %v701
      %867 = vst [vmem:[%s742] ss:$4 sm:$0xff] %v702
      %868 = vst [vmem:[%s744] ss:$4 sm:$0xff] %v703
      %869 = vst [vmem:[%s746] ss:$4 sm:$0xff] %v704
      %870 = vst [vmem:[%s748] ss:$4 sm:$0xff] %v705
      %871 = vst [vmem:[%s750] ss:$4 sm:$0xff] %v706
      %v872 = vld.sshfl [vmem:[#allocation1] sm:$0xff pattern:$0x73625140]
      %v873 = vld.sshfl [vmem:[#allocation1 + $0x20] sm:$0xff pattern:$0x73625140]
      %874 = vst [vmem:[#allocation1] ss:$4 sm:$0xff] %v707
      %875 = vst [vmem:[%s738] ss:$4 sm:$0xff] %v708
      %876 = vst [vmem:[%s740] ss:$4 sm:$0xff] %v709
      %877 = vst [vmem:[%s742] ss:$4 sm:$0xff] %v710
      %878 = vst [vmem:[%s744] ss:$4 sm:$0xff] %v711
      %879 = vst [vmem:[%s746] ss:$4 sm:$0xff] %v712
      %880 = vst [vmem:[%s748] ss:$4 sm:$0xff] %v713
      %881 = vst [vmem:[%s750] ss:$4 sm:$0xff] %v714
      %v882 = vld.sshfl [vmem:[#allocation1] sm:$0xff pattern:$0x73625140]
      %v883 = vld.sshfl [vmem:[#allocation1 + $0x20] sm:$0xff pattern:$0x73625140]
      %884 = vst [vmem:[#allocation1] ss:$4 sm:$0xff] %v715
      %885 = vst [vmem:[%s738] ss:$4 sm:$0xff] %v716
      %886 = vst [vmem:[%s740] ss:$4 sm:$0xff] %v717
      %887 = vst [vmem:[%s742] ss:$4 sm:$0xff] %v718
      %888 = vst [vmem:[%s744] ss:$4 sm:$0xff] %v719
      %889 = vst [vmem:[%s746] ss:$4 sm:$0xff] %v720
      %890 = vst [vmem:[%s748] ss:$4 sm:$0xff] %v721
      %891 = vst [vmem:[%s750] ss:$4 sm:$0xff] %v722
      %v892 = vld.sshfl [vmem:[#allocation1] sm:$0xff pattern:$0x73625140]
      %v893 = vld.sshfl [vmem:[#allocation1 + $0x20] sm:$0xff pattern:$0x73625140]
      %894 = vst [vmem:[#allocation1] ss:$4 sm:$0xff] %v723
      %895 = vst [vmem:[%s738] ss:$4 sm:$0xff] %v724
      %896 = vst [vmem:[%s740] ss:$4 sm:$0xff] %v725
      %897 = vst [vmem:[%s742] ss:$4 sm:$0xff] %v726
      %898 = vst [vmem:[%s744] ss:$4 sm:$0xff] %v727
      %899 = vst [vmem:[%s746] ss:$4 sm:$0xff] %v728
      %900 = vst [vmem:[%s748] ss:$4 sm:$0xff] %v729
      %901 = vst [vmem:[%s750] ss:$4 sm:$0xff] %v730
      %v902 = vld.sshfl [vmem:[#allocation1] sm:$0xff pattern:$0x73625140]
      %v903 = vld.sshfl [vmem:[#allocation1 + $0x20] sm:$0xff pattern:$0x73625140]
      %v936 = vsel %vm735, %v752, 0.0
      %v937 = vsel %vm736, %v753, 0.0
      %v938 = vsel %vm735, %v762, 0.0
      %v939 = vsel %vm736, %v763, 0.0
      %v940 = vsel %vm735, %v772, 0.0
      %v941 = vsel %vm736, %v773, 0.0
      %v942 = vsel %vm735, %v782, 0.0
      %v943 = vsel %vm736, %v783, 0.0
      %v944 = vsel %vm735, %v792, 0.0
      %v945 = vsel %vm736, %v793, 0.0
      %v946 = vsel %vm735, %v802, 0.0
      %v947 = vsel %vm736, %v803, 0.0
      %v948 = vsel %vm735, %v812, 0.0
      %v949 = vsel %vm736, %v813, 0.0
      %v950 = vsel %vm735, %v822, 0.0
      %v951 = vsel %vm736, %v823, 0.0
      %v952 = vsel %vm735, %v832, 0.0
      %v953 = vsel %vm736, %v833, 0.0
      %v954 = vsel %vm735, %v842, 0.0
      %v955 = vsel %vm736, %v843, 0.0
      %v956 = vsel %vm735, %v852, 0.0
      %v957 = vsel %vm736, %v853, 0.0
      %v958 = vsel %vm735, %v862, 0.0
      %v959 = vsel %vm736, %v863, 0.0
      %v960 = vsel %vm735, %v872, 0.0
      %v961 = vsel %vm736, %v873, 0.0
      %v962 = vsel %vm735, %v882, 0.0
      %v963 = vsel %vm736, %v883, 0.0
      %v964 = vsel %vm735, %v892, 0.0
      %v965 = vsel %vm736, %v893, 0.0
      %v966 = vsel %vm735, %v902, 0.0
      %v967 = vsel %vm736, %v903, 0.0
      %vm968 = vcmp.eq.s32.totalorder %v489, 1
      %vm969 = vcmp.eq.s32.totalorder %v490, 1
      %v970 = vsel %vm968, 1, 0
      %v971 = vsel %vm969, 1, 0
      %vm972 = vcmp.eq.s32.totalorder %v970, 1
      %vm973 = vcmp.eq.s32.totalorder %v971, 1
      %974 = vst [vmem:[#allocation1] ss:$4 sm:$0xff] %v603
      %s975 = scalar_lea.vmem [#allocation1], 1
      %976 = vst [vmem:[%s975] ss:$4 sm:$0xff] %v604
      %s977 = scalar_lea.vmem [#allocation1], 2
      %978 = vst [vmem:[%s977] ss:$4 sm:$0xff] %v605
      %s979 = scalar_lea.vmem [#allocation1], 3
      %980 = vst [vmem:[%s979] ss:$4 sm:$0xff] %v606
      %s981 = scalar_lea.vmem [#allocation1], 32
      %982 = vst [vmem:[%s981] ss:$4 sm:$0xff] %v607
      %s983 = scalar_lea.vmem [#allocation1], 33
      %984 = vst [vmem:[%s983] ss:$4 sm:$0xff] %v608
      %s985 = scalar_lea.vmem [#allocation1], 34
      %986 = vst [vmem:[%s985] ss:$4 sm:$0xff] %v609
      %s987 = scalar_lea.vmem [#allocation1], 35
      %988 = vst [vmem:[%s987] ss:$4 sm:$0xff] %v610
      %v989 = vld.sshfl [vmem:[#allocation1] sm:$0xff pattern:$0x73625140]
      %v990 = vld.sshfl [vmem:[#allocation1 + $0x20] sm:$0xff pattern:$0x73625140]
      %991 = vst [vmem:[#allocation1] ss:$4 sm:$0xff] %v611
      %992 = vst [vmem:[%s975] ss:$4 sm:$0xff] %v612
      %993 = vst [vmem:[%s977] ss:$4 sm:$0xff] %v613
      %994 = vst [vmem:[%s979] ss:$4 sm:$0xff] %v614
      %995 = vst [vmem:[%s981] ss:$4 sm:$0xff] %v615
      %996 = vst [vmem:[%s983] ss:$4 sm:$0xff] %v616
      %997 = vst [vmem:[%s985] ss:$4 sm:$0xff] %v617
      %998 = vst [vmem:[%s987] ss:$4 sm:$0xff] %v618
      %v999 = vld.sshfl [vmem:[#allocation1] sm:$0xff pattern:$0x73625140]
      %v1000 = vld.sshfl [vmem:[#allocation1 + $0x20] sm:$0xff pattern:$0x73625140]
      %1001 = vst [vmem:[#allocation1] ss:$4 sm:$0xff] %v619
      %1002 = vst [vmem:[%s975] ss:$4 sm:$0xff] %v620
      %1003 = vst [vmem:[%s977] ss:$4 sm:$0xff] %v621
      %1004 = vst [vmem:[%s979] ss:$4 sm:$0xff] %v622
      %1005 = vst [vmem:[%s981] ss:$4 sm:$0xff] %v623
      %1006 = vst [vmem:[%s983] ss:$4 sm:$0xff] %v624
      %1007 = vst [vmem:[%s985] ss:$4 sm:$0xff] %v625
      %1008 = vst [vmem:[%s987] ss:$4 sm:$0xff] %v626
      %v1009 = vld.sshfl [vmem:[#allocation1] sm:$0xff pattern:$0x73625140]
      %v1010 = vld.sshfl [vmem:[#allocation1 + $0x20] sm:$0xff pattern:$0x73625140]
      %1011 = vst [vmem:[#allocation1] ss:$4 sm:$0xff] %v627
      %1012 = vst [vmem:[%s975] ss:$4 sm:$0xff] %v628
      %1013 = vst [vmem:[%s977] ss:$4 sm:$0xff] %v629
      %1014 = vst [vmem:[%s979] ss:$4 sm:$0xff] %v630
      %1015 = vst [vmem:[%s981] ss:$4 sm:$0xff] %v631
      %1016 = vst [vmem:[%s983] ss:$4 sm:$0xff] %v632
      %1017 = vst [vmem:[%s985] ss:$4 sm:$0xff] %v633
      %1018 = vst [vmem:[%s987] ss:$4 sm:$0xff] %v634
      %v1019 = vld.sshfl [vmem:[#allocation1] sm:$0xff pattern:$0x73625140]
      %v1020 = vld.sshfl [vmem:[#allocation1 + $0x20] sm:$0xff pattern:$0x73625140]
      %1021 = vst [vmem:[#allocation1] ss:$4 sm:$0xff] %v635
      %1022 = vst [vmem:[%s975] ss:$4 sm:$0xff] %v636
      %1023 = vst [vmem:[%s977] ss:$4 sm:$0xff] %v637
      %1024 = vst [vmem:[%s979] ss:$4 sm:$0xff] %v638
      %1025 = vst [vmem:[%s981] ss:$4 sm:$0xff] %v639
      %1026 = vst [vmem:[%s983] ss:$4 sm:$0xff] %v640
      %1027 = vst [vmem:[%s985] ss:$4 sm:$0xff] %v641
      %1028 = vst [vmem:[%s987] ss:$4 sm:$0xff] %v642
      %v1029 = vld.sshfl [vmem:[#allocation1] sm:$0xff pattern:$0x73625140]
      %v1030 = vld.sshfl [vmem:[#allocation1 + $0x20] sm:$0xff pattern:$0x73625140]
      %1031 = vst [vmem:[#allocation1] ss:$4 sm:$0xff] %v643
      %1032 = vst [vmem:[%s975] ss:$4 sm:$0xff] %v644
      %1033 = vst [vmem:[%s977] ss:$4 sm:$0xff] %v645
      %1034 = vst [vmem:[%s979] ss:$4 sm:$0xff] %v646
      %1035 = vst [vmem:[%s981] ss:$4 sm:$0xff] %v647
      %1036 = vst [vmem:[%s983] ss:$4 sm:$0xff] %v648
      %1037 = vst [vmem:[%s985] ss:$4 sm:$0xff] %v649
      %1038 = vst [vmem:[%s987] ss:$4 sm:$0xff] %v650
      %v1039 = vld.sshfl [vmem:[#allocation1] sm:$0xff pattern:$0x73625140]
      %v1040 = vld.sshfl [vmem:[#allocation1 + $0x20] sm:$0xff pattern:$0x73625140]
      %1041 = vst [vmem:[#allocation1] ss:$4 sm:$0xff] %v651
      %1042 = vst [vmem:[%s975] ss:$4 sm:$0xff] %v652
      %1043 = vst [vmem:[%s977] ss:$4 sm:$0xff] %v653
      %1044 = vst [vmem:[%s979] ss:$4 sm:$0xff] %v654
      %1045 = vst [vmem:[%s981] ss:$4 sm:$0xff] %v655
      %1046 = vst [vmem:[%s983] ss:$4 sm:$0xff] %v656
      %1047 = vst [vmem:[%s985] ss:$4 sm:$0xff] %v657
      %1048 = vst [vmem:[%s987] ss:$4 sm:$0xff] %v658
      %v1049 = vld.sshfl [vmem:[#allocation1] sm:$0xff pattern:$0x73625140]
      %v1050 = vld.sshfl [vmem:[#allocation1 + $0x20] sm:$0xff pattern:$0x73625140]
      %1051 = vst [vmem:[#allocation1] ss:$4 sm:$0xff] %v659
      %1052 = vst [vmem:[%s975] ss:$4 sm:$0xff] %v660
      %1053 = vst [vmem:[%s977] ss:$4 sm:$0xff] %v661
      %1054 = vst [vmem:[%s979] ss:$4 sm:$0xff] %v662
      %1055 = vst [vmem:[%s981] ss:$4 sm:$0xff] %v663
      %1056 = vst [vmem:[%s983] ss:$4 sm:$0xff] %v664
      %1057 = vst [vmem:[%s985] ss:$4 sm:$0xff] %v665
      %1058 = vst [vmem:[%s987] ss:$4 sm:$0xff] %v666
      %v1059 = vld.sshfl [vmem:[#allocation1] sm:$0xff pattern:$0x73625140]
      %v1060 = vld.sshfl [vmem:[#allocation1 + $0x20] sm:$0xff pattern:$0x73625140]
      %1061 = vst [vmem:[#allocation1] ss:$4 sm:$0xff] %v667
      %1062 = vst [vmem:[%s975] ss:$4 sm:$0xff] %v668
      %1063 = vst [vmem:[%s977] ss:$4 sm:$0xff] %v669
      %1064 = vst [vmem:[%s979] ss:$4 sm:$0xff] %v670
      %1065 = vst [vmem:[%s981] ss:$4 sm:$0xff] %v671
      %1066 = vst [vmem:[%s983] ss:$4 sm:$0xff] %v672
      %1067 = vst [vmem:[%s985] ss:$4 sm:$0xff] %v673
      %1068 = vst [vmem:[%s987] ss:$4 sm:$0xff] %v674
      %v1069 = vld.sshfl [vmem:[#allocation1] sm:$0xff pattern:$0x73625140]
      %v1070 = vld.sshfl [vmem:[#allocation1 + $0x20] sm:$0xff pattern:$0x73625140]
      %1071 = vst [vmem:[#allocation1] ss:$4 sm:$0xff] %v675
      %1072 = vst [vmem:[%s975] ss:$4 sm:$0xff] %v676
      %1073 = vst [vmem:[%s977] ss:$4 sm:$0xff] %v677
      %1074 = vst [vmem:[%s979] ss:$4 sm:$0xff] %v678
      %1075 = vst [vmem:[%s981] ss:$4 sm:$0xff] %v679
      %1076 = vst [vmem:[%s983] ss:$4 sm:$0xff] %v680
      %1077 = vst [vmem:[%s985] ss:$4 sm:$0xff] %v681
      %1078 = vst [vmem:[%s987] ss:$4 sm:$0xff] %v682
      %v1079 = vld.sshfl [vmem:[#allocation1] sm:$0xff pattern:$0x73625140]
      %v1080 = vld.sshfl [vmem:[#allocation1 + $0x20] sm:$0xff pattern:$0x73625140]
      %1081 = vst [vmem:[#allocation1] ss:$4 sm:$0xff] %v683
      %1082 = vst [vmem:[%s975] ss:$4 sm:$0xff] %v684
      %1083 = vst [vmem:[%s977] ss:$4 sm:$0xff] %v685
      %1084 = vst [vmem:[%s979] ss:$4 sm:$0xff] %v686
      %1085 = vst [vmem:[%s981] ss:$4 sm:$0xff] %v687
      %1086 = vst [vmem:[%s983] ss:$4 sm:$0xff] %v688
      %1087 = vst [vmem:[%s985] ss:$4 sm:$0xff] %v689
      %1088 = vst [vmem:[%s987] ss:$4 sm:$0xff] %v690
      %v1089 = vld.sshfl [vmem:[#allocation1] sm:$0xff pattern:$0x73625140]
      %v1090 = vld.sshfl [vmem:[#allocation1 + $0x20] sm:$0xff pattern:$0x73625140]
      %1091 = vst [vmem:[#allocation1] ss:$4 sm:$0xff] %v691
      %1092 = vst [vmem:[%s975] ss:$4 sm:$0xff] %v692
      %1093 = vst [vmem:[%s977] ss:$4 sm:$0xff] %v693
      %1094 = vst [vmem:[%s979] ss:$4 sm:$0xff] %v694
      %1095 = vst [vmem:[%s981] ss:$4 sm:$0xff] %v695
      %1096 = vst [vmem:[%s983] ss:$4 sm:$0xff] %v696
      %1097 = vst [vmem:[%s985] ss:$4 sm:$0xff] %v697
      %1098 = vst [vmem:[%s987] ss:$4 sm:$0xff] %v698
      %v1099 = vld.sshfl [vmem:[#allocation1] sm:$0xff pattern:$0x73625140]
      %v1100 = vld.sshfl [vmem:[#allocation1 + $0x20] sm:$0xff pattern:$0x73625140]
      %1101 = vst [vmem:[#allocation1] ss:$4 sm:$0xff] %v699
      %1102 = vst [vmem:[%s975] ss:$4 sm:$0xff] %v700
      %1103 = vst [vmem:[%s977] ss:$4 sm:$0xff] %v701
      %1104 = vst [vmem:[%s979] ss:$4 sm:$0xff] %v702
      %1105 = vst [vmem:[%s981] ss:$4 sm:$0xff] %v703
      %1106 = vst [vmem:[%s983] ss:$4 sm:$0xff] %v704
      %1107 = vst [vmem:[%s985] ss:$4 sm:$0xff] %v705
      %1108 = vst [vmem:[%s987] ss:$4 sm:$0xff] %v706
      %v1109 = vld.sshfl [vmem:[#allocation1] sm:$0xff pattern:$0x73625140]
      %v1110 = vld.sshfl [vmem:[#allocation1 + $0x20] sm:$0xff pattern:$0x73625140]
      %1111 = vst [vmem:[#allocation1] ss:$4 sm:$0xff] %v707
      %1112 = vst [vmem:[%s975] ss:$4 sm:$0xff] %v708
      %1113 = vst [vmem:[%s977] ss:$4 sm:$0xff] %v709
      %1114 = vst [vmem:[%s979] ss:$4 sm:$0xff] %v710
      %1115 = vst [vmem:[%s981] ss:$4 sm:$0xff] %v711
      %1116 = vst [vmem:[%s983] ss:$4 sm:$0xff] %v712
      %1117 = vst [vmem:[%s985] ss:$4 sm:$0xff] %v713
      %1118 = vst [vmem:[%s987] ss:$4 sm:$0xff] %v714
      %v1119 = vld.sshfl [vmem:[#allocation1] sm:$0xff pattern:$0x73625140]
      %v1120 = vld.sshfl [vmem:[#allocation1 + $0x20] sm:$0xff pattern:$0x73625140]
      %1121 = vst [vmem:[#allocation1] ss:$4 sm:$0xff] %v715
      %1122 = vst [vmem:[%s975] ss:$4 sm:$0xff] %v716
      %1123 = vst [vmem:[%s977] ss:$4 sm:$0xff] %v717
      %1124 = vst [vmem:[%s979] ss:$4 sm:$0xff] %v718
      %1125 = vst [vmem:[%s981] ss:$4 sm:$0xff] %v719
      %1126 = vst [vmem:[%s983] ss:$4 sm:$0xff] %v720
      %1127 = vst [vmem:[%s985] ss:$4 sm:$0xff] %v721
      %1128 = vst [vmem:[%s987] ss:$4 sm:$0xff] %v722
      %v1129 = vld.sshfl [vmem:[#allocation1] sm:$0xff pattern:$0x73625140]
      %v1130 = vld.sshfl [vmem:[#allocation1 + $0x20] sm:$0xff pattern:$0x73625140]
      %1131 = vst [vmem:[#allocation1] ss:$4 sm:$0xff] %v723
      %1132 = vst [vmem:[%s975] ss:$4 sm:$0xff] %v724
      %1133 = vst [vmem:[%s977] ss:$4 sm:$0xff] %v725
      %1134 = vst [vmem:[%s979] ss:$4 sm:$0xff] %v726
      %1135 = vst [vmem:[%s981] ss:$4 sm:$0xff] %v727
      %1136 = vst [vmem:[%s983] ss:$4 sm:$0xff] %v728
      %1137 = vst [vmem:[%s985] ss:$4 sm:$0xff] %v729
      %1138 = vst [vmem:[%s987] ss:$4 sm:$0xff] %v730
      %v1139 = vld.sshfl [vmem:[#allocation1] sm:$0xff pattern:$0x73625140]
      %v1140 = vld.sshfl [vmem:[#allocation1 + $0x20] sm:$0xff pattern:$0x73625140]
      %1141 = vrot.lane.b32.xlu0 %v989, 124
      %v1142 = vpop.permute.xlu0 %1141
      %1143 = vrot.lane.b32.xlu0 %v990, 124
      %v1144 = vpop.permute.xlu0 %1143
      %1145 = vrot.lane.b32.xlu0 %v999, 124
      %v1146 = vpop.permute.xlu0 %1145
      %1147 = vrot.lane.b32.xlu0 %v1000, 124
      %v1148 = vpop.permute.xlu0 %1147
      %1149 = vrot.lane.b32.xlu0 %v1009, 124
      %v1150 = vpop.permute.xlu0 %1149
      %1151 = vrot.lane.b32.xlu0 %v1010, 124
      %v1152 = vpop.permute.xlu0 %1151
      %1153 = vrot.lane.b32.xlu0 %v1019, 124
      %v1154 = vpop.permute.xlu0 %1153
      %1155 = vrot.lane.b32.xlu0 %v1020, 124
      %v1156 = vpop.permute.xlu0 %1155
      %1157 = vrot.lane.b32.xlu0 %v1029, 124
      %v1158 = vpop.permute.xlu0 %1157
      %1159 = vrot.lane.b32.xlu0 %v1030, 124
      %v1160 = vpop.permute.xlu0 %1159
      %1161 = vrot.lane.b32.xlu0 %v1039, 124
      %v1162 = vpop.permute.xlu0 %1161
      %1163 = vrot.lane.b32.xlu0 %v1040, 124
      %v1164 = vpop.permute.xlu0 %1163
      %1165 = vrot.lane.b32.xlu0 %v1049, 124
      %v1166 = vpop.permute.xlu0 %1165
      %1167 = vrot.lane.b32.xlu0 %v1050, 124
      %v1168 = vpop.permute.xlu0 %1167
      %1169 = vrot.lane.b32.xlu0 %v1059, 124
      %v1170 = vpop.permute.xlu0 %1169
      %1171 = vrot.lane.b32.xlu0 %v1060, 124
      %v1172 = vpop.permute.xlu0 %1171
      %1173 = vrot.lane.b32.xlu0 %v1069, 124
      %v1174 = vpop.permute.xlu0 %1173
      %1175 = vrot.lane.b32.xlu0 %v1070, 124
      %v1176 = vpop.permute.xlu0 %1175
      %1177 = vrot.lane.b32.xlu0 %v1079, 124
      %v1178 = vpop.permute.xlu0 %1177
      %1179 = vrot.lane.b32.xlu0 %v1080, 124
      %v1180 = vpop.permute.xlu0 %1179
      %1181 = vrot.lane.b32.xlu0 %v1089, 124
      %v1182 = vpop.permute.xlu0 %1181
      %1183 = vrot.lane.b32.xlu0 %v1090, 124
      %v1184 = vpop.permute.xlu0 %1183
      %1185 = vrot.lane.b32.xlu0 %v1099, 124
      %v1186 = vpop.permute.xlu0 %1185
      %1187 = vrot.lane.b32.xlu0 %v1100, 124
      %v1188 = vpop.permute.xlu0 %1187
      %1189 = vrot.lane.b32.xlu0 %v1109, 124
      %v1190 = vpop.permute.xlu0 %1189
      %1191 = vrot.lane.b32.xlu0 %v1110, 124
      %v1192 = vpop.permute.xlu0 %1191
      %1193 = vrot.lane.b32.xlu0 %v1119, 124
      %v1194 = vpop.permute.xlu0 %1193
      %1195 = vrot.lane.b32.xlu0 %v1120, 124
      %v1196 = vpop.permute.xlu0 %1195
      %1197 = vrot.lane.b32.xlu0 %v1129, 124
      %v1198 = vpop.permute.xlu0 %1197
      %1199 = vrot.lane.b32.xlu0 %v1130, 124
      %v1200 = vpop.permute.xlu0 %1199
      %1201 = vrot.lane.b32.xlu0 %v1139, 124
      %v1202 = vpop.permute.xlu0 %1201
      %1203 = vrot.lane.b32.xlu0 %v1140, 124
      %v1204 = vpop.permute.xlu0 %1203
      %v1237 = vsel %vm972, %v1142, %v936
      %v1238 = vsel %vm973, %v1144, %v937
      %v1239 = vsel %vm972, %v1146, %v938
      %v1240 = vsel %vm973, %v1148, %v939
      %v1241 = vsel %vm972, %v1150, %v940
      %v1242 = vsel %vm973, %v1152, %v941
      %v1243 = vsel %vm972, %v1154, %v942
      %v1244 = vsel %vm973, %v1156, %v943
      %v1245 = vsel %vm972, %v1158, %v944
      %v1246 = vsel %vm973, %v1160, %v945
      %v1247 = vsel %vm972, %v1162, %v946
      %v1248 = vsel %vm973, %v1164, %v947
      %v1249 = vsel %vm972, %v1166, %v948
      %v1250 = vsel %vm973, %v1168, %v949
      %v1251 = vsel %vm972, %v1170, %v950
      %v1252 = vsel %vm973, %v1172, %v951
      %v1253 = vsel %vm972, %v1174, %v952
      %v1254 = vsel %vm973, %v1176, %v953
      %v1255 = vsel %vm972, %v1178, %v954
      %v1256 = vsel %vm973, %v1180, %v955
      %v1257 = vsel %vm972, %v1182, %v956
      %v1258 = vsel %vm973, %v1184, %v957
      %v1259 = vsel %vm972, %v1186, %v958
      %v1260 = vsel %vm973, %v1188, %v959
      %v1261 = vsel %vm972, %v1190, %v960
      %v1262 = vsel %vm973, %v1192, %v961
      %v1263 = vsel %vm972, %v1194, %v962
      %v1264 = vsel %vm973, %v1196, %v963
      %v1265 = vsel %vm972, %v1198, %v964
      %v1266 = vsel %vm973, %v1200, %v965
      %v1267 = vsel %vm972, %v1202, %v966
      %v1268 = vsel %vm973, %v1204, %v967
      %v1269 = vld [vmem:[%s266] sm:$0xff]
      %v1270 = vld [vmem:[%s266 + $0x8] sm:$0xff]
      %v1271 = vld [vmem:[%s266 + $0x10] sm:$0xff]
      %v1272 = vld [vmem:[%s266 + $0x18] sm:$0xff]
      %v1273 = vld [vmem:[%s266 + $0x20] sm:$0xff]
      %v1274 = vld [vmem:[%s266 + $0x28] sm:$0xff]
      %v1275 = vld [vmem:[%s266 + $0x30] sm:$0xff]
      %v1276 = vld [vmem:[%s266 + $0x38] sm:$0xff]
      %v1277 = vld [vmem:[%s266 + $0x40] sm:$0xff]
      %v1278 = vld [vmem:[%s266 + $0x48] sm:$0xff]
      %v1279 = vld [vmem:[%s266 + $0x50] sm:$0xff]
      %v1280 = vld [vmem:[%s266 + $0x58] sm:$0xff]
      %v1281 = vld [vmem:[%s266 + $0x60] sm:$0xff]
      %v1282 = vld [vmem:[%s266 + $0x68] sm:$0xff]
      %v1283 = vld [vmem:[%s266 + $0x70] sm:$0xff]
      %v1284 = vld [vmem:[%s266 + $0x78] sm:$0xff]
      %v1285 = vld [vmem:[%s266 + $0x80] sm:$0xff]
      %v1286 = vld [vmem:[%s266 + $0x88] sm:$0xff]
      %v1287 = vld [vmem:[%s266 + $0x90] sm:$0xff]
      %v1288 = vld [vmem:[%s266 + $0x98] sm:$0xff]
      %v1289 = vld [vmem:[%s266 + $0xa0] sm:$0xff]
      %v1290 = vld [vmem:[%s266 + $0xa8] sm:$0xff]
      %v1291 = vld [vmem:[%s266 + $0xb0] sm:$0xff]
      %v1292 = vld [vmem:[%s266 + $0xb8] sm:$0xff]
      %v1293 = vld [vmem:[%s266 + $0xc0] sm:$0xff]
      %v1294 = vld [vmem:[%s266 + $0xc8] sm:$0xff]
      %v1295 = vld [vmem:[%s266 + $0xd0] sm:$0xff]
      %v1296 = vld [vmem:[%s266 + $0xd8] sm:$0xff]
      %v1297 = vld [vmem:[%s266 + $0xe0] sm:$0xff]
      %v1298 = vld [vmem:[%s266 + $0xe8] sm:$0xff]
      %v1299 = vld [vmem:[%s266 + $0xf0] sm:$0xff]
      %v1300 = vld [vmem:[%s266 + $0xf8] sm:$0xff]
      %1333 = vrot.lane.b32.xlu0 %v1269, 4
      %v1334 = vpop.permute.xlu0 %1333
      %1335 = vrot.lane.b32.xlu0 %v1270, 4
      %v1336 = vpop.permute.xlu0 %1335
      %1337 = vrot.lane.b32.xlu0 %v1271, 4
      %v1338 = vpop.permute.xlu0 %1337
      %1339 = vrot.lane.b32.xlu0 %v1272, 4
      %v1340 = vpop.permute.xlu0 %1339
      %1341 = vrot.lane.b32.xlu0 %v1273, 4
      %v1342 = vpop.permute.xlu0 %1341
      %1343 = vrot.lane.b32.xlu0 %v1274, 4
      %v1344 = vpop.permute.xlu0 %1343
      %1345 = vrot.lane.b32.xlu0 %v1275, 4
      %v1346 = vpop.permute.xlu0 %1345
      %1347 = vrot.lane.b32.xlu0 %v1276, 4
      %v1348 = vpop.permute.xlu0 %1347
      %1349 = vrot.lane.b32.xlu0 %v1277, 4
      %v1350 = vpop.permute.xlu0 %1349
      %1351 = vrot.lane.b32.xlu0 %v1278, 4
      %v1352 = vpop.permute.xlu0 %1351
      %1353 = vrot.lane.b32.xlu0 %v1279, 4
      %v1354 = vpop.permute.xlu0 %1353
      %1355 = vrot.lane.b32.xlu0 %v1280, 4
      %v1356 = vpop.permute.xlu0 %1355
      %1357 = vrot.lane.b32.xlu0 %v1281, 4
      %v1358 = vpop.permute.xlu0 %1357
      %1359 = vrot.lane.b32.xlu0 %v1282, 4
      %v1360 = vpop.permute.xlu0 %1359
      %1361 = vrot.lane.b32.xlu0 %v1283, 4
      %v1362 = vpop.permute.xlu0 %1361
      %1363 = vrot.lane.b32.xlu0 %v1284, 4
      %v1364 = vpop.permute.xlu0 %1363
      %1365 = vrot.lane.b32.xlu0 %v1285, 4
      %v1366 = vpop.permute.xlu0 %1365
      %1367 = vrot.lane.b32.xlu0 %v1286, 4
      %v1368 = vpop.permute.xlu0 %1367
      %1369 = vrot.lane.b32.xlu0 %v1287, 4
      %v1370 = vpop.permute.xlu0 %1369
      %1371 = vrot.lane.b32.xlu0 %v1288, 4
      %v1372 = vpop.permute.xlu0 %1371
      %1373 = vrot.lane.b32.xlu0 %v1289, 4
      %v1374 = vpop.permute.xlu0 %1373
      %1375 = vrot.lane.b32.xlu0 %v1290, 4
      %v1376 = vpop.permute.xlu0 %1375
      %1377 = vrot.lane.b32.xlu0 %v1291, 4
      %v1378 = vpop.permute.xlu0 %1377
      %1379 = vrot.lane.b32.xlu0 %v1292, 4
      %v1380 = vpop.permute.xlu0 %1379
      %1381 = vrot.lane.b32.xlu0 %v1293, 4
      %v1382 = vpop.permute.xlu0 %1381
      %1383 = vrot.lane.b32.xlu0 %v1294, 4
      %v1384 = vpop.permute.xlu0 %1383
      %1385 = vrot.lane.b32.xlu0 %v1295, 4
      %v1386 = vpop.permute.xlu0 %1385
      %1387 = vrot.lane.b32.xlu0 %v1296, 4
      %v1388 = vpop.permute.xlu0 %1387
      %1389 = vrot.lane.b32.xlu0 %v1297, 4
      %v1390 = vpop.permute.xlu0 %1389
      %1391 = vrot.lane.b32.xlu0 %v1298, 4
      %v1392 = vpop.permute.xlu0 %1391
      %1393 = vrot.lane.b32.xlu0 %v1299, 4
      %v1394 = vpop.permute.xlu0 %1393
      %1395 = vrot.lane.b32.xlu0 %v1300, 4
      %v1396 = vpop.permute.xlu0 %1395
      %v1429 = vsel %vm320, %v1237, %v1334
      %v1430 = vsel %vm320, %v1238, %v1336
      %v1431 = vsel %vm320, %v1239, %v1338
      %v1432 = vsel %vm320, %v1240, %v1340
      %v1433 = vsel %vm320, %v1241, %v1342
      %v1434 = vsel %vm320, %v1242, %v1344
      %v1435 = vsel %vm320, %v1243, %v1346
      %v1436 = vsel %vm320, %v1244, %v1348
      %v1437 = vsel %vm320, %v1245, %v1350
      %v1438 = vsel %vm320, %v1246, %v1352
      %v1439 = vsel %vm320, %v1247, %v1354
      %v1440 = vsel %vm320, %v1248, %v1356
      %v1441 = vsel %vm320, %v1249, %v1358
      %v1442 = vsel %vm320, %v1250, %v1360
      %v1443 = vsel %vm320, %v1251, %v1362
      %v1444 = vsel %vm320, %v1252, %v1364
      %v1445 = vsel %vm320, %v1253, %v1366
      %v1446 = vsel %vm320, %v1254, %v1368
      %v1447 = vsel %vm320, %v1255, %v1370
      %v1448 = vsel %vm320, %v1256, %v1372
      %v1449 = vsel %vm320, %v1257, %v1374
      %v1450 = vsel %vm320, %v1258, %v1376
      %v1451 = vsel %vm320, %v1259, %v1378
      %v1452 = vsel %vm320, %v1260, %v1380
      %v1453 = vsel %vm320, %v1261, %v1382
      %v1454 = vsel %vm320, %v1262, %v1384
      %v1455 = vsel %vm320, %v1263, %v1386
      %v1456 = vsel %vm320, %v1264, %v1388
      %v1457 = vsel %vm320, %v1265, %v1390
      %v1458 = vsel %vm320, %v1266, %v1392
      %v1459 = vsel %vm320, %v1267, %v1394
      %v1460 = vsel %vm320, %v1268, %v1396
      %s1461 = scalar_lea.vmem [#allocation2], 24
      %1462 = vst.msk [vmem:[%s1461 + $0x1] sm:$0xff] %vm274, %v1429
      %1463 = vst.msk [vmem:[%s1461 + $0x9] sm:$0xff] %vm274, %v1430
      %1464 = vst.msk [vmem:[%s1461 + $0x19] sm:$0xff] %vm274, %v1431
      %1465 = vst.msk [vmem:[%s1461 + $0x21] sm:$0xff] %vm274, %v1432
      %1466 = vst.msk [vmem:[%s1461 + $0x31] sm:$0xff] %vm274, %v1433
      %1467 = vst.msk [vmem:[%s1461 + $0x39] sm:$0xff] %vm274, %v1434
      %1468 = vst.msk [vmem:[%s1461 + $0x49] sm:$0xff] %vm274, %v1435
      %1469 = vst.msk [vmem:[%s1461 + $0x51] sm:$0xff] %vm274, %v1436
      %1470 = vst.msk [vmem:[%s1461 + $0x61] sm:$0xff] %vm274, %v1437
      %1471 = vst.msk [vmem:[%s1461 + $0x69] sm:$0xff] %vm274, %v1438
      %1472 = vst.msk [vmem:[%s1461 + $0x79] sm:$0xff] %vm274, %v1439
      %1473 = vst.msk [vmem:[%s1461 + $0x81] sm:$0xff] %vm274, %v1440
      %1474 = vst.msk [vmem:[%s1461 + $0x91] sm:$0xff] %vm274, %v1441
      %1475 = vst.msk [vmem:[%s1461 + $0x99] sm:$0xff] %vm274, %v1442
      %1476 = vst.msk [vmem:[%s1461 + $0xa9] sm:$0xff] %vm274, %v1443
      %1477 = vst.msk [vmem:[%s1461 + $0xb1] sm:$0xff] %vm274, %v1444
      %1478 = vst.msk [vmem:[%s1461 + $0xc1] sm:$0xff] %vm274, %v1445
      %1479 = vst.msk [vmem:[%s1461 + $0xc9] sm:$0xff] %vm274, %v1446
      %1480 = vst.msk [vmem:[%s1461 + $0xd9] sm:$0xff] %vm274, %v1447
      %1481 = vst.msk [vmem:[%s1461 + $0xe1] sm:$0xff] %vm274, %v1448
      %1482 = vst.msk [vmem:[%s1461 + $0xf1] sm:$0xff] %vm274, %v1449
      %1483 = vst.msk [vmem:[%s1461 + $0xf9] sm:$0xff] %vm274, %v1450
      %1484 = vst.msk [vmem:[%s1461 + $0x109] sm:$0xff] %vm274, %v1451
      %1485 = vst.msk [vmem:[%s1461 + $0x111] sm:$0xff] %vm274, %v1452
      %1486 = vst.msk [vmem:[%s1461 + $0x121] sm:$0xff] %vm274, %v1453
      %1487 = vst.msk [vmem:[%s1461 + $0x129] sm:$0xff] %vm274, %v1454
      %1488 = vst.msk [vmem:[%s1461 + $0x139] sm:$0xff] %vm274, %v1455
      %1489 = vst.msk [vmem:[%s1461 + $0x141] sm:$0xff] %vm274, %v1456
      %1490 = vst.msk [vmem:[%s1461 + $0x151] sm:$0xff] %vm274, %v1457
      %1491 = vst.msk [vmem:[%s1461 + $0x159] sm:$0xff] %vm274, %v1458
      %1492 = vst.msk [vmem:[%s1461 + $0x169] sm:$0xff] %vm274, %v1459
      %1493 = vst.msk [vmem:[%s1461 + $0x171] sm:$0xff] %vm274, %v1460
      %v1494 = vld [vmem:[#allocation2] sm:$0xff]
      %v1495 = vld [vmem:[#allocation2 + $0x8] sm:$0xff]
      %v1496 = vld [vmem:[#allocation2 + $0x18] sm:$0xff]
      %v1497 = vld [vmem:[#allocation2 + $0x20] sm:$0xff]
      %v1498 = vld [vmem:[#allocation2 + $0x30] sm:$0xff]
      %v1499 = vld [vmem:[#allocation2 + $0x38] sm:$0xff]
      %v1500 = vld [vmem:[#allocation2 + $0x48] sm:$0xff]
      %v1501 = vld [vmem:[#allocation2 + $0x50] sm:$0xff]
      %v1502 = vld [vmem:[#allocation2 + $0x60] sm:$0xff]
      %v1503 = vld [vmem:[#allocation2 + $0x68] sm:$0xff]
      %v1504 = vld [vmem:[#allocation2 + $0x78] sm:$0xff]
      %v1505 = vld [vmem:[#allocation2 + $0x80] sm:$0xff]
      %v1506 = vld [vmem:[#allocation2 + $0x90] sm:$0xff]
      %v1507 = vld [vmem:[#allocation2 + $0x98] sm:$0xff]
      %v1508 = vld [vmem:[#allocation2 + $0xa8] sm:$0xff]
      %v1509 = vld [vmem:[#allocation2 + $0xb0] sm:$0xff]
      %v1510 = vld [vmem:[#allocation2 + $0xc0] sm:$0xff]
      %v1511 = vld [vmem:[#allocation2 + $0xc8] sm:$0xff]
      %v1512 = vld [vmem:[#allocation2 + $0xd8] sm:$0xff]
      %v1513 = vld [vmem:[#allocation2 + $0xe0] sm:$0xff]
      %v1514 = vld [vmem:[#allocation2 + $0xf0] sm:$0xff]
      %v1515 = vld [vmem:[#allocation2 + $0xf8] sm:$0xff]
      %v1516 = vld [vmem:[#allocation2 + $0x108] sm:$0xff]
      %v1517 = vld [vmem:[#allocation2 + $0x110] sm:$0xff]
      %v1518 = vld [vmem:[#allocation2 + $0x120] sm:$0xff]
      %v1519 = vld [vmem:[#allocation2 + $0x128] sm:$0xff]
      %v1520 = vld [vmem:[#allocation2 + $0x138] sm:$0xff]
      %v1521 = vld [vmem:[#allocation2 + $0x140] sm:$0xff]
      %v1522 = vld [vmem:[#allocation2 + $0x150] sm:$0xff]
      %v1523 = vld [vmem:[#allocation2 + $0x158] sm:$0xff]
      %v1524 = vld [vmem:[#allocation2 + $0x168] sm:$0xff]
      %v1525 = vld [vmem:[#allocation2 + $0x170] sm:$0xff]
      %v1526 = vld [vmem:[#allocation2 + $0x1] sm:$0xff]
      %v1527 = vld [vmem:[#allocation2 + $0x9] sm:$0xff]
      %v1528 = vld [vmem:[#allocation2 + $0x19] sm:$0xff]
      %v1529 = vld [vmem:[#allocation2 + $0x21] sm:$0xff]
      %v1530 = vld [vmem:[#allocation2 + $0x31] sm:$0xff]
      %v1531 = vld [vmem:[#allocation2 + $0x39] sm:$0xff]
      %v1532 = vld [vmem:[#allocation2 + $0x49] sm:$0xff]
      %v1533 = vld [vmem:[#allocation2 + $0x51] sm:$0xff]
      %v1534 = vld [vmem:[#allocation2 + $0x61] sm:$0xff]
      %v1535 = vld [vmem:[#allocation2 + $0x69] sm:$0xff]
      %v1536 = vld [vmem:[#allocation2 + $0x79] sm:$0xff]
      %v1537 = vld [vmem:[#allocation2 + $0x81] sm:$0xff]
      %v1538 = vld [vmem:[#allocation2 + $0x91] sm:$0xff]
      %v1539 = vld [vmem:[#allocation2 + $0x99] sm:$0xff]
      %v1540 = vld [vmem:[#allocation2 + $0xa9] sm:$0xff]
      %v1541 = vld [vmem:[#allocation2 + $0xb1] sm:$0xff]
      %v1542 = vld [vmem:[#allocation2 + $0xc1] sm:$0xff]
      %v1543 = vld [vmem:[#allocation2 + $0xc9] sm:$0xff]
      %v1544 = vld [vmem:[#allocation2 + $0xd9] sm:$0xff]
      %v1545 = vld [vmem:[#allocation2 + $0xe1] sm:$0xff]
      %v1546 = vld [vmem:[#allocation2 + $0xf1] sm:$0xff]
      %v1547 = vld [vmem:[#allocation2 + $0xf9] sm:$0xff]
      %v1548 = vld [vmem:[#allocation2 + $0x109] sm:$0xff]
      %v1549 = vld [vmem:[#allocation2 + $0x111] sm:$0xff]
      %v1550 = vld [vmem:[#allocation2 + $0x121] sm:$0xff]
      %v1551 = vld [vmem:[#allocation2 + $0x129] sm:$0xff]
      %v1552 = vld [vmem:[#allocation2 + $0x139] sm:$0xff]
      %v1553 = vld [vmem:[#allocation2 + $0x141] sm:$0xff]
      %v1554 = vld [vmem:[#allocation2 + $0x151] sm:$0xff]
      %v1555 = vld [vmem:[#allocation2 + $0x159] sm:$0xff]
      %v1556 = vld [vmem:[#allocation2 + $0x169] sm:$0xff]
      %v1557 = vld [vmem:[#allocation2 + $0x171] sm:$0xff]
      %v1558 = vld [vmem:[#allocation2 + $0x2] sm:$0xff]
      %v1559 = vld [vmem:[#allocation2 + $0xa] sm:$0xff]
      %v1560 = vld [vmem:[#allocation2 + $0x1a] sm:$0xff]
      %v1561 = vld [vmem:[#allocation2 + $0x22] sm:$0xff]
      %v1562 = vld [vmem:[#allocation2 + $0x32] sm:$0xff]
      %v1563 = vld [vmem:[#allocation2 + $0x3a] sm:$0xff]
      %v1564 = vld [vmem:[#allocation2 + $0x4a] sm:$0xff]
      %v1565 = vld [vmem:[#allocation2 + $0x52] sm:$0xff]
      %v1566 = vld [vmem:[#allocation2 + $0x62] sm:$0xff]
      %v1567 = vld [vmem:[#allocation2 + $0x6a] sm:$0xff]
      %v1568 = vld [vmem:[#allocation2 + $0x7a] sm:$0xff]
      %v1569 = vld [vmem:[#allocation2 + $0x82] sm:$0xff]
      %v1570 = vld [vmem:[#allocation2 + $0x92] sm:$0xff]
      %v1571 = vld [vmem:[#allocation2 + $0x9a] sm:$0xff]
      %v1572 = vld [vmem:[#allocation2 + $0xaa] sm:$0xff]
      %v1573 = vld [vmem:[#allocation2 + $0xb2] sm:$0xff]
      %v1574 = vld [vmem:[#allocation2 + $0xc2] sm:$0xff]
      %v1575 = vld [vmem:[#allocation2 + $0xca] sm:$0xff]
      %v1576 = vld [vmem:[#allocation2 + $0xda] sm:$0xff]
      %v1577 = vld [vmem:[#allocation2 + $0xe2] sm:$0xff]
      %v1578 = vld [vmem:[#allocation2 + $0xf2] sm:$0xff]
      %v1579 = vld [vmem:[#allocation2 + $0xfa] sm:$0xff]
      %v1580 = vld [vmem:[#allocation2 + $0x10a] sm:$0xff]
      %v1581 = vld [vmem:[#allocation2 + $0x112] sm:$0xff]
      %v1582 = vld [vmem:[#allocation2 + $0x122] sm:$0xff]
      %v1583 = vld [vmem:[#allocation2 + $0x12a] sm:$0xff]
      %v1584 = vld [vmem:[#allocation2 + $0x13a] sm:$0xff]
      %v1585 = vld [vmem:[#allocation2 + $0x142] sm:$0xff]
      %v1586 = vld [vmem:[#allocation2 + $0x152] sm:$0xff]
      %v1587 = vld [vmem:[#allocation2 + $0x15a] sm:$0xff]
      %v1588 = vld [vmem:[#allocation2 + $0x16a] sm:$0xff]
      %v1589 = vld [vmem:[#allocation2 + $0x172] sm:$0xff]
      %v1590 = vld [vmem:[%s1461] sm:$0xff]
      %v1591 = vld [vmem:[%s1461 + $0x8] sm:$0xff]
      %v1592 = vld [vmem:[%s1461 + $0x18] sm:$0xff]
      %v1593 = vld [vmem:[%s1461 + $0x20] sm:$0xff]
      %v1594 = vld [vmem:[%s1461 + $0x30] sm:$0xff]
      %v1595 = vld [vmem:[%s1461 + $0x38] sm:$0xff]
      %v1596 = vld [vmem:[%s1461 + $0x48] sm:$0xff]
      %v1597 = vld [vmem:[%s1461 + $0x50] sm:$0xff]
      %v1598 = vld [vmem:[%s1461 + $0x60] sm:$0xff]
      %v1599 = vld [vmem:[%s1461 + $0x68] sm:$0xff]
      %v1600 = vld [vmem:[%s1461 + $0x78] sm:$0xff]
      %v1601 = vld [vmem:[%s1461 + $0x80] sm:$0xff]
      %v1602 = vld [vmem:[%s1461 + $0x90] sm:$0xff]
      %v1603 = vld [vmem:[%s1461 + $0x98] sm:$0xff]
      %v1604 = vld [vmem:[%s1461 + $0xa8] sm:$0xff]
      %v1605 = vld [vmem:[%s1461 + $0xb0] sm:$0xff]
      %v1606 = vld [vmem:[%s1461 + $0xc0] sm:$0xff]
      %v1607 = vld [vmem:[%s1461 + $0xc8] sm:$0xff]
      %v1608 = vld [vmem:[%s1461 + $0xd8] sm:$0xff]
      %v1609 = vld [vmem:[%s1461 + $0xe0] sm:$0xff]
      %v1610 = vld [vmem:[%s1461 + $0xf0] sm:$0xff]
      %v1611 = vld [vmem:[%s1461 + $0xf8] sm:$0xff]
      %v1612 = vld [vmem:[%s1461 + $0x108] sm:$0xff]
      %v1613 = vld [vmem:[%s1461 + $0x110] sm:$0xff]
      %v1614 = vld [vmem:[%s1461 + $0x120] sm:$0xff]
      %v1615 = vld [vmem:[%s1461 + $0x128] sm:$0xff]
      %v1616 = vld [vmem:[%s1461 + $0x138] sm:$0xff]
      %v1617 = vld [vmem:[%s1461 + $0x140] sm:$0xff]
      %v1618 = vld [vmem:[%s1461 + $0x150] sm:$0xff]
      %v1619 = vld [vmem:[%s1461 + $0x158] sm:$0xff]
      %v1620 = vld [vmem:[%s1461 + $0x168] sm:$0xff]
      %v1621 = vld [vmem:[%s1461 + $0x170] sm:$0xff]
      %v1622 = vld [vmem:[%s1461 + $0x1] sm:$0xff]
      %v1623 = vld [vmem:[%s1461 + $0x9] sm:$0xff]
      %v1624 = vld [vmem:[%s1461 + $0x19] sm:$0xff]
      %v1625 = vld [vmem:[%s1461 + $0x21] sm:$0xff]
      %v1626 = vld [vmem:[%s1461 + $0x31] sm:$0xff]
      %v1627 = vld [vmem:[%s1461 + $0x39] sm:$0xff]
      %v1628 = vld [vmem:[%s1461 + $0x49] sm:$0xff]
      %v1629 = vld [vmem:[%s1461 + $0x51] sm:$0xff]
      %v1630 = vld [vmem:[%s1461 + $0x61] sm:$0xff]
      %v1631 = vld [vmem:[%s1461 + $0x69] sm:$0xff]
      %v1632 = vld [vmem:[%s1461 + $0x79] sm:$0xff]
      %v1633 = vld [vmem:[%s1461 + $0x81] sm:$0xff]
      %v1634 = vld [vmem:[%s1461 + $0x91] sm:$0xff]
      %v1635 = vld [vmem:[%s1461 + $0x99] sm:$0xff]
      %v1636 = vld [vmem:[%s1461 + $0xa9] sm:$0xff]
      %v1637 = vld [vmem:[%s1461 + $0xb1] sm:$0xff]
      %v1638 = vld [vmem:[%s1461 + $0xc1] sm:$0xff]
      %v1639 = vld [vmem:[%s1461 + $0xc9] sm:$0xff]
      %v1640 = vld [vmem:[%s1461 + $0xd9] sm:$0xff]
      %v1641 = vld [vmem:[%s1461 + $0xe1] sm:$0xff]
      %v1642 = vld [vmem:[%s1461 + $0xf1] sm:$0xff]
      %v1643 = vld [vmem:[%s1461 + $0xf9] sm:$0xff]
      %v1644 = vld [vmem:[%s1461 + $0x109] sm:$0xff]
      %v1645 = vld [vmem:[%s1461 + $0x111] sm:$0xff]
      %v1646 = vld [vmem:[%s1461 + $0x121] sm:$0xff]
      %v1647 = vld [vmem:[%s1461 + $0x129] sm:$0xff]
      %v1648 = vld [vmem:[%s1461 + $0x139] sm:$0xff]
      %v1649 = vld [vmem:[%s1461 + $0x141] sm:$0xff]
      %v1650 = vld [vmem:[%s1461 + $0x151] sm:$0xff]
      %v1651 = vld [vmem:[%s1461 + $0x159] sm:$0xff]
      %v1652 = vld [vmem:[%s1461 + $0x169] sm:$0xff]
      %v1653 = vld [vmem:[%s1461 + $0x171] sm:$0xff]
      %v1654 = vld [vmem:[%s1461 + $0x2] sm:$0xff]
      %v1655 = vld [vmem:[%s1461 + $0xa] sm:$0xff]
      %v1656 = vld [vmem:[%s1461 + $0x1a] sm:$0xff]
      %v1657 = vld [vmem:[%s1461 + $0x22] sm:$0xff]
      %v1658 = vld [vmem:[%s1461 + $0x32] sm:$0xff]
      %v1659 = vld [vmem:[%s1461 + $0x3a] sm:$0xff]
      %v1660 = vld [vmem:[%s1461 + $0x4a] sm:$0xff]
      %v1661 = vld [vmem:[%s1461 + $0x52] sm:$0xff]
      %v1662 = vld [vmem:[%s1461 + $0x62] sm:$0xff]
      %v1663 = vld [vmem:[%s1461 + $0x6a] sm:$0xff]
      %v1664 = vld [vmem:[%s1461 + $0x7a] sm:$0xff]
      %v1665 = vld [vmem:[%s1461 + $0x82] sm:$0xff]
      %v1666 = vld [vmem:[%s1461 + $0x92] sm:$0xff]
      %v1667 = vld [vmem:[%s1461 + $0x9a] sm:$0xff]
      %v1668 = vld [vmem:[%s1461 + $0xaa] sm:$0xff]
      %v1669 = vld [vmem:[%s1461 + $0xb2] sm:$0xff]
      %v1670 = vld [vmem:[%s1461 + $0xc2] sm:$0xff]
      %v1671 = vld [vmem:[%s1461 + $0xca] sm:$0xff]
      %v1672 = vld [vmem:[%s1461 + $0xda] sm:$0xff]
      %v1673 = vld [vmem:[%s1461 + $0xe2] sm:$0xff]
      %v1674 = vld [vmem:[%s1461 + $0xf2] sm:$0xff]
      %v1675 = vld [vmem:[%s1461 + $0xfa] sm:$0xff]
      %v1676 = vld [vmem:[%s1461 + $0x10a] sm:$0xff]
      %v1677 = vld [vmem:[%s1461 + $0x112] sm:$0xff]
      %v1678 = vld [vmem:[%s1461 + $0x122] sm:$0xff]
      %v1679 = vld [vmem:[%s1461 + $0x12a] sm:$0xff]
      %v1680 = vld [vmem:[%s1461 + $0x13a] sm:$0xff]
      %v1681 = vld [vmem:[%s1461 + $0x142] sm:$0xff]
      %v1682 = vld [vmem:[%s1461 + $0x152] sm:$0xff]
      %v1683 = vld [vmem:[%s1461 + $0x15a] sm:$0xff]
      %v1684 = vld [vmem:[%s1461 + $0x16a] sm:$0xff]
      %v1685 = vld [vmem:[%s1461 + $0x172] sm:$0xff]
      %s1686 = scalar_lea.vmem [#allocation2], 48
      %v1687 = vld [vmem:[%s1686] sm:$0xff]
      %v1688 = vld [vmem:[%s1686 + $0x8] sm:$0xff]
      %v1689 = vld [vmem:[%s1686 + $0x18] sm:$0xff]
      %v1690 = vld [vmem:[%s1686 + $0x20] sm:$0xff]
      %v1691 = vld [vmem:[%s1686 + $0x30] sm:$0xff]
      %v1692 = vld [vmem:[%s1686 + $0x38] sm:$0xff]
      %v1693 = vld [vmem:[%s1686 + $0x48] sm:$0xff]
      %v1694 = vld [vmem:[%s1686 + $0x50] sm:$0xff]
      %v1695 = vld [vmem:[%s1686 + $0x60] sm:$0xff]
      %v1696 = vld [vmem:[%s1686 + $0x68] sm:$0xff]
      %v1697 = vld [vmem:[%s1686 + $0x78] sm:$0xff]
      %v1698 = vld [vmem:[%s1686 + $0x80] sm:$0xff]
      %v1699 = vld [vmem:[%s1686 + $0x90] sm:$0xff]
      %v1700 = vld [vmem:[%s1686 + $0x98] sm:$0xff]
      %v1701 = vld [vmem:[%s1686 + $0xa8] sm:$0xff]
      %v1702 = vld [vmem:[%s1686 + $0xb0] sm:$0xff]
      %v1703 = vld [vmem:[%s1686 + $0xc0] sm:$0xff]
      %v1704 = vld [vmem:[%s1686 + $0xc8] sm:$0xff]
      %v1705 = vld [vmem:[%s1686 + $0xd8] sm:$0xff]
      %v1706 = vld [vmem:[%s1686 + $0xe0] sm:$0xff]
      %v1707 = vld [vmem:[%s1686 + $0xf0] sm:$0xff]
      %v1708 = vld [vmem:[%s1686 + $0xf8] sm:$0xff]
      %v1709 = vld [vmem:[%s1686 + $0x108] sm:$0xff]
      %v1710 = vld [vmem:[%s1686 + $0x110] sm:$0xff]
      %v1711 = vld [vmem:[%s1686 + $0x120] sm:$0xff]
      %v1712 = vld [vmem:[%s1686 + $0x128] sm:$0xff]
      %v1713 = vld [vmem:[%s1686 + $0x138] sm:$0xff]
      %v1714 = vld [vmem:[%s1686 + $0x140] sm:$0xff]
      %v1715 = vld [vmem:[%s1686 + $0x150] sm:$0xff]
      %v1716 = vld [vmem:[%s1686 + $0x158] sm:$0xff]
      %v1717 = vld [vmem:[%s1686 + $0x168] sm:$0xff]
      %v1718 = vld [vmem:[%s1686 + $0x170] sm:$0xff]
      %v1719 = vld [vmem:[%s1686 + $0x1] sm:$0xff]
      %v1720 = vld [vmem:[%s1686 + $0x9] sm:$0xff]
      %v1721 = vld [vmem:[%s1686 + $0x19] sm:$0xff]
      %v1722 = vld [vmem:[%s1686 + $0x21] sm:$0xff]
      %v1723 = vld [vmem:[%s1686 + $0x31] sm:$0xff]
      %v1724 = vld [vmem:[%s1686 + $0x39] sm:$0xff]
      %v1725 = vld [vmem:[%s1686 + $0x49] sm:$0xff]
      %v1726 = vld [vmem:[%s1686 + $0x51] sm:$0xff]
      %v1727 = vld [vmem:[%s1686 + $0x61] sm:$0xff]
      %v1728 = vld [vmem:[%s1686 + $0x69] sm:$0xff]
      %v1729 = vld [vmem:[%s1686 + $0x79] sm:$0xff]
      %v1730 = vld [vmem:[%s1686 + $0x81] sm:$0xff]
      %v1731 = vld [vmem:[%s1686 + $0x91] sm:$0xff]
      %v1732 = vld [vmem:[%s1686 + $0x99] sm:$0xff]
      %v1733 = vld [vmem:[%s1686 + $0xa9] sm:$0xff]
      %v1734 = vld [vmem:[%s1686 + $0xb1] sm:$0xff]
      %v1735 = vld [vmem:[%s1686 + $0xc1] sm:$0xff]
      %v1736 = vld [vmem:[%s1686 + $0xc9] sm:$0xff]
      %v1737 = vld [vmem:[%s1686 + $0xd9] sm:$0xff]
      %v1738 = vld [vmem:[%s1686 + $0xe1] sm:$0xff]
      %v1739 = vld [vmem:[%s1686 + $0xf1] sm:$0xff]
      %v1740 = vld [vmem:[%s1686 + $0xf9] sm:$0xff]
      %v1741 = vld [vmem:[%s1686 + $0x109] sm:$0xff]
      %v1742 = vld [vmem:[%s1686 + $0x111] sm:$0xff]
      %v1743 = vld [vmem:[%s1686 + $0x121] sm:$0xff]
      %v1744 = vld [vmem:[%s1686 + $0x129] sm:$0xff]
      %v1745 = vld [vmem:[%s1686 + $0x139] sm:$0xff]
      %v1746 = vld [vmem:[%s1686 + $0x141] sm:$0xff]
      %v1747 = vld [vmem:[%s1686 + $0x151] sm:$0xff]
      %v1748 = vld [vmem:[%s1686 + $0x159] sm:$0xff]
      %v1749 = vld [vmem:[%s1686 + $0x169] sm:$0xff]
      %v1750 = vld [vmem:[%s1686 + $0x171] sm:$0xff]
      %v1751 = vld [vmem:[%s1686 + $0x2] sm:$0xff]
      %v1752 = vld [vmem:[%s1686 + $0xa] sm:$0xff]
      %v1753 = vld [vmem:[%s1686 + $0x1a] sm:$0xff]
      %v1754 = vld [vmem:[%s1686 + $0x22] sm:$0xff]
      %v1755 = vld [vmem:[%s1686 + $0x32] sm:$0xff]
      %v1756 = vld [vmem:[%s1686 + $0x3a] sm:$0xff]
      %v1757 = vld [vmem:[%s1686 + $0x4a] sm:$0xff]
      %v1758 = vld [vmem:[%s1686 + $0x52] sm:$0xff]
      %v1759 = vld [vmem:[%s1686 + $0x62] sm:$0xff]
      %v1760 = vld [vmem:[%s1686 + $0x6a] sm:$0xff]
      %v1761 = vld [vmem:[%s1686 + $0x7a] sm:$0xff]
      %v1762 = vld [vmem:[%s1686 + $0x82] sm:$0xff]
      %v1763 = vld [vmem:[%s1686 + $0x92] sm:$0xff]
      %v1764 = vld [vmem:[%s1686 + $0x9a] sm:$0xff]
      %v1765 = vld [vmem:[%s1686 + $0xaa] sm:$0xff]
      %v1766 = vld [vmem:[%s1686 + $0xb2] sm:$0xff]
      %v1767 = vld [vmem:[%s1686 + $0xc2] sm:$0xff]
      %v1768 = vld [vmem:[%s1686 + $0xca] sm:$0xff]
      %v1769 = vld [vmem:[%s1686 + $0xda] sm:$0xff]
      %v1770 = vld [vmem:[%s1686 + $0xe2] sm:$0xff]
      %v1771 = vld [vmem:[%s1686 + $0xf2] sm:$0xff]
      %v1772 = vld [vmem:[%s1686 + $0xfa] sm:$0xff]
      %v1773 = vld [vmem:[%s1686 + $0x10a] sm:$0xff]
      %v1774 = vld [vmem:[%s1686 + $0x112] sm:$0xff]
      %v1775 = vld [vmem:[%s1686 + $0x122] sm:$0xff]
      %v1776 = vld [vmem:[%s1686 + $0x12a] sm:$0xff]
      %v1777 = vld [vmem:[%s1686 + $0x13a] sm:$0xff]
      %v1778 = vld [vmem:[%s1686 + $0x142] sm:$0xff]
      %v1779 = vld [vmem:[%s1686 + $0x152] sm:$0xff]
      %v1780 = vld [vmem:[%s1686 + $0x15a] sm:$0xff]
      %v1781 = vld [vmem:[%s1686 + $0x16a] sm:$0xff]
      %v1782 = vld [vmem:[%s1686 + $0x172] sm:$0xff]
      %1815 = vrot.lane.b32.xlu0 %v1526, 8
      %v1816 = vpop.permute.xlu0 %1815
      %1817 = vrot.lane.b32.xlu0 %v1527, 8
      %v1818 = vpop.permute.xlu0 %1817
      %1819 = vrot.lane.b32.xlu0 %v1528, 8
      %v1820 = vpop.permute.xlu0 %1819
      %1821 = vrot.lane.b32.xlu0 %v1529, 8
      %v1822 = vpop.permute.xlu0 %1821
      %1823 = vrot.lane.b32.xlu0 %v1530, 8
      %v1824 = vpop.permute.xlu0 %1823
      %1825 = vrot.lane.b32.xlu0 %v1531, 8
      %v1826 = vpop.permute.xlu0 %1825
      %1827 = vrot.lane.b32.xlu0 %v1532, 8
      %v1828 = vpop.permute.xlu0 %1827
      %1829 = vrot.lane.b32.xlu0 %v1533, 8
      %v1830 = vpop.permute.xlu0 %1829
      %1831 = vrot.lane.b32.xlu0 %v1534, 8
      %v1832 = vpop.permute.xlu0 %1831
      %1833 = vrot.lane.b32.xlu0 %v1535, 8
      %v1834 = vpop.permute.xlu0 %1833
      %1835 = vrot.lane.b32.xlu0 %v1536, 8
      %v1836 = vpop.permute.xlu0 %1835
      %1837 = vrot.lane.b32.xlu0 %v1537, 8
      %v1838 = vpop.permute.xlu0 %1837
      %1839 = vrot.lane.b32.xlu0 %v1538, 8
      %v1840 = vpop.permute.xlu0 %1839
      %1841 = vrot.lane.b32.xlu0 %v1539, 8
      %v1842 = vpop.permute.xlu0 %1841
      %1843 = vrot.lane.b32.xlu0 %v1540, 8
      %v1844 = vpop.permute.xlu0 %1843
      %1845 = vrot.lane.b32.xlu0 %v1541, 8
      %v1846 = vpop.permute.xlu0 %1845
      %1847 = vrot.lane.b32.xlu0 %v1542, 8
      %v1848 = vpop.permute.xlu0 %1847
      %1849 = vrot.lane.b32.xlu0 %v1543, 8
      %v1850 = vpop.permute.xlu0 %1849
      %1851 = vrot.lane.b32.xlu0 %v1544, 8
      %v1852 = vpop.permute.xlu0 %1851
      %1853 = vrot.lane.b32.xlu0 %v1545, 8
      %v1854 = vpop.permute.xlu0 %1853
      %1855 = vrot.lane.b32.xlu0 %v1546, 8
      %v1856 = vpop.permute.xlu0 %1855
      %1857 = vrot.lane.b32.xlu0 %v1547, 8
      %v1858 = vpop.permute.xlu0 %1857
      %1859 = vrot.lane.b32.xlu0 %v1548, 8
      %v1860 = vpop.permute.xlu0 %1859
      %1861 = vrot.lane.b32.xlu0 %v1549, 8
      %v1862 = vpop.permute.xlu0 %1861
      %1863 = vrot.lane.b32.xlu0 %v1550, 8
      %v1864 = vpop.permute.xlu0 %1863
      %1865 = vrot.lane.b32.xlu0 %v1551, 8
      %v1866 = vpop.permute.xlu0 %1865
      %1867 = vrot.lane.b32.xlu0 %v1552, 8
      %v1868 = vpop.permute.xlu0 %1867
      %1869 = vrot.lane.b32.xlu0 %v1553, 8
      %v1870 = vpop.permute.xlu0 %1869
      %1871 = vrot.lane.b32.xlu0 %v1554, 8
      %v1872 = vpop.permute.xlu0 %1871
      %1873 = vrot.lane.b32.xlu0 %v1555, 8
      %v1874 = vpop.permute.xlu0 %1873
      %1875 = vrot.lane.b32.xlu0 %v1556, 8
      %v1876 = vpop.permute.xlu0 %1875
      %1877 = vrot.lane.b32.xlu0 %v1557, 8
      %v1878 = vpop.permute.xlu0 %1877
      %1943 = vrot.lane.b32.xlu0 %v1558, 16
      %v1944 = vpop.permute.xlu0 %1943
      %1945 = vrot.lane.b32.xlu0 %v1559, 16
      %v1946 = vpop.permute.xlu0 %1945
      %1947 = vrot.lane.b32.xlu0 %v1560, 16
      %v1948 = vpop.permute.xlu0 %1947
      %1949 = vrot.lane.b32.xlu0 %v1561, 16
      %v1950 = vpop.permute.xlu0 %1949
      %1951 = vrot.lane.b32.xlu0 %v1562, 16
      %v1952 = vpop.permute.xlu0 %1951
      %1953 = vrot.lane.b32.xlu0 %v1563, 16
      %v1954 = vpop.permute.xlu0 %1953
      %1955 = vrot.lane.b32.xlu0 %v1564, 16
      %v1956 = vpop.permute.xlu0 %1955
      %1957 = vrot.lane.b32.xlu0 %v1565, 16
      %v1958 = vpop.permute.xlu0 %1957
      %1959 = vrot.lane.b32.xlu0 %v1566, 16
      %v1960 = vpop.permute.xlu0 %1959
      %1961 = vrot.lane.b32.xlu0 %v1567, 16
      %v1962 = vpop.permute.xlu0 %1961
      %1963 = vrot.lane.b32.xlu0 %v1568, 16
      %v1964 = vpop.permute.xlu0 %1963
      %1965 = vrot.lane.b32.xlu0 %v1569, 16
      %v1966 = vpop.permute.xlu0 %1965
      %1967 = vrot.lane.b32.xlu0 %v1570, 16
      %v1968 = vpop.permute.xlu0 %1967
      %1969 = vrot.lane.b32.xlu0 %v1571, 16
      %v1970 = vpop.permute.xlu0 %1969
      %1971 = vrot.lane.b32.xlu0 %v1572, 16
      %v1972 = vpop.permute.xlu0 %1971
      %1973 = vrot.lane.b32.xlu0 %v1573, 16
      %v1974 = vpop.permute.xlu0 %1973
      %1975 = vrot.lane.b32.xlu0 %v1574, 16
      %v1976 = vpop.permute.xlu0 %1975
      %1977 = vrot.lane.b32.xlu0 %v1575, 16
      %v1978 = vpop.permute.xlu0 %1977
      %1979 = vrot.lane.b32.xlu0 %v1576, 16
      %v1980 = vpop.permute.xlu0 %1979
      %1981 = vrot.lane.b32.xlu0 %v1577, 16
      %v1982 = vpop.permute.xlu0 %1981
      %1983 = vrot.lane.b32.xlu0 %v1578, 16
      %v1984 = vpop.permute.xlu0 %1983
      %1985 = vrot.lane.b32.xlu0 %v1579, 16
      %v1986 = vpop.permute.xlu0 %1985
      %1987 = vrot.lane.b32.xlu0 %v1580, 16
      %v1988 = vpop.permute.xlu0 %1987
      %1989 = vrot.lane.b32.xlu0 %v1581, 16
      %v1990 = vpop.permute.xlu0 %1989
      %1991 = vrot.lane.b32.xlu0 %v1582, 16
      %v1992 = vpop.permute.xlu0 %1991
      %1993 = vrot.lane.b32.xlu0 %v1583, 16
      %v1994 = vpop.permute.xlu0 %1993
      %1995 = vrot.lane.b32.xlu0 %v1584, 16
      %v1996 = vpop.permute.xlu0 %1995
      %1997 = vrot.lane.b32.xlu0 %v1585, 16
      %v1998 = vpop.permute.xlu0 %1997
      %1999 = vrot.lane.b32.xlu0 %v1586, 16
      %v2000 = vpop.permute.xlu0 %1999
      %2001 = vrot.lane.b32.xlu0 %v1587, 16
      %v2002 = vpop.permute.xlu0 %2001
      %2003 = vrot.lane.b32.xlu0 %v1588, 16
      %v2004 = vpop.permute.xlu0 %2003
      %2005 = vrot.lane.b32.xlu0 %v1589, 16
      %v2006 = vpop.permute.xlu0 %2005
      %2071 = vrot.lane.b32.xlu0 %v1590, 24
      %v2072 = vpop.permute.xlu0 %2071
      %2073 = vrot.lane.b32.xlu0 %v1591, 24
      %v2074 = vpop.permute.xlu0 %2073
      %2075 = vrot.lane.b32.xlu0 %v1592, 24
      %v2076 = vpop.permute.xlu0 %2075
      %2077 = vrot.lane.b32.xlu0 %v1593, 24
      %v2078 = vpop.permute.xlu0 %2077
      %2079 = vrot.lane.b32.xlu0 %v1594, 24
      %v2080 = vpop.permute.xlu0 %2079
      %2081 = vrot.lane.b32.xlu0 %v1595, 24
      %v2082 = vpop.permute.xlu0 %2081
      %2083 = vrot.lane.b32.xlu0 %v1596, 24
      %v2084 = vpop.permute.xlu0 %2083
      %2085 = vrot.lane.b32.xlu0 %v1597, 24
      %v2086 = vpop.permute.xlu0 %2085
      %2087 = vrot.lane.b32.xlu0 %v1598, 24
      %v2088 = vpop.permute.xlu0 %2087
      %2089 = vrot.lane.b32.xlu0 %v1599, 24
      %v2090 = vpop.permute.xlu0 %2089
      %2091 = vrot.lane.b32.xlu0 %v1600, 24
      %v2092 = vpop.permute.xlu0 %2091
      %2093 = vrot.lane.b32.xlu0 %v1601, 24
      %v2094 = vpop.permute.xlu0 %2093
      %2095 = vrot.lane.b32.xlu0 %v1602, 24
      %v2096 = vpop.permute.xlu0 %2095
      %2097 = vrot.lane.b32.xlu0 %v1603, 24
      %v2098 = vpop.permute.xlu0 %2097
      %2099 = vrot.lane.b32.xlu0 %v1604, 24
      %v2100 = vpop.permute.xlu0 %2099
      %2101 = vrot.lane.b32.xlu0 %v1605, 24
      %v2102 = vpop.permute.xlu0 %2101
      %2103 = vrot.lane.b32.xlu0 %v1606, 24
      %v2104 = vpop.permute.xlu0 %2103
      %2105 = vrot.lane.b32.xlu0 %v1607, 24
      %v2106 = vpop.permute.xlu0 %2105
      %2107 = vrot.lane.b32.xlu0 %v1608, 24
      %v2108 = vpop.permute.xlu0 %2107
      %2109 = vrot.lane.b32.xlu0 %v1609, 24
      %v2110 = vpop.permute.xlu0 %2109
      %2111 = vrot.lane.b32.xlu0 %v1610, 24
      %v2112 = vpop.permute.xlu0 %2111
      %2113 = vrot.lane.b32.xlu0 %v1611, 24
      %v2114 = vpop.permute.xlu0 %2113
      %2115 = vrot.lane.b32.xlu0 %v1612, 24
      %v2116 = vpop.permute.xlu0 %2115
      %2117 = vrot.lane.b32.xlu0 %v1613, 24
      %v2118 = vpop.permute.xlu0 %2117
      %2119 = vrot.lane.b32.xlu0 %v1614, 24
      %v2120 = vpop.permute.xlu0 %2119
      %2121 = vrot.lane.b32.xlu0 %v1615, 24
      %v2122 = vpop.permute.xlu0 %2121
      %2123 = vrot.lane.b32.xlu0 %v1616, 24
      %v2124 = vpop.permute.xlu0 %2123
      %2125 = vrot.lane.b32.xlu0 %v1617, 24
      %v2126 = vpop.permute.xlu0 %2125
      %2127 = vrot.lane.b32.xlu0 %v1618, 24
      %v2128 = vpop.permute.xlu0 %2127
      %2129 = vrot.lane.b32.xlu0 %v1619, 24
      %v2130 = vpop.permute.xlu0 %2129
      %2131 = vrot.lane.b32.xlu0 %v1620, 24
      %v2132 = vpop.permute.xlu0 %2131
      %2133 = vrot.lane.b32.xlu0 %v1621, 24
      %v2134 = vpop.permute.xlu0 %2133
      %2199 = vrot.lane.b32.xlu0 %v1622, 32
      %v2200 = vpop.permute.xlu0 %2199
      %2201 = vrot.lane.b32.xlu0 %v1623, 32
      %v2202 = vpop.permute.xlu0 %2201
      %2203 = vrot.lane.b32.xlu0 %v1624, 32
      %v2204 = vpop.permute.xlu0 %2203
      %2205 = vrot.lane.b32.xlu0 %v1625, 32
      %v2206 = vpop.permute.xlu0 %2205
      %2207 = vrot.lane.b32.xlu0 %v1626, 32
      %v2208 = vpop.permute.xlu0 %2207
      %2209 = vrot.lane.b32.xlu0 %v1627, 32
      %v2210 = vpop.permute.xlu0 %2209
      %2211 = vrot.lane.b32.xlu0 %v1628, 32
      %v2212 = vpop.permute.xlu0 %2211
      %2213 = vrot.lane.b32.xlu0 %v1629, 32
      %v2214 = vpop.permute.xlu0 %2213
      %2215 = vrot.lane.b32.xlu0 %v1630, 32
      %v2216 = vpop.permute.xlu0 %2215
      %2217 = vrot.lane.b32.xlu0 %v1631, 32
      %v2218 = vpop.permute.xlu0 %2217
      %2219 = vrot.lane.b32.xlu0 %v1632, 32
      %v2220 = vpop.permute.xlu0 %2219
      %2221 = vrot.lane.b32.xlu0 %v1633, 32
      %v2222 = vpop.permute.xlu0 %2221
      %2223 = vrot.lane.b32.xlu0 %v1634, 32
      %v2224 = vpop.permute.xlu0 %2223
      %2225 = vrot.lane.b32.xlu0 %v1635, 32
      %v2226 = vpop.permute.xlu0 %2225
      %2227 = vrot.lane.b32.xlu0 %v1636, 32
      %v2228 = vpop.permute.xlu0 %2227
      %2229 = vrot.lane.b32.xlu0 %v1637, 32
      %v2230 = vpop.permute.xlu0 %2229
      %2231 = vrot.lane.b32.xlu0 %v1638, 32
      %v2232 = vpop.permute.xlu0 %2231
      %2233 = vrot.lane.b32.xlu0 %v1639, 32
      %v2234 = vpop.permute.xlu0 %2233
      %2235 = vrot.lane.b32.xlu0 %v1640, 32
      %v2236 = vpop.permute.xlu0 %2235
      %2237 = vrot.lane.b32.xlu0 %v1641, 32
      %v2238 = vpop.permute.xlu0 %2237
      %2239 = vrot.lane.b32.xlu0 %v1642, 32
      %v2240 = vpop.permute.xlu0 %2239
      %2241 = vrot.lane.b32.xlu0 %v1643, 32
      %v2242 = vpop.permute.xlu0 %2241
      %2243 = vrot.lane.b32.xlu0 %v1644, 32
      %v2244 = vpop.permute.xlu0 %2243
      %2245 = vrot.lane.b32.xlu0 %v1645, 32
      %v2246 = vpop.permute.xlu0 %2245
      %2247 = vrot.lane.b32.xlu0 %v1646, 32
      %v2248 = vpop.permute.xlu0 %2247
      %2249 = vrot.lane.b32.xlu0 %v1647, 32
      %v2250 = vpop.permute.xlu0 %2249
      %2251 = vrot.lane.b32.xlu0 %v1648, 32
      %v2252 = vpop.permute.xlu0 %2251
      %2253 = vrot.lane.b32.xlu0 %v1649, 32
      %v2254 = vpop.permute.xlu0 %2253
      %2255 = vrot.lane.b32.xlu0 %v1650, 32
      %v2256 = vpop.permute.xlu0 %2255
      %2257 = vrot.lane.b32.xlu0 %v1651, 32
      %v2258 = vpop.permute.xlu0 %2257
      %2259 = vrot.lane.b32.xlu0 %v1652, 32
      %v2260 = vpop.permute.xlu0 %2259
      %2261 = vrot.lane.b32.xlu0 %v1653, 32
      %v2262 = vpop.permute.xlu0 %2261
      %2327 = vrot.lane.b32.xlu0 %v1654, 40
      %v2328 = vpop.permute.xlu0 %2327
      %2329 = vrot.lane.b32.xlu0 %v1655, 40
      %v2330 = vpop.permute.xlu0 %2329
      %2331 = vrot.lane.b32.xlu0 %v1656, 40
      %v2332 = vpop.permute.xlu0 %2331
      %2333 = vrot.lane.b32.xlu0 %v1657, 40
      %v2334 = vpop.permute.xlu0 %2333
      %2335 = vrot.lane.b32.xlu0 %v1658, 40
      %v2336 = vpop.permute.xlu0 %2335
      %2337 = vrot.lane.b32.xlu0 %v1659, 40
      %v2338 = vpop.permute.xlu0 %2337
      %2339 = vrot.lane.b32.xlu0 %v1660, 40
      %v2340 = vpop.permute.xlu0 %2339
      %2341 = vrot.lane.b32.xlu0 %v1661, 40
      %v2342 = vpop.permute.xlu0 %2341
      %2343 = vrot.lane.b32.xlu0 %v1662, 40
      %v2344 = vpop.permute.xlu0 %2343
      %2345 = vrot.lane.b32.xlu0 %v1663, 40
      %v2346 = vpop.permute.xlu0 %2345
      %2347 = vrot.lane.b32.xlu0 %v1664, 40
      %v2348 = vpop.permute.xlu0 %2347
      %2349 = vrot.lane.b32.xlu0 %v1665, 40
      %v2350 = vpop.permute.xlu0 %2349
      %2351 = vrot.lane.b32.xlu0 %v1666, 40
      %v2352 = vpop.permute.xlu0 %2351
      %2353 = vrot.lane.b32.xlu0 %v1667, 40
      %v2354 = vpop.permute.xlu0 %2353
      %2355 = vrot.lane.b32.xlu0 %v1668, 40
      %v2356 = vpop.permute.xlu0 %2355
      %2357 = vrot.lane.b32.xlu0 %v1669, 40
      %v2358 = vpop.permute.xlu0 %2357
      %2359 = vrot.lane.b32.xlu0 %v1670, 40
      %v2360 = vpop.permute.xlu0 %2359
      %2361 = vrot.lane.b32.xlu0 %v1671, 40
      %v2362 = vpop.permute.xlu0 %2361
      %2363 = vrot.lane.b32.xlu0 %v1672, 40
      %v2364 = vpop.permute.xlu0 %2363
      %2365 = vrot.lane.b32.xlu0 %v1673, 40
      %v2366 = vpop.permute.xlu0 %2365
      %2367 = vrot.lane.b32.xlu0 %v1674, 40
      %v2368 = vpop.permute.xlu0 %2367
      %2369 = vrot.lane.b32.xlu0 %v1675, 40
      %v2370 = vpop.permute.xlu0 %2369
      %2371 = vrot.lane.b32.xlu0 %v1676, 40
      %v2372 = vpop.permute.xlu0 %2371
      %2373 = vrot.lane.b32.xlu0 %v1677, 40
      %v2374 = vpop.permute.xlu0 %2373
      %2375 = vrot.lane.b32.xlu0 %v1678, 40
      %v2376 = vpop.permute.xlu0 %2375
      %2377 = vrot.lane.b32.xlu0 %v1679, 40
      %v2378 = vpop.permute.xlu0 %2377
      %2379 = vrot.lane.b32.xlu0 %v1680, 40
      %v2380 = vpop.permute.xlu0 %2379
      %2381 = vrot.lane.b32.xlu0 %v1681, 40
      %v2382 = vpop.permute.xlu0 %2381
      %2383 = vrot.lane.b32.xlu0 %v1682, 40
      %v2384 = vpop.permute.xlu0 %2383
      %2385 = vrot.lane.b32.xlu0 %v1683, 40
      %v2386 = vpop.permute.xlu0 %2385
      %2387 = vrot.lane.b32.xlu0 %v1684, 40
      %v2388 = vpop.permute.xlu0 %2387
      %2389 = vrot.lane.b32.xlu0 %v1685, 40
      %v2390 = vpop.permute.xlu0 %2389
      %2455 = vrot.lane.b32.xlu0 %v1687, 48
      %v2456 = vpop.permute.xlu0 %2455
      %2457 = vrot.lane.b32.xlu0 %v1688, 48
      %v2458 = vpop.permute.xlu0 %2457
      %2459 = vrot.lane.b32.xlu0 %v1689, 48
      %v2460 = vpop.permute.xlu0 %2459
      %2461 = vrot.lane.b32.xlu0 %v1690, 48
      %v2462 = vpop.permute.xlu0 %2461
      %2463 = vrot.lane.b32.xlu0 %v1691, 48
      %v2464 = vpop.permute.xlu0 %2463
      %2465 = vrot.lane.b32.xlu0 %v1692, 48
      %v2466 = vpop.permute.xlu0 %2465
      %2467 = vrot.lane.b32.xlu0 %v1693, 48
      %v2468 = vpop.permute.xlu0 %2467
      %2469 = vrot.lane.b32.xlu0 %v1694, 48
      %v2470 = vpop.permute.xlu0 %2469
      %2471 = vrot.lane.b32.xlu0 %v1695, 48
      %v2472 = vpop.permute.xlu0 %2471
      %2473 = vrot.lane.b32.xlu0 %v1696, 48
      %v2474 = vpop.permute.xlu0 %2473
      %2475 = vrot.lane.b32.xlu0 %v1697, 48
      %v2476 = vpop.permute.xlu0 %2475
      %2477 = vrot.lane.b32.xlu0 %v1698, 48
      %v2478 = vpop.permute.xlu0 %2477
      %2479 = vrot.lane.b32.xlu0 %v1699, 48
      %v2480 = vpop.permute.xlu0 %2479
      %2481 = vrot.lane.b32.xlu0 %v1700, 48
      %v2482 = vpop.permute.xlu0 %2481
      %2483 = vrot.lane.b32.xlu0 %v1701, 48
      %v2484 = vpop.permute.xlu0 %2483
      %2485 = vrot.lane.b32.xlu0 %v1702, 48
      %v2486 = vpop.permute.xlu0 %2485
      %2487 = vrot.lane.b32.xlu0 %v1703, 48
      %v2488 = vpop.permute.xlu0 %2487
      %2489 = vrot.lane.b32.xlu0 %v1704, 48
      %v2490 = vpop.permute.xlu0 %2489
      %2491 = vrot.lane.b32.xlu0 %v1705, 48
      %v2492 = vpop.permute.xlu0 %2491
      %2493 = vrot.lane.b32.xlu0 %v1706, 48
      %v2494 = vpop.permute.xlu0 %2493
      %2495 = vrot.lane.b32.xlu0 %v1707, 48
      %v2496 = vpop.permute.xlu0 %2495
      %2497 = vrot.lane.b32.xlu0 %v1708, 48
      %v2498 = vpop.permute.xlu0 %2497
      %2499 = vrot.lane.b32.xlu0 %v1709, 48
      %v2500 = vpop.permute.xlu0 %2499
      %2501 = vrot.lane.b32.xlu0 %v1710, 48
      %v2502 = vpop.permute.xlu0 %2501
      %2503 = vrot.lane.b32.xlu0 %v1711, 48
      %v2504 = vpop.permute.xlu0 %2503
      %2505 = vrot.lane.b32.xlu0 %v1712, 48
      %v2506 = vpop.permute.xlu0 %2505
      %2507 = vrot.lane.b32.xlu0 %v1713, 48
      %v2508 = vpop.permute.xlu0 %2507
      %2509 = vrot.lane.b32.xlu0 %v1714, 48
      %v2510 = vpop.permute.xlu0 %2509
      %2511 = vrot.lane.b32.xlu0 %v1715, 48
      %v2512 = vpop.permute.xlu0 %2511
      %2513 = vrot.lane.b32.xlu0 %v1716, 48
      %v2514 = vpop.permute.xlu0 %2513
      %2515 = vrot.lane.b32.xlu0 %v1717, 48
      %v2516 = vpop.permute.xlu0 %2515
      %2517 = vrot.lane.b32.xlu0 %v1718, 48
      %v2518 = vpop.permute.xlu0 %2517
      %2583 = vrot.lane.b32.xlu0 %v1719, 56
      %v2584 = vpop.permute.xlu0 %2583
      %2585 = vrot.lane.b32.xlu0 %v1720, 56
      %v2586 = vpop.permute.xlu0 %2585
      %2587 = vrot.lane.b32.xlu0 %v1721, 56
      %v2588 = vpop.permute.xlu0 %2587
      %2589 = vrot.lane.b32.xlu0 %v1722, 56
      %v2590 = vpop.permute.xlu0 %2589
      %2591 = vrot.lane.b32.xlu0 %v1723, 56
      %v2592 = vpop.permute.xlu0 %2591
      %2593 = vrot.lane.b32.xlu0 %v1724, 56
      %v2594 = vpop.permute.xlu0 %2593
      %2595 = vrot.lane.b32.xlu0 %v1725, 56
      %v2596 = vpop.permute.xlu0 %2595
      %2597 = vrot.lane.b32.xlu0 %v1726, 56
      %v2598 = vpop.permute.xlu0 %2597
      %2599 = vrot.lane.b32.xlu0 %v1727, 56
      %v2600 = vpop.permute.xlu0 %2599
      %2601 = vrot.lane.b32.xlu0 %v1728, 56
      %v2602 = vpop.permute.xlu0 %2601
      %2603 = vrot.lane.b32.xlu0 %v1729, 56
      %v2604 = vpop.permute.xlu0 %2603
      %2605 = vrot.lane.b32.xlu0 %v1730, 56
      %v2606 = vpop.permute.xlu0 %2605
      %2607 = vrot.lane.b32.xlu0 %v1731, 56
      %v2608 = vpop.permute.xlu0 %2607
      %2609 = vrot.lane.b32.xlu0 %v1732, 56
      %v2610 = vpop.permute.xlu0 %2609
      %2611 = vrot.lane.b32.xlu0 %v1733, 56
      %v2612 = vpop.permute.xlu0 %2611
      %2613 = vrot.lane.b32.xlu0 %v1734, 56
      %v2614 = vpop.permute.xlu0 %2613
      %2615 = vrot.lane.b32.xlu0 %v1735, 56
      %v2616 = vpop.permute.xlu0 %2615
      %2617 = vrot.lane.b32.xlu0 %v1736, 56
      %v2618 = vpop.permute.xlu0 %2617
      %2619 = vrot.lane.b32.xlu0 %v1737, 56
      %v2620 = vpop.permute.xlu0 %2619
      %2621 = vrot.lane.b32.xlu0 %v1738, 56
      %v2622 = vpop.permute.xlu0 %2621
      %2623 = vrot.lane.b32.xlu0 %v1739, 56
      %v2624 = vpop.permute.xlu0 %2623
      %2625 = vrot.lane.b32.xlu0 %v1740, 56
      %v2626 = vpop.permute.xlu0 %2625
      %2627 = vrot.lane.b32.xlu0 %v1741, 56
      %v2628 = vpop.permute.xlu0 %2627
      %2629 = vrot.lane.b32.xlu0 %v1742, 56
      %v2630 = vpop.permute.xlu0 %2629
      %2631 = vrot.lane.b32.xlu0 %v1743, 56
      %v2632 = vpop.permute.xlu0 %2631
      %2633 = vrot.lane.b32.xlu0 %v1744, 56
      %v2634 = vpop.permute.xlu0 %2633
      %2635 = vrot.lane.b32.xlu0 %v1745, 56
      %v2636 = vpop.permute.xlu0 %2635
      %2637 = vrot.lane.b32.xlu0 %v1746, 56
      %v2638 = vpop.permute.xlu0 %2637
      %2639 = vrot.lane.b32.xlu0 %v1747, 56
      %v2640 = vpop.permute.xlu0 %2639
      %2641 = vrot.lane.b32.xlu0 %v1748, 56
      %v2642 = vpop.permute.xlu0 %2641
      %2643 = vrot.lane.b32.xlu0 %v1749, 56
      %v2644 = vpop.permute.xlu0 %2643
      %2645 = vrot.lane.b32.xlu0 %v1750, 56
      %v2646 = vpop.permute.xlu0 %2645
      %2711 = vrot.lane.b32.xlu0 %v1751, 64
      %v2712 = vpop.permute.xlu0 %2711
      %2713 = vrot.lane.b32.xlu0 %v1752, 64
      %v2714 = vpop.permute.xlu0 %2713
      %2715 = vrot.lane.b32.xlu0 %v1753, 64
      %v2716 = vpop.permute.xlu0 %2715
      %2717 = vrot.lane.b32.xlu0 %v1754, 64
      %v2718 = vpop.permute.xlu0 %2717
      %2719 = vrot.lane.b32.xlu0 %v1755, 64
      %v2720 = vpop.permute.xlu0 %2719
      %2721 = vrot.lane.b32.xlu0 %v1756, 64
      %v2722 = vpop.permute.xlu0 %2721
      %2723 = vrot.lane.b32.xlu0 %v1757, 64
      %v2724 = vpop.permute.xlu0 %2723
      %2725 = vrot.lane.b32.xlu0 %v1758, 64
      %v2726 = vpop.permute.xlu0 %2725
      %2727 = vrot.lane.b32.xlu0 %v1759, 64
      %v2728 = vpop.permute.xlu0 %2727
      %2729 = vrot.lane.b32.xlu0 %v1760, 64
      %v2730 = vpop.permute.xlu0 %2729
      %2731 = vrot.lane.b32.xlu0 %v1761, 64
      %v2732 = vpop.permute.xlu0 %2731
      %2733 = vrot.lane.b32.xlu0 %v1762, 64
      %v2734 = vpop.permute.xlu0 %2733
      %2735 = vrot.lane.b32.xlu0 %v1763, 64
      %v2736 = vpop.permute.xlu0 %2735
      %2737 = vrot.lane.b32.xlu0 %v1764, 64
      %v2738 = vpop.permute.xlu0 %2737
      %2739 = vrot.lane.b32.xlu0 %v1765, 64
      %v2740 = vpop.permute.xlu0 %2739
      %2741 = vrot.lane.b32.xlu0 %v1766, 64
      %v2742 = vpop.permute.xlu0 %2741
      %2743 = vrot.lane.b32.xlu0 %v1767, 64
      %v2744 = vpop.permute.xlu0 %2743
      %2745 = vrot.lane.b32.xlu0 %v1768, 64
      %v2746 = vpop.permute.xlu0 %2745
      %2747 = vrot.lane.b32.xlu0 %v1769, 64
      %v2748 = vpop.permute.xlu0 %2747
      %2749 = vrot.lane.b32.xlu0 %v1770, 64
      %v2750 = vpop.permute.xlu0 %2749
      %2751 = vrot.lane.b32.xlu0 %v1771, 64
      %v2752 = vpop.permute.xlu0 %2751
      %2753 = vrot.lane.b32.xlu0 %v1772, 64
      %v2754 = vpop.permute.xlu0 %2753
      %2755 = vrot.lane.b32.xlu0 %v1773, 64
      %v2756 = vpop.permute.xlu0 %2755
      %2757 = vrot.lane.b32.xlu0 %v1774, 64
      %v2758 = vpop.permute.xlu0 %2757
      %2759 = vrot.lane.b32.xlu0 %v1775, 64
      %v2760 = vpop.permute.xlu0 %2759
      %2761 = vrot.lane.b32.xlu0 %v1776, 64
      %v2762 = vpop.permute.xlu0 %2761
      %2763 = vrot.lane.b32.xlu0 %v1777, 64
      %v2764 = vpop.permute.xlu0 %2763
      %2765 = vrot.lane.b32.xlu0 %v1778, 64
      %v2766 = vpop.permute.xlu0 %2765
      %2767 = vrot.lane.b32.xlu0 %v1779, 64
      %v2768 = vpop.permute.xlu0 %2767
      %2769 = vrot.lane.b32.xlu0 %v1780, 64
      %v2770 = vpop.permute.xlu0 %2769
      %2771 = vrot.lane.b32.xlu0 %v1781, 64
      %v2772 = vpop.permute.xlu0 %2771
      %2773 = vrot.lane.b32.xlu0 %v1782, 64
      %v2774 = vpop.permute.xlu0 %2773
      %v2807 = vsel %vm274, %v1494, %v1816
      %v2808 = vsel %vm274, %v1495, %v1818
      %v2809 = vsel %vm274, %v1496, %v1820
      %v2810 = vsel %vm274, %v1497, %v1822
      %v2811 = vsel %vm274, %v1498, %v1824
      %v2812 = vsel %vm274, %v1499, %v1826
      %v2813 = vsel %vm274, %v1500, %v1828
      %v2814 = vsel %vm274, %v1501, %v1830
      %v2815 = vsel %vm274, %v1502, %v1832
      %v2816 = vsel %vm274, %v1503, %v1834
      %v2817 = vsel %vm274, %v1504, %v1836
      %v2818 = vsel %vm274, %v1505, %v1838
      %v2819 = vsel %vm274, %v1506, %v1840
      %v2820 = vsel %vm274, %v1507, %v1842
      %v2821 = vsel %vm274, %v1508, %v1844
      %v2822 = vsel %vm274, %v1509, %v1846
      %v2823 = vsel %vm274, %v1510, %v1848
      %v2824 = vsel %vm274, %v1511, %v1850
      %v2825 = vsel %vm274, %v1512, %v1852
      %v2826 = vsel %vm274, %v1513, %v1854
      %v2827 = vsel %vm274, %v1514, %v1856
      %v2828 = vsel %vm274, %v1515, %v1858
      %v2829 = vsel %vm274, %v1516, %v1860
      %v2830 = vsel %vm274, %v1517, %v1862
      %v2831 = vsel %vm274, %v1518, %v1864
      %v2832 = vsel %vm274, %v1519, %v1866
      %v2833 = vsel %vm274, %v1520, %v1868
      %v2834 = vsel %vm274, %v1521, %v1870
      %v2835 = vsel %vm274, %v1522, %v1872
      %v2836 = vsel %vm274, %v1523, %v1874
      %v2837 = vsel %vm274, %v1524, %v1876
      %v2838 = vsel %vm274, %v1525, %v1878
      %vm2839 = vcmask 130048
      %v2840 = vsel %vm2839, %v2807, %v1944
      %v2841 = vsel %vm2839, %v2808, %v1946
      %v2842 = vsel %vm2839, %v2809, %v1948
      %v2843 = vsel %vm2839, %v2810, %v1950
      %v2844 = vsel %vm2839, %v2811, %v1952
      %v2845 = vsel %vm2839, %v2812, %v1954
      %v2846 = vsel %vm2839, %v2813, %v1956
      %v2847 = vsel %vm2839, %v2814, %v1958
      %v2848 = vsel %vm2839, %v2815, %v1960
      %v2849 = vsel %vm2839, %v2816, %v1962
      %v2850 = vsel %vm2839, %v2817, %v1964
      %v2851 = vsel %vm2839, %v2818, %v1966
      %v2852 = vsel %vm2839, %v2819, %v1968
      %v2853 = vsel %vm2839, %v2820, %v1970
      %v2854 = vsel %vm2839, %v2821, %v1972
      %v2855 = vsel %vm2839, %v2822, %v1974
      %v2856 = vsel %vm2839, %v2823, %v1976
      %v2857 = vsel %vm2839, %v2824, %v1978
      %v2858 = vsel %vm2839, %v2825, %v1980
      %v2859 = vsel %vm2839, %v2826, %v1982
      %v2860 = vsel %vm2839, %v2827, %v1984
      %v2861 = vsel %vm2839, %v2828, %v1986
      %v2862 = vsel %vm2839, %v2829, %v1988
      %v2863 = vsel %vm2839, %v2830, %v1990
      %v2864 = vsel %vm2839, %v2831, %v1992
      %v2865 = vsel %vm2839, %v2832, %v1994
      %v2866 = vsel %vm2839, %v2833, %v1996
      %v2867 = vsel %vm2839, %v2834, %v1998
      %v2868 = vsel %vm2839, %v2835, %v2000
      %v2869 = vsel %vm2839, %v2836, %v2002
      %v2870 = vsel %vm2839, %v2837, %v2004
      %v2871 = vsel %vm2839, %v2838, %v2006
      %vm2872 = vcmask 195584
      %v2873 = vsel %vm2872, %v2840, %v2072
      %v2874 = vsel %vm2872, %v2841, %v2074
      %v2875 = vsel %vm2872, %v2842, %v2076
      %v2876 = vsel %vm2872, %v2843, %v2078
      %v2877 = vsel %vm2872, %v2844, %v2080
      %v2878 = vsel %vm2872, %v2845, %v2082
      %v2879 = vsel %vm2872, %v2846, %v2084
      %v2880 = vsel %vm2872, %v2847, %v2086
      %v2881 = vsel %vm2872, %v2848, %v2088
      %v2882 = vsel %vm2872, %v2849, %v2090
      %v2883 = vsel %vm2872, %v2850, %v2092
      %v2884 = vsel %vm2872, %v2851, %v2094
      %v2885 = vsel %vm2872, %v2852, %v2096
      %v2886 = vsel %vm2872, %v2853, %v2098
      %v2887 = vsel %vm2872, %v2854, %v2100
      %v2888 = vsel %vm2872, %v2855, %v2102
      %v2889 = vsel %vm2872, %v2856, %v2104
      %v2890 = vsel %vm2872, %v2857, %v2106
      %v2891 = vsel %vm2872, %v2858, %v2108
      %v2892 = vsel %vm2872, %v2859, %v2110
      %v2893 = vsel %vm2872, %v2860, %v2112
      %v2894 = vsel %vm2872, %v2861, %v2114
      %v2895 = vsel %vm2872, %v2862, %v2116
      %v2896 = vsel %vm2872, %v2863, %v2118
      %v2897 = vsel %vm2872, %v2864, %v2120
      %v2898 = vsel %vm2872, %v2865, %v2122
      %v2899 = vsel %vm2872, %v2866, %v2124
      %v2900 = vsel %vm2872, %v2867, %v2126
      %v2901 = vsel %vm2872, %v2868, %v2128
      %v2902 = vsel %vm2872, %v2869, %v2130
      %v2903 = vsel %vm2872, %v2870, %v2132
      %v2904 = vsel %vm2872, %v2871, %v2134
      %vm2905 = vcmask 261120
      %v2906 = vsel %vm2905, %v2873, %v2200
      %v2907 = vsel %vm2905, %v2874, %v2202
      %v2908 = vsel %vm2905, %v2875, %v2204
      %v2909 = vsel %vm2905, %v2876, %v2206
      %v2910 = vsel %vm2905, %v2877, %v2208
      %v2911 = vsel %vm2905, %v2878, %v2210
      %v2912 = vsel %vm2905, %v2879, %v2212
      %v2913 = vsel %vm2905, %v2880, %v2214
      %v2914 = vsel %vm2905, %v2881, %v2216
      %v2915 = vsel %vm2905, %v2882, %v2218
      %v2916 = vsel %vm2905, %v2883, %v2220
      %v2917 = vsel %vm2905, %v2884, %v2222
      %v2918 = vsel %vm2905, %v2885, %v2224
      %v2919 = vsel %vm2905, %v2886, %v2226
      %v2920 = vsel %vm2905, %v2887, %v2228
      %v2921 = vsel %vm2905, %v2888, %v2230
      %v2922 = vsel %vm2905, %v2889, %v2232
      %v2923 = vsel %vm2905, %v2890, %v2234
      %v2924 = vsel %vm2905, %v2891, %v2236
      %v2925 = vsel %vm2905, %v2892, %v2238
      %v2926 = vsel %vm2905, %v2893, %v2240
      %v2927 = vsel %vm2905, %v2894, %v2242
      %v2928 = vsel %vm2905, %v2895, %v2244
      %v2929 = vsel %vm2905, %v2896, %v2246
      %v2930 = vsel %vm2905, %v2897, %v2248
      %v2931 = vsel %vm2905, %v2898, %v2250
      %v2932 = vsel %vm2905, %v2899, %v2252
      %v2933 = vsel %vm2905, %v2900, %v2254
      %v2934 = vsel %vm2905, %v2901, %v2256
      %v2935 = vsel %vm2905, %v2902, %v2258
      %v2936 = vsel %vm2905, %v2903, %v2260
      %v2937 = vsel %vm2905, %v2904, %v2262
      %vm2938 = vcmask 326656
      %v2939 = vsel %vm2938, %v2906, %v2328
      %v2940 = vsel %vm2938, %v2907, %v2330
      %v2941 = vsel %vm2938, %v2908, %v2332
      %v2942 = vsel %vm2938, %v2909, %v2334
      %v2943 = vsel %vm2938, %v2910, %v2336
      %v2944 = vsel %vm2938, %v2911, %v2338
      %v2945 = vsel %vm2938, %v2912, %v2340
      %v2946 = vsel %vm2938, %v2913, %v2342
      %v2947 = vsel %vm2938, %v2914, %v2344
      %v2948 = vsel %vm2938, %v2915, %v2346
      %v2949 = vsel %vm2938, %v2916, %v2348
      %v2950 = vsel %vm2938, %v2917, %v2350
      %v2951 = vsel %vm2938, %v2918, %v2352
      %v2952 = vsel %vm2938, %v2919, %v2354
      %v2953 = vsel %vm2938, %v2920, %v2356
      %v2954 = vsel %vm2938, %v2921, %v2358
      %v2955 = vsel %vm2938, %v2922, %v2360
      %v2956 = vsel %vm2938, %v2923, %v2362
      %v2957 = vsel %vm2938, %v2924, %v2364
      %v2958 = vsel %vm2938, %v2925, %v2366
      %v2959 = vsel %vm2938, %v2926, %v2368
      %v2960 = vsel %vm2938, %v2927, %v2370
      %v2961 = vsel %vm2938, %v2928, %v2372
      %v2962 = vsel %vm2938, %v2929, %v2374
      %v2963 = vsel %vm2938, %v2930, %v2376
      %v2964 = vsel %vm2938, %v2931, %v2378
      %v2965 = vsel %vm2938, %v2932, %v2380
      %v2966 = vsel %vm2938, %v2933, %v2382
      %v2967 = vsel %vm2938, %v2934, %v2384
      %v2968 = vsel %vm2938, %v2935, %v2386
      %v2969 = vsel %vm2938, %v2936, %v2388
      %v2970 = vsel %vm2938, %v2937, %v2390
      %vm2971 = vcmask 392192
      %v2972 = vsel %vm2971, %v2939, %v2456
      %v2973 = vsel %vm2971, %v2940, %v2458
      %v2974 = vsel %vm2971, %v2941, %v2460
      %v2975 = vsel %vm2971, %v2942, %v2462
      %v2976 = vsel %vm2971, %v2943, %v2464
      %v2977 = vsel %vm2971, %v2944, %v2466
      %v2978 = vsel %vm2971, %v2945, %v2468
      %v2979 = vsel %vm2971, %v2946, %v2470
      %v2980 = vsel %vm2971, %v2947, %v2472
      %v2981 = vsel %vm2971, %v2948, %v2474
      %v2982 = vsel %vm2971, %v2949, %v2476
      %v2983 = vsel %vm2971, %v2950, %v2478
      %v2984 = vsel %vm2971, %v2951, %v2480
      %v2985 = vsel %vm2971, %v2952, %v2482
      %v2986 = vsel %vm2971, %v2953, %v2484
      %v2987 = vsel %vm2971, %v2954, %v2486
      %v2988 = vsel %vm2971, %v2955, %v2488
      %v2989 = vsel %vm2971, %v2956, %v2490
      %v2990 = vsel %vm2971, %v2957, %v2492
      %v2991 = vsel %vm2971, %v2958, %v2494
      %v2992 = vsel %vm2971, %v2959, %v2496
      %v2993 = vsel %vm2971, %v2960, %v2498
      %v2994 = vsel %vm2971, %v2961, %v2500
      %v2995 = vsel %vm2971, %v2962, %v2502
      %v2996 = vsel %vm2971, %v2963, %v2504
      %v2997 = vsel %vm2971, %v2964, %v2506
      %v2998 = vsel %vm2971, %v2965, %v2508
      %v2999 = vsel %vm2971, %v2966, %v2510
      %v3000 = vsel %vm2971, %v2967, %v2512
      %v3001 = vsel %vm2971, %v2968, %v2514
      %v3002 = vsel %vm2971, %v2969, %v2516
      %v3003 = vsel %vm2971, %v2970, %v2518
      %vm3004 = vcmask 457728
      %v3005 = vsel %vm3004, %v2972, %v2584
      %v3006 = vsel %vm3004, %v2973, %v2586
      %v3007 = vsel %vm3004, %v2974, %v2588
      %v3008 = vsel %vm3004, %v2975, %v2590
      %v3009 = vsel %vm3004, %v2976, %v2592
      %v3010 = vsel %vm3004, %v2977, %v2594
      %v3011 = vsel %vm3004, %v2978, %v2596
      %v3012 = vsel %vm3004, %v2979, %v2598
      %v3013 = vsel %vm3004, %v2980, %v2600
      %v3014 = vsel %vm3004, %v2981, %v2602
      %v3015 = vsel %vm3004, %v2982, %v2604
      %v3016 = vsel %vm3004, %v2983, %v2606
      %v3017 = vsel %vm3004, %v2984, %v2608
      %v3018 = vsel %vm3004, %v2985, %v2610
      %v3019 = vsel %vm3004, %v2986, %v2612
      %v3020 = vsel %vm3004, %v2987, %v2614
      %v3021 = vsel %vm3004, %v2988, %v2616
      %v3022 = vsel %vm3004, %v2989, %v2618
      %v3023 = vsel %vm3004, %v2990, %v2620
      %v3024 = vsel %vm3004, %v2991, %v2622
      %v3025 = vsel %vm3004, %v2992, %v2624
      %v3026 = vsel %vm3004, %v2993, %v2626
      %v3027 = vsel %vm3004, %v2994, %v2628
      %v3028 = vsel %vm3004, %v2995, %v2630
      %v3029 = vsel %vm3004, %v2996, %v2632
      %v3030 = vsel %vm3004, %v2997, %v2634
      %v3031 = vsel %vm3004, %v2998, %v2636
      %v3032 = vsel %vm3004, %v2999, %v2638
      %v3033 = vsel %vm3004, %v3000, %v2640
      %v3034 = vsel %vm3004, %v3001, %v2642
      %v3035 = vsel %vm3004, %v3002, %v2644
      %v3036 = vsel %vm3004, %v3003, %v2646
      %vm3037 = vcmask 523264
      %v3038 = vsel %vm3037, %v3005, %v2712
      %v3039 = vsel %vm3037, %v3006, %v2714
      %v3040 = vsel %vm3037, %v3007, %v2716
      %v3041 = vsel %vm3037, %v3008, %v2718
      %v3042 = vsel %vm3037, %v3009, %v2720
      %v3043 = vsel %vm3037, %v3010, %v2722
      %v3044 = vsel %vm3037, %v3011, %v2724
      %v3045 = vsel %vm3037, %v3012, %v2726
      %v3046 = vsel %vm3037, %v3013, %v2728
      %v3047 = vsel %vm3037, %v3014, %v2730
      %v3048 = vsel %vm3037, %v3015, %v2732
      %v3049 = vsel %vm3037, %v3016, %v2734
      %v3050 = vsel %vm3037, %v3017, %v2736
      %v3051 = vsel %vm3037, %v3018, %v2738
      %v3052 = vsel %vm3037, %v3019, %v2740
      %v3053 = vsel %vm3037, %v3020, %v2742
      %v3054 = vsel %vm3037, %v3021, %v2744
      %v3055 = vsel %vm3037, %v3022, %v2746
      %v3056 = vsel %vm3037, %v3023, %v2748
      %v3057 = vsel %vm3037, %v3024, %v2750
      %v3058 = vsel %vm3037, %v3025, %v2752
      %v3059 = vsel %vm3037, %v3026, %v2754
      %v3060 = vsel %vm3037, %v3027, %v2756
      %v3061 = vsel %vm3037, %v3028, %v2758
      %v3062 = vsel %vm3037, %v3029, %v2760
      %v3063 = vsel %vm3037, %v3030, %v2762
      %v3064 = vsel %vm3037, %v3031, %v2764
      %v3065 = vsel %vm3037, %v3032, %v2766
      %v3066 = vsel %vm3037, %v3033, %v2768
      %v3067 = vsel %vm3037, %v3034, %v2770
      %v3068 = vsel %vm3037, %v3035, %v2772
      %v3069 = vsel %vm3037, %v3036, %v2774
      %v3070 = vpack.c.bf16 %v3039, %v3038
      %v3071 = vpack.c.bf16 %v3041, %v3040
      %v3072 = vpack.c.bf16 %v3043, %v3042
      %v3073 = vpack.c.bf16 %v3045, %v3044
      %v3074 = vpack.c.bf16 %v3047, %v3046
      %v3075 = vpack.c.bf16 %v3049, %v3048
      %v3076 = vpack.c.bf16 %v3051, %v3050
      %v3077 = vpack.c.bf16 %v3053, %v3052
      %v3078 = vpack.c.bf16 %v3055, %v3054
      %v3079 = vpack.c.bf16 %v3057, %v3056
      %v3080 = vpack.c.bf16 %v3059, %v3058
      %v3081 = vpack.c.bf16 %v3061, %v3060
      %v3082 = vpack.c.bf16 %v3063, %v3062
      %v3083 = vpack.c.bf16 %v3065, %v3064
      %v3084 = vpack.c.bf16 %v3067, %v3066
      %v3085 = vpack.c.bf16 %v3069, %v3068
      %v3086 = vld [vmem:[%s3] sm:$0xf]
      %v3087 = vld [vmem:[%s3 + $0x4] sm:$0xf]
      %v3088 = vld [vmem:[%s3 + $0x8] sm:$0xf]
      %v3089 = vld [vmem:[%s3 + $0xc] sm:$0xf]
      %v3090 = vld [vmem:[%s3 + $0x10] sm:$0xf]
      %v3091 = vld [vmem:[%s3 + $0x14] sm:$0xf]
      %v3092 = vld [vmem:[%s3 + $0x18] sm:$0xf]
      %v3093 = vld [vmem:[%s3 + $0x1c] sm:$0xf]
      %v3094 = vld [vmem:[%s3 + $0x20] sm:$0xf]
      %v3104 = vunpack.c.l.b16 %v3086
      %v3105 = vunpack.c.l.b16 %v3087
      %v3106 = vunpack.c.l.b16 %v3088
      %v3107 = vunpack.c.l.b16 %v3089
      %v3108 = vunpack.c.l.b16 %v3090
      %v3109 = vunpack.c.l.b16 %v3091
      %v3110 = vunpack.c.l.b16 %v3092
      %v3111 = vunpack.c.l.b16 %v3093
      %v3112 = vunpack.c.l.b16 %v3094
      %v3113 = vpack.c.b16 %v3105, %v3104
      %v3114 = vpack.c.b16 %v3107, %v3106
      %v3115 = vpack.c.b16 %v3109, %v3108
      %v3116 = vpack.c.b16 %v3111, %v3110
      %v3117 = vpack.c.b16 %v3112, %v3112
      %vm3122 = vcmask 588800
      %v3124 = vsel %vm3122, %v3070, 0
      %v3127 = vsel %vm3122, %v3071, 0
      %v3130 = vsel %vm3122, %v3072, 0
      %v3133 = vsel %vm3122, %v3073, 0
      %v3136 = vsel %vm3122, %v3074, 0
      %v3139 = vsel %vm3122, %v3075, 0
      %v3142 = vsel %vm3122, %v3076, 0
      %v3145 = vsel %vm3122, %v3077, 0
      %v3148 = vsel %vm3122, %v3078, 0
      %v3151 = vsel %vm3122, %v3079, 0
      %v3154 = vsel %vm3122, %v3080, 0
      %v3157 = vsel %vm3122, %v3081, 0
      %v3160 = vsel %vm3122, %v3082, 0
      %v3163 = vsel %vm3122, %v3083, 0
      %v3166 = vsel %vm3122, %v3084, 0
      %v3169 = vsel %vm3122, %v3085, 0
      %vm3171 = vcmask 1043456
      %v3173 = vsel %vm3171, %v3117, 0
      %3175 = vmatpush.bf16.msra.mxu0 0
      %3176 = vmatpush.bf16.msra.mxu0 0
      %3177 = vmatpush.bf16.msra.mxu0 0
      %3178 = vmatpush.bf16.msra.mxu0 %v3173
      %3179 = vmatpush.bf16.msra.mxu0 %v3116
      %3180 = vmatpush.bf16.msra.mxu0 %v3115
      %3181 = vmatpush.bf16.msra.mxu0 %v3114
      %3182 = vmatpush.bf16.msra.mxu0 %v3113
      %3183 = vmatmul.bf16.gmra.mxu0 %v3124
      %v3184 = vpop.f32.mrf.mxu0
      %v3185 = vadd.f32 0.0, %v3184
      %v3186 = vpop.f32.mrf.mxu0
      %v3187 = vadd.f32 0.0, %v3186
      %3188 = vmatmul.bf16.gmra.mxu0 %v3127
      %v3189 = vpop.f32.mrf.mxu0
      %v3190 = vadd.f32 0.0, %v3189
      %v3191 = vpop.f32.mrf.mxu0
      %v3192 = vadd.f32 0.0, %v3191
      %3193 = vmatmul.bf16.gmra.mxu0 %v3130
      %v3194 = vpop.f32.mrf.mxu0
      %v3195 = vadd.f32 0.0, %v3194
      %v3196 = vpop.f32.mrf.mxu0
      %v3197 = vadd.f32 0.0, %v3196
      %3198 = vmatmul.bf16.gmra.mxu0 %v3133
      %v3199 = vpop.f32.mrf.mxu0
      %v3200 = vadd.f32 0.0, %v3199
      %v3201 = vpop.f32.mrf.mxu0
      %v3202 = vadd.f32 0.0, %v3201
      %3203 = vmatmul.bf16.gmra.mxu0 %v3136
      %v3204 = vpop.f32.mrf.mxu0
      %v3205 = vadd.f32 0.0, %v3204
      %v3206 = vpop.f32.mrf.mxu0
      %v3207 = vadd.f32 0.0, %v3206
      %3208 = vmatmul.bf16.gmra.mxu0 %v3139
      %v3209 = vpop.f32.mrf.mxu0
      %v3210 = vadd.f32 0.0, %v3209
      %v3211 = vpop.f32.mrf.mxu0
      %v3212 = vadd.f32 0.0, %v3211
      %3213 = vmatmul.bf16.gmra.mxu0 %v3142
      %v3214 = vpop.f32.mrf.mxu0
      %v3215 = vadd.f32 0.0, %v3214
      %v3216 = vpop.f32.mrf.mxu0
      %v3217 = vadd.f32 0.0, %v3216
      %3218 = vmatmul.bf16.gmra.mxu0 %v3145
      %v3219 = vpop.f32.mrf.mxu0
      %v3220 = vadd.f32 0.0, %v3219
      %v3221 = vpop.f32.mrf.mxu0
      %v3222 = vadd.f32 0.0, %v3221
      %3223 = vmatmul.bf16.gmra.mxu0 %v3148
      %v3224 = vpop.f32.mrf.mxu0
      %v3225 = vadd.f32 0.0, %v3224
      %v3226 = vpop.f32.mrf.mxu0
      %v3227 = vadd.f32 0.0, %v3226
      %3228 = vmatmul.bf16.gmra.mxu0 %v3151
      %v3229 = vpop.f32.mrf.mxu0
      %v3230 = vadd.f32 0.0, %v3229
      %v3231 = vpop.f32.mrf.mxu0
      %v3232 = vadd.f32 0.0, %v3231
      %3233 = vmatmul.bf16.gmra.mxu0 %v3154
      %v3234 = vpop.f32.mrf.mxu0
      %v3235 = vadd.f32 0.0, %v3234
      %v3236 = vpop.f32.mrf.mxu0
      %v3237 = vadd.f32 0.0, %v3236
      %3238 = vmatmul.bf16.gmra.mxu0 %v3157
      %v3239 = vpop.f32.mrf.mxu0
      %v3240 = vadd.f32 0.0, %v3239
      %v3241 = vpop.f32.mrf.mxu0
      %v3242 = vadd.f32 0.0, %v3241
      %3243 = vmatmul.bf16.gmra.mxu0 %v3160
      %v3244 = vpop.f32.mrf.mxu0
      %v3245 = vadd.f32 0.0, %v3244
      %v3246 = vpop.f32.mrf.mxu0
      %v3247 = vadd.f32 0.0, %v3246
      %3248 = vmatmul.bf16.gmra.mxu0 %v3163
      %v3249 = vpop.f32.mrf.mxu0
      %v3250 = vadd.f32 0.0, %v3249
      %v3251 = vpop.f32.mrf.mxu0
      %v3252 = vadd.f32 0.0, %v3251
      %3253 = vmatmul.bf16.gmra.mxu0 %v3166
      %v3254 = vpop.f32.mrf.mxu0
      %v3255 = vadd.f32 0.0, %v3254
      %v3256 = vpop.f32.mrf.mxu0
      %v3257 = vadd.f32 0.0, %v3256
      %3258 = vmatmul.bf16.gmra.mxu0 %v3169
      %v3259 = vpop.f32.mrf.mxu0
      %v3260 = vadd.f32 0.0, %v3259
      %v3261 = vpop.f32.mrf.mxu0
      %v3262 = vadd.f32 0.0, %v3261
      %3263 = vdwg.mxu0
      %v3264 = vsel %vm320, %v3185, 0.0
      %v3265 = vsel %vm320, %v3187, 0.0
      %v3266 = vadd.f32 %v3264, %v3265
      %v3267 = vsel %vm320, %v3190, 0.0
      %v3268 = vadd.f32 %v3266, %v3267
      %v3269 = vsel %vm320, %v3192, 0.0
      %v3270 = vadd.f32 %v3268, %v3269
      %v3271 = vsel %vm320, %v3195, 0.0
      %v3272 = vadd.f32 %v3270, %v3271
      %v3273 = vsel %vm320, %v3197, 0.0
      %v3274 = vadd.f32 %v3272, %v3273
      %v3275 = vsel %vm320, %v3200, 0.0
      %v3276 = vadd.f32 %v3274, %v3275
      %v3277 = vsel %vm320, %v3202, 0.0
      %v3278 = vadd.f32 %v3276, %v3277
      %v3279 = vsel %vm320, %v3205, 0.0
      %v3280 = vadd.f32 %v3278, %v3279
      %v3281 = vsel %vm320, %v3207, 0.0
      %v3282 = vadd.f32 %v3280, %v3281
      %v3283 = vsel %vm320, %v3210, 0.0
      %v3284 = vadd.f32 %v3282, %v3283
      %v3285 = vsel %vm320, %v3212, 0.0
      %v3286 = vadd.f32 %v3284, %v3285
      %v3287 = vsel %vm320, %v3215, 0.0
      %v3288 = vadd.f32 %v3286, %v3287
      %v3289 = vsel %vm320, %v3217, 0.0
      %v3290 = vadd.f32 %v3288, %v3289
      %v3291 = vsel %vm320, %v3220, 0.0
      %v3292 = vadd.f32 %v3290, %v3291
      %v3293 = vsel %vm320, %v3222, 0.0
      %v3294 = vadd.f32 %v3292, %v3293
      %v3295 = vsel %vm320, %v3225, 0.0
      %v3296 = vadd.f32 %v3294, %v3295
      %v3297 = vsel %vm320, %v3227, 0.0
      %v3298 = vadd.f32 %v3296, %v3297
      %v3299 = vsel %vm320, %v3230, 0.0
      %v3300 = vadd.f32 %v3298, %v3299
      %v3301 = vsel %vm320, %v3232, 0.0
      %v3302 = vadd.f32 %v3300, %v3301
      %v3303 = vsel %vm320, %v3235, 0.0
      %v3304 = vadd.f32 %v3302, %v3303
      %v3305 = vsel %vm320, %v3237, 0.0
      %v3306 = vadd.f32 %v3304, %v3305
      %v3307 = vsel %vm320, %v3240, 0.0
      %v3308 = vadd.f32 %v3306, %v3307
      %v3309 = vsel %vm320, %v3242, 0.0
      %v3310 = vadd.f32 %v3308, %v3309
      %v3311 = vsel %vm320, %v3245, 0.0
      %v3312 = vadd.f32 %v3310, %v3311
      %v3313 = vsel %vm320, %v3247, 0.0
      %v3314 = vadd.f32 %v3312, %v3313
      %v3315 = vsel %vm320, %v3250, 0.0
      %v3316 = vadd.f32 %v3314, %v3315
      %v3317 = vsel %vm320, %v3252, 0.0
      %v3318 = vadd.f32 %v3316, %v3317
      %v3319 = vsel %vm320, %v3255, 0.0
      %v3320 = vadd.f32 %v3318, %v3319
      %v3321 = vsel %vm320, %v3257, 0.0
      %v3322 = vadd.f32 %v3320, %v3321
      %v3323 = vsel %vm320, %v3260, 0.0
      %v3324 = vadd.f32 %v3322, %v3323
      %v3325 = vsel %vm320, %v3262, 0.0
      %v3326 = vadd.f32 %v3324, %v3325
      %v3327 = vrot.slane %v3326, 4
      %v3328 = vadd.f32 %v3326, %v3327
      %v3329 = vrot.slane %v3328, 2
      %v3330 = vadd.f32 %v3328, %v3329
      %v3331 = vrot.slane %v3330, 1
      %v3332 = vadd.f32 %v3330, %v3331
      %v3333 = vrcp.pop 256.0
      %v3334 = vmul.f32 256.0, %v3333
      %v3335 = vsub.f32 1.0, %v3334
      %v3336 = vmul.f32 %v3333, %v3335
      %v3337 = vadd.f32 %v3333, %v3336
      %vm3338 = vweird.f32 %v3333
      %v3339 = vsel %vm3338, %v3333, %v3337
      %v3340 = vmul.f32 %v3332, %v3339
      %v3341 = vsub.f32 %v3185, %v3340
      %v3342 = vsub.f32 %v3187, %v3340
      %v3343 = vsub.f32 %v3190, %v3340
      %v3344 = vsub.f32 %v3192, %v3340
      %v3345 = vsub.f32 %v3195, %v3340
      %v3346 = vsub.f32 %v3197, %v3340
      %v3347 = vsub.f32 %v3200, %v3340
      %v3348 = vsub.f32 %v3202, %v3340
      %v3349 = vsub.f32 %v3205, %v3340
      %v3350 = vsub.f32 %v3207, %v3340
      %v3351 = vsub.f32 %v3210, %v3340
      %v3352 = vsub.f32 %v3212, %v3340
      %v3353 = vsub.f32 %v3215, %v3340
      %v3354 = vsub.f32 %v3217, %v3340
      %v3355 = vsub.f32 %v3220, %v3340
      %v3356 = vsub.f32 %v3222, %v3340
      %v3357 = vsub.f32 %v3225, %v3340
      %v3358 = vsub.f32 %v3227, %v3340
      %v3359 = vsub.f32 %v3230, %v3340
      %v3360 = vsub.f32 %v3232, %v3340
      %v3361 = vsub.f32 %v3235, %v3340
      %v3362 = vsub.f32 %v3237, %v3340
      %v3363 = vsub.f32 %v3240, %v3340
      %v3364 = vsub.f32 %v3242, %v3340
      %v3365 = vsub.f32 %v3245, %v3340
      %v3366 = vsub.f32 %v3247, %v3340
      %v3367 = vsub.f32 %v3250, %v3340
      %v3368 = vsub.f32 %v3252, %v3340
      %v3369 = vsub.f32 %v3255, %v3340
      %v3370 = vsub.f32 %v3257, %v3340
      %v3371 = vsub.f32 %v3260, %v3340
      %v3372 = vsub.f32 %v3262, %v3340
      %v3373 = vmul.f32 %v3341, %v3341
      %v3374 = vmul.f32 %v3342, %v3342
      %v3375 = vmul.f32 %v3343, %v3343
      %v3376 = vmul.f32 %v3344, %v3344
      %v3377 = vmul.f32 %v3345, %v3345
      %v3378 = vmul.f32 %v3346, %v3346
      %v3379 = vmul.f32 %v3347, %v3347
      %v3380 = vmul.f32 %v3348, %v3348
      %v3381 = vmul.f32 %v3349, %v3349
      %v3382 = vmul.f32 %v3350, %v3350
      %v3383 = vmul.f32 %v3351, %v3351
      %v3384 = vmul.f32 %v3352, %v3352
      %v3385 = vmul.f32 %v3353, %v3353
      %v3386 = vmul.f32 %v3354, %v3354
      %v3387 = vmul.f32 %v3355, %v3355
      %v3388 = vmul.f32 %v3356, %v3356
      %v3389 = vmul.f32 %v3357, %v3357
      %v3390 = vmul.f32 %v3358, %v3358
      %v3391 = vmul.f32 %v3359, %v3359
      %v3392 = vmul.f32 %v3360, %v3360
      %v3393 = vmul.f32 %v3361, %v3361
      %v3394 = vmul.f32 %v3362, %v3362
      %v3395 = vmul.f32 %v3363, %v3363
      %v3396 = vmul.f32 %v3364, %v3364
      %v3397 = vmul.f32 %v3365, %v3365
      %v3398 = vmul.f32 %v3366, %v3366
      %v3399 = vmul.f32 %v3367, %v3367
      %v3400 = vmul.f32 %v3368, %v3368
      %v3401 = vmul.f32 %v3369, %v3369
      %v3402 = vmul.f32 %v3370, %v3370
      %v3403 = vmul.f32 %v3371, %v3371
      %v3404 = vmul.f32 %v3372, %v3372
      %v3405 = vsel %vm320, %v3373, 0.0
      %v3406 = vsel %vm320, %v3374, 0.0
      %v3407 = vadd.f32 %v3405, %v3406
      %v3408 = vsel %vm320, %v3375, 0.0
      %v3409 = vadd.f32 %v3407, %v3408
      %v3410 = vsel %vm320, %v3376, 0.0
      %v3411 = vadd.f32 %v3409, %v3410
      %v3412 = vsel %vm320, %v3377, 0.0
      %v3413 = vadd.f32 %v3411, %v3412
      %v3414 = vsel %vm320, %v3378, 0.0
      %v3415 = vadd.f32 %v3413, %v3414
      %v3416 = vsel %vm320, %v3379, 0.0
      %v3417 = vadd.f32 %v3415, %v3416
      %v3418 = vsel %vm320, %v3380, 0.0
      %v3419 = vadd.f32 %v3417, %v3418
      %v3420 = vsel %vm320, %v3381, 0.0
      %v3421 = vadd.f32 %v3419, %v3420
      %v3422 = vsel %vm320, %v3382, 0.0
      %v3423 = vadd.f32 %v3421, %v3422
      %v3424 = vsel %vm320, %v3383, 0.0
      %v3425 = vadd.f32 %v3423, %v3424
      %v3426 = vsel %vm320, %v3384, 0.0
      %v3427 = vadd.f32 %v3425, %v3426
      %v3428 = vsel %vm320, %v3385, 0.0
      %v3429 = vadd.f32 %v3427, %v3428
      %v3430 = vsel %vm320, %v3386, 0.0
      %v3431 = vadd.f32 %v3429, %v3430
      %v3432 = vsel %vm320, %v3387, 0.0
      %v3433 = vadd.f32 %v3431, %v3432
      %v3434 = vsel %vm320, %v3388, 0.0
      %v3435 = vadd.f32 %v3433, %v3434
      %v3436 = vsel %vm320, %v3389, 0.0
      %v3437 = vadd.f32 %v3435, %v3436
      %v3438 = vsel %vm320, %v3390, 0.0
      %v3439 = vadd.f32 %v3437, %v3438
      %v3440 = vsel %vm320, %v3391, 0.0
      %v3441 = vadd.f32 %v3439, %v3440
      %v3442 = vsel %vm320, %v3392, 0.0
      %v3443 = vadd.f32 %v3441, %v3442
      %v3444 = vsel %vm320, %v3393, 0.0
      %v3445 = vadd.f32 %v3443, %v3444
      %v3446 = vsel %vm320, %v3394, 0.0
      %v3447 = vadd.f32 %v3445, %v3446
      %v3448 = vsel %vm320, %v3395, 0.0
      %v3449 = vadd.f32 %v3447, %v3448
      %v3450 = vsel %vm320, %v3396, 0.0
      %v3451 = vadd.f32 %v3449, %v3450
      %v3452 = vsel %vm320, %v3397, 0.0
      %v3453 = vadd.f32 %v3451, %v3452
      %v3454 = vsel %vm320, %v3398, 0.0
      %v3455 = vadd.f32 %v3453, %v3454
      %v3456 = vsel %vm320, %v3399, 0.0
      %v3457 = vadd.f32 %v3455, %v3456
      %v3458 = vsel %vm320, %v3400, 0.0
      %v3459 = vadd.f32 %v3457, %v3458
      %v3460 = vsel %vm320, %v3401, 0.0
      %v3461 = vadd.f32 %v3459, %v3460
      %v3462 = vsel %vm320, %v3402, 0.0
      %v3463 = vadd.f32 %v3461, %v3462
      %v3464 = vsel %vm320, %v3403, 0.0
      %v3465 = vadd.f32 %v3463, %v3464
      %v3466 = vsel %vm320, %v3404, 0.0
      %v3467 = vadd.f32 %v3465, %v3466
      %v3468 = vrot.slane %v3467, 4
      %v3469 = vadd.f32 %v3467, %v3468
      %v3470 = vrot.slane %v3469, 2
      %v3471 = vadd.f32 %v3469, %v3470
      %v3472 = vrot.slane %v3471, 1
      %v3473 = vadd.f32 %v3471, %v3472
      %v3474 = vmul.f32 %v3473, %v3339
      %v3475 = vadd.f32 %v3474, 1e-05
      %v3476 = vrsqrt.pop %v3475
      %v3477 = vmul.f32 %v3476, %v3475
      %v3478 = vmul.f32 %v3477, %v3476
      %v3479 = vmul.f32 0.5, %v3478
      %v3480 = vsub.f32 1.5, %v3479
      %v3481 = vmul.f32 %v3476, %v3480
      %vm3482 = vweird.f32 %v3475
      %vm3483 = vweird.f32 %v3476
      %vm3484 = vmor %vm3482, %vm3483
      %v3485 = vsel %vm3484, %v3476, %v3481
      %v3486 = vmul.f32 %v3341, %v3485
      %v3487 = vmul.f32 %v3342, %v3485
      %v3488 = vmul.f32 %v3343, %v3485
      %v3489 = vmul.f32 %v3344, %v3485
      %v3490 = vmul.f32 %v3345, %v3485
      %v3491 = vmul.f32 %v3346, %v3485
      %v3492 = vmul.f32 %v3347, %v3485
      %v3493 = vmul.f32 %v3348, %v3485
      %v3494 = vmul.f32 %v3349, %v3485
      %v3495 = vmul.f32 %v3350, %v3485
      %v3496 = vmul.f32 %v3351, %v3485
      %v3497 = vmul.f32 %v3352, %v3485
      %v3498 = vmul.f32 %v3353, %v3485
      %v3499 = vmul.f32 %v3354, %v3485
      %v3500 = vmul.f32 %v3355, %v3485
      %v3501 = vmul.f32 %v3356, %v3485
      %v3502 = vmul.f32 %v3357, %v3485
      %v3503 = vmul.f32 %v3358, %v3485
      %v3504 = vmul.f32 %v3359, %v3485
      %v3505 = vmul.f32 %v3360, %v3485
      %v3506 = vmul.f32 %v3361, %v3485
      %v3507 = vmul.f32 %v3362, %v3485
      %v3508 = vmul.f32 %v3363, %v3485
      %v3509 = vmul.f32 %v3364, %v3485
      %v3510 = vmul.f32 %v3365, %v3485
      %v3511 = vmul.f32 %v3366, %v3485
      %v3512 = vmul.f32 %v3367, %v3485
      %v3513 = vmul.f32 %v3368, %v3485
      %v3514 = vmul.f32 %v3369, %v3485
      %v3515 = vmul.f32 %v3370, %v3485
      %v3516 = vmul.f32 %v3371, %v3485
      %v3517 = vmul.f32 %v3372, %v3485
      %v3518 = vperm.slane %v273, 0
      %v3519 = vmul.f32 %v3486, %v3518
      %v3520 = vmul.f32 %v3487, %v3518
      %v3521 = vmul.f32 %v3488, %v3518
      %v3522 = vmul.f32 %v3489, %v3518
      %v3523 = vmul.f32 %v3490, %v3518
      %v3524 = vmul.f32 %v3491, %v3518
      %v3525 = vmul.f32 %v3492, %v3518
      %v3526 = vmul.f32 %v3493, %v3518
      %v3527 = vmul.f32 %v3494, %v3518
      %v3528 = vmul.f32 %v3495, %v3518
      %v3529 = vmul.f32 %v3496, %v3518
      %v3530 = vmul.f32 %v3497, %v3518
      %v3531 = vmul.f32 %v3498, %v3518
      %v3532 = vmul.f32 %v3499, %v3518
      %v3533 = vmul.f32 %v3500, %v3518
      %v3534 = vmul.f32 %v3501, %v3518
      %v3535 = vmul.f32 %v3502, %v3518
      %v3536 = vmul.f32 %v3503, %v3518
      %v3537 = vmul.f32 %v3504, %v3518
      %v3538 = vmul.f32 %v3505, %v3518
      %v3539 = vmul.f32 %v3506, %v3518
      %v3540 = vmul.f32 %v3507, %v3518
      %v3541 = vmul.f32 %v3508, %v3518
      %v3542 = vmul.f32 %v3509, %v3518
      %v3543 = vmul.f32 %v3510, %v3518
      %v3544 = vmul.f32 %v3511, %v3518
      %v3545 = vmul.f32 %v3512, %v3518
      %v3546 = vmul.f32 %v3513, %v3518
      %v3547 = vmul.f32 %v3514, %v3518
      %v3548 = vmul.f32 %v3515, %v3518
      %v3549 = vmul.f32 %v3516, %v3518
      %v3550 = vmul.f32 %v3517, %v3518
      %v3551 = vperm.slane %v273, 1
      %v3552 = vadd.f32 %v3519, %v3551
      %v3553 = vadd.f32 %v3520, %v3551
      %v3554 = vadd.f32 %v3521, %v3551
      %v3555 = vadd.f32 %v3522, %v3551
      %v3556 = vadd.f32 %v3523, %v3551
      %v3557 = vadd.f32 %v3524, %v3551
      %v3558 = vadd.f32 %v3525, %v3551
      %v3559 = vadd.f32 %v3526, %v3551
      %v3560 = vadd.f32 %v3527, %v3551
      %v3561 = vadd.f32 %v3528, %v3551
      %v3562 = vadd.f32 %v3529, %v3551
      %v3563 = vadd.f32 %v3530, %v3551
      %v3564 = vadd.f32 %v3531, %v3551
      %v3565 = vadd.f32 %v3532, %v3551
      %v3566 = vadd.f32 %v3533, %v3551
      %v3567 = vadd.f32 %v3534, %v3551
      %v3568 = vadd.f32 %v3535, %v3551
      %v3569 = vadd.f32 %v3536, %v3551
      %v3570 = vadd.f32 %v3537, %v3551
      %v3571 = vadd.f32 %v3538, %v3551
      %v3572 = vadd.f32 %v3539, %v3551
      %v3573 = vadd.f32 %v3540, %v3551
      %v3574 = vadd.f32 %v3541, %v3551
      %v3575 = vadd.f32 %v3542, %v3551
      %v3576 = vadd.f32 %v3543, %v3551
      %v3577 = vadd.f32 %v3544, %v3551
      %v3578 = vadd.f32 %v3545, %v3551
      %v3579 = vadd.f32 %v3546, %v3551
      %v3580 = vadd.f32 %v3547, %v3551
      %v3581 = vadd.f32 %v3548, %v3551
      %v3582 = vadd.f32 %v3549, %v3551
      %v3583 = vadd.f32 %v3550, %v3551
      %vm3584 = vcmp.ge.f32.partialorder %v3552, 0.0
      %vm3585 = vcmp.ge.f32.partialorder %v3553, 0.0
      %vm3586 = vcmp.ge.f32.partialorder %v3554, 0.0
      %vm3587 = vcmp.ge.f32.partialorder %v3555, 0.0
      %vm3588 = vcmp.ge.f32.partialorder %v3556, 0.0
      %vm3589 = vcmp.ge.f32.partialorder %v3557, 0.0
      %vm3590 = vcmp.ge.f32.partialorder %v3558, 0.0
      %vm3591 = vcmp.ge.f32.partialorder %v3559, 0.0
      %vm3592 = vcmp.ge.f32.partialorder %v3560, 0.0
      %vm3593 = vcmp.ge.f32.partialorder %v3561, 0.0
      %vm3594 = vcmp.ge.f32.partialorder %v3562, 0.0
      %vm3595 = vcmp.ge.f32.partialorder %v3563, 0.0
      %vm3596 = vcmp.ge.f32.partialorder %v3564, 0.0
      %vm3597 = vcmp.ge.f32.partialorder %v3565, 0.0
      %vm3598 = vcmp.ge.f32.partialorder %v3566, 0.0
      %vm3599 = vcmp.ge.f32.partialorder %v3567, 0.0
      %vm3600 = vcmp.ge.f32.partialorder %v3568, 0.0
      %vm3601 = vcmp.ge.f32.partialorder %v3569, 0.0
      %vm3602 = vcmp.ge.f32.partialorder %v3570, 0.0
      %vm3603 = vcmp.ge.f32.partialorder %v3571, 0.0
      %vm3604 = vcmp.ge.f32.partialorder %v3572, 0.0
      %vm3605 = vcmp.ge.f32.partialorder %v3573, 0.0
      %vm3606 = vcmp.ge.f32.partialorder %v3574, 0.0
      %vm3607 = vcmp.ge.f32.partialorder %v3575, 0.0
      %vm3608 = vcmp.ge.f32.partialorder %v3576, 0.0
      %vm3609 = vcmp.ge.f32.partialorder %v3577, 0.0
      %vm3610 = vcmp.ge.f32.partialorder %v3578, 0.0
      %vm3611 = vcmp.ge.f32.partialorder %v3579, 0.0
      %vm3612 = vcmp.ge.f32.partialorder %v3580, 0.0
      %vm3613 = vcmp.ge.f32.partialorder %v3581, 0.0
      %vm3614 = vcmp.ge.f32.partialorder %v3582, 0.0
      %vm3615 = vcmp.ge.f32.partialorder %v3583, 0.0
      %v3616 = vmul.f32 %v3552, 0.01
      %v3617 = vmul.f32 %v3553, 0.01
      %v3618 = vmul.f32 %v3554, 0.01
      %v3619 = vmul.f32 %v3555, 0.01
      %v3620 = vmul.f32 %v3556, 0.01
      %v3621 = vmul.f32 %v3557, 0.01
      %v3622 = vmul.f32 %v3558, 0.01
      %v3623 = vmul.f32 %v3559, 0.01
      %v3624 = vmul.f32 %v3560, 0.01
      %v3625 = vmul.f32 %v3561, 0.01
      %v3626 = vmul.f32 %v3562, 0.01
      %v3627 = vmul.f32 %v3563, 0.01
      %v3628 = vmul.f32 %v3564, 0.01
      %v3629 = vmul.f32 %v3565, 0.01
      %v3630 = vmul.f32 %v3566, 0.01
      %v3631 = vmul.f32 %v3567, 0.01
      %v3632 = vmul.f32 %v3568, 0.01
      %v3633 = vmul.f32 %v3569, 0.01
      %v3634 = vmul.f32 %v3570, 0.01
      %v3635 = vmul.f32 %v3571, 0.01
      %v3636 = vmul.f32 %v3572, 0.01
      %v3637 = vmul.f32 %v3573, 0.01
      %v3638 = vmul.f32 %v3574, 0.01
      %v3639 = vmul.f32 %v3575, 0.01
      %v3640 = vmul.f32 %v3576, 0.01
      %v3641 = vmul.f32 %v3577, 0.01
      %v3642 = vmul.f32 %v3578, 0.01
      %v3643 = vmul.f32 %v3579, 0.01
      %v3644 = vmul.f32 %v3580, 0.01
      %v3645 = vmul.f32 %v3581, 0.01
      %v3646 = vmul.f32 %v3582, 0.01
      %v3647 = vmul.f32 %v3583, 0.01
      %v3648 = vsel %vm3584, %v3552, %v3616
      %v3649 = vsel %vm3585, %v3553, %v3617
      %v3650 = vsel %vm3586, %v3554, %v3618
      %v3651 = vsel %vm3587, %v3555, %v3619
      %v3652 = vsel %vm3588, %v3556, %v3620
      %v3653 = vsel %vm3589, %v3557, %v3621
      %v3654 = vsel %vm3590, %v3558, %v3622
      %v3655 = vsel %vm3591, %v3559, %v3623
      %v3656 = vsel %vm3592, %v3560, %v3624
      %v3657 = vsel %vm3593, %v3561, %v3625
      %v3658 = vsel %vm3594, %v3562, %v3626
      %v3659 = vsel %vm3595, %v3563, %v3627
      %v3660 = vsel %vm3596, %v3564, %v3628
      %v3661 = vsel %vm3597, %v3565, %v3629
      %v3662 = vsel %vm3598, %v3566, %v3630
      %v3663 = vsel %vm3599, %v3567, %v3631
      %v3664 = vsel %vm3600, %v3568, %v3632
      %v3665 = vsel %vm3601, %v3569, %v3633
      %v3666 = vsel %vm3602, %v3570, %v3634
      %v3667 = vsel %vm3603, %v3571, %v3635
      %v3668 = vsel %vm3604, %v3572, %v3636
      %v3669 = vsel %vm3605, %v3573, %v3637
      %v3670 = vsel %vm3606, %v3574, %v3638
      %v3671 = vsel %vm3607, %v3575, %v3639
      %v3672 = vsel %vm3608, %v3576, %v3640
      %v3673 = vsel %vm3609, %v3577, %v3641
      %v3674 = vsel %vm3610, %v3578, %v3642
      %v3675 = vsel %vm3611, %v3579, %v3643
      %v3676 = vsel %vm3612, %v3580, %v3644
      %v3677 = vsel %vm3613, %v3581, %v3645
      %v3678 = vsel %vm3614, %v3582, %v3646
      %v3679 = vsel %vm3615, %v3583, %v3647
      %vm3680 = vcmask 64544
      %v3681 = vsel %vm3680, %v3185, 0.0
      %v3682 = vsel %vm3680, %v3187, 0.0
      %v3683 = vadd.f32 %v3681, %v3682
      %v3684 = vsel %vm3680, %v3190, 0.0
      %v3685 = vadd.f32 %v3683, %v3684
      %v3686 = vsel %vm3680, %v3192, 0.0
      %v3687 = vadd.f32 %v3685, %v3686
      %v3688 = vsel %vm3680, %v3195, 0.0
      %v3689 = vadd.f32 %v3687, %v3688
      %v3690 = vsel %vm3680, %v3197, 0.0
      %v3691 = vadd.f32 %v3689, %v3690
      %v3692 = vsel %vm3680, %v3200, 0.0
      %v3693 = vadd.f32 %v3691, %v3692
      %v3694 = vsel %vm3680, %v3202, 0.0
      %v3695 = vadd.f32 %v3693, %v3694
      %v3696 = vsel %vm3680, %v3205, 0.0
      %v3697 = vadd.f32 %v3695, %v3696
      %v3698 = vsel %vm3680, %v3207, 0.0
      %v3699 = vadd.f32 %v3697, %v3698
      %v3700 = vsel %vm3680, %v3210, 0.0
      %v3701 = vadd.f32 %v3699, %v3700
      %v3702 = vsel %vm3680, %v3212, 0.0
      %v3703 = vadd.f32 %v3701, %v3702
      %v3704 = vsel %vm3680, %v3215, 0.0
      %v3705 = vadd.f32 %v3703, %v3704
      %v3706 = vsel %vm3680, %v3217, 0.0
      %v3707 = vadd.f32 %v3705, %v3706
      %v3708 = vsel %vm3680, %v3220, 0.0
      %v3709 = vadd.f32 %v3707, %v3708
      %v3710 = vsel %vm3680, %v3222, 0.0
      %v3711 = vadd.f32 %v3709, %v3710
      %v3712 = vsel %vm3680, %v3225, 0.0
      %v3713 = vadd.f32 %v3711, %v3712
      %v3714 = vsel %vm3680, %v3227, 0.0
      %v3715 = vadd.f32 %v3713, %v3714
      %v3716 = vsel %vm3680, %v3230, 0.0
      %v3717 = vadd.f32 %v3715, %v3716
      %v3718 = vsel %vm3680, %v3232, 0.0
      %v3719 = vadd.f32 %v3717, %v3718
      %v3720 = vsel %vm3680, %v3235, 0.0
      %v3721 = vadd.f32 %v3719, %v3720
      %v3722 = vsel %vm3680, %v3237, 0.0
      %v3723 = vadd.f32 %v3721, %v3722
      %v3724 = vsel %vm3680, %v3240, 0.0
      %v3725 = vadd.f32 %v3723, %v3724
      %v3726 = vsel %vm3680, %v3242, 0.0
      %v3727 = vadd.f32 %v3725, %v3726
      %v3728 = vsel %vm3680, %v3245, 0.0
      %v3729 = vadd.f32 %v3727, %v3728
      %v3730 = vsel %vm3680, %v3247, 0.0
      %v3731 = vadd.f32 %v3729, %v3730
      %v3732 = vsel %vm3680, %v3250, 0.0
      %v3733 = vadd.f32 %v3731, %v3732
      %v3734 = vsel %vm3680, %v3252, 0.0
      %v3735 = vadd.f32 %v3733, %v3734
      %v3736 = vsel %vm3680, %v3255, 0.0
      %v3737 = vadd.f32 %v3735, %v3736
      %v3738 = vsel %vm3680, %v3257, 0.0
      %v3739 = vadd.f32 %v3737, %v3738
      %v3740 = vsel %vm3680, %v3260, 0.0
      %v3741 = vadd.f32 %v3739, %v3740
      %v3742 = vsel %vm3680, %v3262, 0.0
      %v3743 = vadd.f32 %v3741, %v3742
      %v3744 = vrot.slane %v3743, 4
      %v3745 = vadd.f32 %v3743, %v3744
      %v3746 = vrot.slane %v3745, 2
      %v3747 = vadd.f32 %v3745, %v3746
      %v3748 = vrot.slane %v3747, 1
      %v3749 = vadd.f32 %v3747, %v3748
      %v3750 = vmul.f32 %v3749, %v3339
      %v3751 = vsub.f32 %v3185, %v3750
      %v3752 = vsub.f32 %v3187, %v3750
      %v3753 = vsub.f32 %v3190, %v3750
      %v3754 = vsub.f32 %v3192, %v3750
      %v3755 = vsub.f32 %v3195, %v3750
      %v3756 = vsub.f32 %v3197, %v3750
      %v3757 = vsub.f32 %v3200, %v3750
      %v3758 = vsub.f32 %v3202, %v3750
      %v3759 = vsub.f32 %v3205, %v3750
      %v3760 = vsub.f32 %v3207, %v3750
      %v3761 = vsub.f32 %v3210, %v3750
      %v3762 = vsub.f32 %v3212, %v3750
      %v3763 = vsub.f32 %v3215, %v3750
      %v3764 = vsub.f32 %v3217, %v3750
      %v3765 = vsub.f32 %v3220, %v3750
      %v3766 = vsub.f32 %v3222, %v3750
      %v3767 = vsub.f32 %v3225, %v3750
      %v3768 = vsub.f32 %v3227, %v3750
      %v3769 = vsub.f32 %v3230, %v3750
      %v3770 = vsub.f32 %v3232, %v3750
      %v3771 = vsub.f32 %v3235, %v3750
      %v3772 = vsub.f32 %v3237, %v3750
      %v3773 = vsub.f32 %v3240, %v3750
      %v3774 = vsub.f32 %v3242, %v3750
      %v3775 = vsub.f32 %v3245, %v3750
      %v3776 = vsub.f32 %v3247, %v3750
      %v3777 = vsub.f32 %v3250, %v3750
      %v3778 = vsub.f32 %v3252, %v3750
      %v3779 = vsub.f32 %v3255, %v3750
      %v3780 = vsub.f32 %v3257, %v3750
      %v3781 = vsub.f32 %v3260, %v3750
      %v3782 = vsub.f32 %v3262, %v3750
      %v3783 = vmul.f32 %v3751, %v3751
      %v3784 = vmul.f32 %v3752, %v3752
      %v3785 = vmul.f32 %v3753, %v3753
      %v3786 = vmul.f32 %v3754, %v3754
      %v3787 = vmul.f32 %v3755, %v3755
      %v3788 = vmul.f32 %v3756, %v3756
      %v3789 = vmul.f32 %v3757, %v3757
      %v3790 = vmul.f32 %v3758, %v3758
      %v3791 = vmul.f32 %v3759, %v3759
      %v3792 = vmul.f32 %v3760, %v3760
      %v3793 = vmul.f32 %v3761, %v3761
      %v3794 = vmul.f32 %v3762, %v3762
      %v3795 = vmul.f32 %v3763, %v3763
      %v3796 = vmul.f32 %v3764, %v3764
      %v3797 = vmul.f32 %v3765, %v3765
      %v3798 = vmul.f32 %v3766, %v3766
      %v3799 = vmul.f32 %v3767, %v3767
      %v3800 = vmul.f32 %v3768, %v3768
      %v3801 = vmul.f32 %v3769, %v3769
      %v3802 = vmul.f32 %v3770, %v3770
      %v3803 = vmul.f32 %v3771, %v3771
      %v3804 = vmul.f32 %v3772, %v3772
      %v3805 = vmul.f32 %v3773, %v3773
      %v3806 = vmul.f32 %v3774, %v3774
      %v3807 = vmul.f32 %v3775, %v3775
      %v3808 = vmul.f32 %v3776, %v3776
      %v3809 = vmul.f32 %v3777, %v3777
      %v3810 = vmul.f32 %v3778, %v3778
      %v3811 = vmul.f32 %v3779, %v3779
      %v3812 = vmul.f32 %v3780, %v3780
      %v3813 = vmul.f32 %v3781, %v3781
      %v3814 = vmul.f32 %v3782, %v3782
      %v3815 = vsel %vm3680, %v3783, 0.0
      %v3816 = vsel %vm3680, %v3784, 0.0
      %v3817 = vadd.f32 %v3815, %v3816
      %v3818 = vsel %vm3680, %v3785, 0.0
      %v3819 = vadd.f32 %v3817, %v3818
      %v3820 = vsel %vm3680, %v3786, 0.0
      %v3821 = vadd.f32 %v3819, %v3820
      %v3822 = vsel %vm3680, %v3787, 0.0
      %v3823 = vadd.f32 %v3821, %v3822
      %v3824 = vsel %vm3680, %v3788, 0.0
      %v3825 = vadd.f32 %v3823, %v3824
      %v3826 = vsel %vm3680, %v3789, 0.0
      %v3827 = vadd.f32 %v3825, %v3826
      %v3828 = vsel %vm3680, %v3790, 0.0
      %v3829 = vadd.f32 %v3827, %v3828
      %v3830 = vsel %vm3680, %v3791, 0.0
      %v3831 = vadd.f32 %v3829, %v3830
      %v3832 = vsel %vm3680, %v3792, 0.0
      %v3833 = vadd.f32 %v3831, %v3832
      %v3834 = vsel %vm3680, %v3793, 0.0
      %v3835 = vadd.f32 %v3833, %v3834
      %v3836 = vsel %vm3680, %v3794, 0.0
      %v3837 = vadd.f32 %v3835, %v3836
      %v3838 = vsel %vm3680, %v3795, 0.0
      %v3839 = vadd.f32 %v3837, %v3838
      %v3840 = vsel %vm3680, %v3796, 0.0
      %v3841 = vadd.f32 %v3839, %v3840
      %v3842 = vsel %vm3680, %v3797, 0.0
      %v3843 = vadd.f32 %v3841, %v3842
      %v3844 = vsel %vm3680, %v3798, 0.0
      %v3845 = vadd.f32 %v3843, %v3844
      %v3846 = vsel %vm3680, %v3799, 0.0
      %v3847 = vadd.f32 %v3845, %v3846
      %v3848 = vsel %vm3680, %v3800, 0.0
      %v3849 = vadd.f32 %v3847, %v3848
      %v3850 = vsel %vm3680, %v3801, 0.0
      %v3851 = vadd.f32 %v3849, %v3850
      %v3852 = vsel %vm3680, %v3802, 0.0
      %v3853 = vadd.f32 %v3851, %v3852
      %v3854 = vsel %vm3680, %v3803, 0.0
      %v3855 = vadd.f32 %v3853, %v3854
      %v3856 = vsel %vm3680, %v3804, 0.0
      %v3857 = vadd.f32 %v3855, %v3856
      %v3858 = vsel %vm3680, %v3805, 0.0
      %v3859 = vadd.f32 %v3857, %v3858
      %v3860 = vsel %vm3680, %v3806, 0.0
      %v3861 = vadd.f32 %v3859, %v3860
      %v3862 = vsel %vm3680, %v3807, 0.0
      %v3863 = vadd.f32 %v3861, %v3862
      %v3864 = vsel %vm3680, %v3808, 0.0
      %v3865 = vadd.f32 %v3863, %v3864
      %v3866 = vsel %vm3680, %v3809, 0.0
      %v3867 = vadd.f32 %v3865, %v3866
      %v3868 = vsel %vm3680, %v3810, 0.0
      %v3869 = vadd.f32 %v3867, %v3868
      %v3870 = vsel %vm3680, %v3811, 0.0
      %v3871 = vadd.f32 %v3869, %v3870
      %v3872 = vsel %vm3680, %v3812, 0.0
      %v3873 = vadd.f32 %v3871, %v3872
      %v3874 = vsel %vm3680, %v3813, 0.0
      %v3875 = vadd.f32 %v3873, %v3874
      %v3876 = vsel %vm3680, %v3814, 0.0
      %v3877 = vadd.f32 %v3875, %v3876
      %v3878 = vrot.slane %v3877, 4
      %v3879 = vadd.f32 %v3877, %v3878
      %v3880 = vrot.slane %v3879, 2
      %v3881 = vadd.f32 %v3879, %v3880
      %v3882 = vrot.slane %v3881, 1
      %v3883 = vadd.f32 %v3881, %v3882
      %v3884 = vmul.f32 %v3883, %v3339
      %v3885 = vadd.f32 %v3884, 1e-05
      %v3886 = vrsqrt.pop %v3885
      %v3887 = vmul.f32 %v3886, %v3885
      %v3888 = vmul.f32 %v3887, %v3886
      %v3889 = vmul.f32 0.5, %v3888
      %v3890 = vsub.f32 1.5, %v3889
      %v3891 = vmul.f32 %v3886, %v3890
      %vm3892 = vweird.f32 %v3885
      %vm3893 = vweird.f32 %v3886
      %vm3894 = vmor %vm3892, %vm3893
      %v3895 = vsel %vm3894, %v3886, %v3891
      %v3896 = vmul.f32 %v3751, %v3895
      %v3897 = vmul.f32 %v3752, %v3895
      %v3898 = vmul.f32 %v3753, %v3895
      %v3899 = vmul.f32 %v3754, %v3895
      %v3900 = vmul.f32 %v3755, %v3895
      %v3901 = vmul.f32 %v3756, %v3895
      %v3902 = vmul.f32 %v3757, %v3895
      %v3903 = vmul.f32 %v3758, %v3895
      %v3904 = vmul.f32 %v3759, %v3895
      %v3905 = vmul.f32 %v3760, %v3895
      %v3906 = vmul.f32 %v3761, %v3895
      %v3907 = vmul.f32 %v3762, %v3895
      %v3908 = vmul.f32 %v3763, %v3895
      %v3909 = vmul.f32 %v3764, %v3895
      %v3910 = vmul.f32 %v3765, %v3895
      %v3911 = vmul.f32 %v3766, %v3895
      %v3912 = vmul.f32 %v3767, %v3895
      %v3913 = vmul.f32 %v3768, %v3895
      %v3914 = vmul.f32 %v3769, %v3895
      %v3915 = vmul.f32 %v3770, %v3895
      %v3916 = vmul.f32 %v3771, %v3895
      %v3917 = vmul.f32 %v3772, %v3895
      %v3918 = vmul.f32 %v3773, %v3895
      %v3919 = vmul.f32 %v3774, %v3895
      %v3920 = vmul.f32 %v3775, %v3895
      %v3921 = vmul.f32 %v3776, %v3895
      %v3922 = vmul.f32 %v3777, %v3895
      %v3923 = vmul.f32 %v3778, %v3895
      %v3924 = vmul.f32 %v3779, %v3895
      %v3925 = vmul.f32 %v3780, %v3895
      %v3926 = vmul.f32 %v3781, %v3895
      %v3927 = vmul.f32 %v3782, %v3895
      %v3928 = vperm.slane %v273, 4
      %3930 = vrot.lane.b32.xlu0 %v3928, 4
      %v3931 = vpop.permute.xlu0 %3930
      %v3933 = vmul.f32 %v3896, %v3931
      %v3934 = vmul.f32 %v3897, %v3931
      %v3935 = vmul.f32 %v3898, %v3931
      %v3936 = vmul.f32 %v3899, %v3931
      %v3937 = vmul.f32 %v3900, %v3931
      %v3938 = vmul.f32 %v3901, %v3931
      %v3939 = vmul.f32 %v3902, %v3931
      %v3940 = vmul.f32 %v3903, %v3931
      %v3941 = vmul.f32 %v3904, %v3931
      %v3942 = vmul.f32 %v3905, %v3931
      %v3943 = vmul.f32 %v3906, %v3931
      %v3944 = vmul.f32 %v3907, %v3931
      %v3945 = vmul.f32 %v3908, %v3931
      %v3946 = vmul.f32 %v3909, %v3931
      %v3947 = vmul.f32 %v3910, %v3931
      %v3948 = vmul.f32 %v3911, %v3931
      %v3949 = vmul.f32 %v3912, %v3931
      %v3950 = vmul.f32 %v3913, %v3931
      %v3951 = vmul.f32 %v3914, %v3931
      %v3952 = vmul.f32 %v3915, %v3931
      %v3953 = vmul.f32 %v3916, %v3931
      %v3954 = vmul.f32 %v3917, %v3931
      %v3955 = vmul.f32 %v3918, %v3931
      %v3956 = vmul.f32 %v3919, %v3931
      %v3957 = vmul.f32 %v3920, %v3931
      %v3958 = vmul.f32 %v3921, %v3931
      %v3959 = vmul.f32 %v3922, %v3931
      %v3960 = vmul.f32 %v3923, %v3931
      %v3961 = vmul.f32 %v3924, %v3931
      %v3962 = vmul.f32 %v3925, %v3931
      %v3963 = vmul.f32 %v3926, %v3931
      %v3964 = vmul.f32 %v3927, %v3931
      %v3965 = vperm.slane %v273, 5
      %3967 = vrot.lane.b32.xlu0 %v3965, 4
      %v3968 = vpop.permute.xlu0 %3967
      %v3970 = vadd.f32 %v3933, %v3968
      %v3971 = vadd.f32 %v3934, %v3968
      %v3972 = vadd.f32 %v3935, %v3968
      %v3973 = vadd.f32 %v3936, %v3968
      %v3974 = vadd.f32 %v3937, %v3968
      %v3975 = vadd.f32 %v3938, %v3968
      %v3976 = vadd.f32 %v3939, %v3968
      %v3977 = vadd.f32 %v3940, %v3968
      %v3978 = vadd.f32 %v3941, %v3968
      %v3979 = vadd.f32 %v3942, %v3968
      %v3980 = vadd.f32 %v3943, %v3968
      %v3981 = vadd.f32 %v3944, %v3968
      %v3982 = vadd.f32 %v3945, %v3968
      %v3983 = vadd.f32 %v3946, %v3968
      %v3984 = vadd.f32 %v3947, %v3968
      %v3985 = vadd.f32 %v3948, %v3968
      %v3986 = vadd.f32 %v3949, %v3968
      %v3987 = vadd.f32 %v3950, %v3968
      %v3988 = vadd.f32 %v3951, %v3968
      %v3989 = vadd.f32 %v3952, %v3968
      %v3990 = vadd.f32 %v3953, %v3968
      %v3991 = vadd.f32 %v3954, %v3968
      %v3992 = vadd.f32 %v3955, %v3968
      %v3993 = vadd.f32 %v3956, %v3968
      %v3994 = vadd.f32 %v3957, %v3968
      %v3995 = vadd.f32 %v3958, %v3968
      %v3996 = vadd.f32 %v3959, %v3968
      %v3997 = vadd.f32 %v3960, %v3968
      %v3998 = vadd.f32 %v3961, %v3968
      %v3999 = vadd.f32 %v3962, %v3968
      %v4000 = vadd.f32 %v3963, %v3968
      %v4001 = vadd.f32 %v3964, %v3968
      %s4002 = scalar_lea.vmem [#allocation3], 24
      %4003 = vst.msk [vmem:[%s4002 + $0x1] sm:$0xff] %vm320, %v3648
      %4004 = vst.msk [vmem:[%s4002 + $0x9] sm:$0xff] %vm320, %v3649
      %4005 = vst.msk [vmem:[%s4002 + $0x19] sm:$0xff] %vm320, %v3650
      %4006 = vst.msk [vmem:[%s4002 + $0x21] sm:$0xff] %vm320, %v3651
      %4007 = vst.msk [vmem:[%s4002 + $0x31] sm:$0xff] %vm320, %v3652
      %4008 = vst.msk [vmem:[%s4002 + $0x39] sm:$0xff] %vm320, %v3653
      %4009 = vst.msk [vmem:[%s4002 + $0x49] sm:$0xff] %vm320, %v3654
      %4010 = vst.msk [vmem:[%s4002 + $0x51] sm:$0xff] %vm320, %v3655
      %4011 = vst.msk [vmem:[%s4002 + $0x61] sm:$0xff] %vm320, %v3656
      %4012 = vst.msk [vmem:[%s4002 + $0x69] sm:$0xff] %vm320, %v3657
      %4013 = vst.msk [vmem:[%s4002 + $0x79] sm:$0xff] %vm320, %v3658
      %4014 = vst.msk [vmem:[%s4002 + $0x81] sm:$0xff] %vm320, %v3659
      %4015 = vst.msk [vmem:[%s4002 + $0x91] sm:$0xff] %vm320, %v3660
      %4016 = vst.msk [vmem:[%s4002 + $0x99] sm:$0xff] %vm320, %v3661
      %4017 = vst.msk [vmem:[%s4002 + $0xa9] sm:$0xff] %vm320, %v3662
      %4018 = vst.msk [vmem:[%s4002 + $0xb1] sm:$0xff] %vm320, %v3663
      %4019 = vst.msk [vmem:[%s4002 + $0xc1] sm:$0xff] %vm320, %v3664
      %4020 = vst.msk [vmem:[%s4002 + $0xc9] sm:$0xff] %vm320, %v3665
      %4021 = vst.msk [vmem:[%s4002 + $0xd9] sm:$0xff] %vm320, %v3666
      %4022 = vst.msk [vmem:[%s4002 + $0xe1] sm:$0xff] %vm320, %v3667
      %4023 = vst.msk [vmem:[%s4002 + $0xf1] sm:$0xff] %vm320, %v3668
      %4024 = vst.msk [vmem:[%s4002 + $0xf9] sm:$0xff] %vm320, %v3669
      %4025 = vst.msk [vmem:[%s4002 + $0x109] sm:$0xff] %vm320, %v3670
      %4026 = vst.msk [vmem:[%s4002 + $0x111] sm:$0xff] %vm320, %v3671
      %4027 = vst.msk [vmem:[%s4002 + $0x121] sm:$0xff] %vm320, %v3672
      %4028 = vst.msk [vmem:[%s4002 + $0x129] sm:$0xff] %vm320, %v3673
      %4029 = vst.msk [vmem:[%s4002 + $0x139] sm:$0xff] %vm320, %v3674
      %4030 = vst.msk [vmem:[%s4002 + $0x141] sm:$0xff] %vm320, %v3675
      %4031 = vst.msk [vmem:[%s4002 + $0x151] sm:$0xff] %vm320, %v3676
      %4032 = vst.msk [vmem:[%s4002 + $0x159] sm:$0xff] %vm320, %v3677
      %4033 = vst.msk [vmem:[%s4002 + $0x169] sm:$0xff] %vm320, %v3678
      %4034 = vst.msk [vmem:[%s4002 + $0x171] sm:$0xff] %vm320, %v3679
      %v4035 = vld [vmem:[#allocation3] sm:$0xff]
      %v4036 = vld [vmem:[#allocation3 + $0x8] sm:$0xff]
      %v4037 = vld [vmem:[#allocation3 + $0x18] sm:$0xff]
      %v4038 = vld [vmem:[#allocation3 + $0x20] sm:$0xff]
      %v4039 = vld [vmem:[#allocation3 + $0x30] sm:$0xff]
      %v4040 = vld [vmem:[#allocation3 + $0x38] sm:$0xff]
      %v4041 = vld [vmem:[#allocation3 + $0x48] sm:$0xff]
      %v4042 = vld [vmem:[#allocation3 + $0x50] sm:$0xff]
      %v4043 = vld [vmem:[#allocation3 + $0x60] sm:$0xff]
      %v4044 = vld [vmem:[#allocation3 + $0x68] sm:$0xff]
      %v4045 = vld [vmem:[#allocation3 + $0x78] sm:$0xff]
      %v4046 = vld [vmem:[#allocation3 + $0x80] sm:$0xff]
      %v4047 = vld [vmem:[#allocation3 + $0x90] sm:$0xff]
      %v4048 = vld [vmem:[#allocation3 + $0x98] sm:$0xff]
      %v4049 = vld [vmem:[#allocation3 + $0xa8] sm:$0xff]
      %v4050 = vld [vmem:[#allocation3 + $0xb0] sm:$0xff]
      %v4051 = vld [vmem:[#allocation3 + $0xc0] sm:$0xff]
      %v4052 = vld [vmem:[#allocation3 + $0xc8] sm:$0xff]
      %v4053 = vld [vmem:[#allocation3 + $0xd8] sm:$0xff]
      %v4054 = vld [vmem:[#allocation3 + $0xe0] sm:$0xff]
      %v4055 = vld [vmem:[#allocation3 + $0xf0] sm:$0xff]
      %v4056 = vld [vmem:[#allocation3 + $0xf8] sm:$0xff]
      %v4057 = vld [vmem:[#allocation3 + $0x108] sm:$0xff]
      %v4058 = vld [vmem:[#allocation3 + $0x110] sm:$0xff]
      %v4059 = vld [vmem:[#allocation3 + $0x120] sm:$0xff]
      %v4060 = vld [vmem:[#allocation3 + $0x128] sm:$0xff]
      %v4061 = vld [vmem:[#allocation3 + $0x138] sm:$0xff]
      %v4062 = vld [vmem:[#allocation3 + $0x140] sm:$0xff]
      %v4063 = vld [vmem:[#allocation3 + $0x150] sm:$0xff]
      %v4064 = vld [vmem:[#allocation3 + $0x158] sm:$0xff]
      %v4065 = vld [vmem:[#allocation3 + $0x168] sm:$0xff]
      %v4066 = vld [vmem:[#allocation3 + $0x170] sm:$0xff]
      %v4067 = vld [vmem:[#allocation3 + $0x1] sm:$0xff]
      %v4068 = vld [vmem:[#allocation3 + $0x9] sm:$0xff]
      %v4069 = vld [vmem:[#allocation3 + $0x19] sm:$0xff]
      %v4070 = vld [vmem:[#allocation3 + $0x21] sm:$0xff]
      %v4071 = vld [vmem:[#allocation3 + $0x31] sm:$0xff]
      %v4072 = vld [vmem:[#allocation3 + $0x39] sm:$0xff]
      %v4073 = vld [vmem:[#allocation3 + $0x49] sm:$0xff]
      %v4074 = vld [vmem:[#allocation3 + $0x51] sm:$0xff]
      %v4075 = vld [vmem:[#allocation3 + $0x61] sm:$0xff]
      %v4076 = vld [vmem:[#allocation3 + $0x69] sm:$0xff]
      %v4077 = vld [vmem:[#allocation3 + $0x79] sm:$0xff]
      %v4078 = vld [vmem:[#allocation3 + $0x81] sm:$0xff]
      %v4079 = vld [vmem:[#allocation3 + $0x91] sm:$0xff]
      %v4080 = vld [vmem:[#allocation3 + $0x99] sm:$0xff]
      %v4081 = vld [vmem:[#allocation3 + $0xa9] sm:$0xff]
      %v4082 = vld [vmem:[#allocation3 + $0xb1] sm:$0xff]
      %v4083 = vld [vmem:[#allocation3 + $0xc1] sm:$0xff]
      %v4084 = vld [vmem:[#allocation3 + $0xc9] sm:$0xff]
      %v4085 = vld [vmem:[#allocation3 + $0xd9] sm:$0xff]
      %v4086 = vld [vmem:[#allocation3 + $0xe1] sm:$0xff]
      %v4087 = vld [vmem:[#allocation3 + $0xf1] sm:$0xff]
      %v4088 = vld [vmem:[#allocation3 + $0xf9] sm:$0xff]
      %v4089 = vld [vmem:[#allocation3 + $0x109] sm:$0xff]
      %v4090 = vld [vmem:[#allocation3 + $0x111] sm:$0xff]
      %v4091 = vld [vmem:[#allocation3 + $0x121] sm:$0xff]
      %v4092 = vld [vmem:[#allocation3 + $0x129] sm:$0xff]
      %v4093 = vld [vmem:[#allocation3 + $0x139] sm:$0xff]
      %v4094 = vld [vmem:[#allocation3 + $0x141] sm:$0xff]
      %v4095 = vld [vmem:[#allocation3 + $0x151] sm:$0xff]
      %v4096 = vld [vmem:[#allocation3 + $0x159] sm:$0xff]
      %v4097 = vld [vmem:[#allocation3 + $0x169] sm:$0xff]
      %v4098 = vld [vmem:[#allocation3 + $0x171] sm:$0xff]
      %v4099 = vld [vmem:[#allocation3 + $0x2] sm:$0xff]
      %v4100 = vld [vmem:[#allocation3 + $0xa] sm:$0xff]
      %v4101 = vld [vmem:[#allocation3 + $0x1a] sm:$0xff]
      %v4102 = vld [vmem:[#allocation3 + $0x22] sm:$0xff]
      %v4103 = vld [vmem:[#allocation3 + $0x32] sm:$0xff]
      %v4104 = vld [vmem:[#allocation3 + $0x3a] sm:$0xff]
      %v4105 = vld [vmem:[#allocation3 + $0x4a] sm:$0xff]
      %v4106 = vld [vmem:[#allocation3 + $0x52] sm:$0xff]
      %v4107 = vld [vmem:[#allocation3 + $0x62] sm:$0xff]
      %v4108 = vld [vmem:[#allocation3 + $0x6a] sm:$0xff]
      %v4109 = vld [vmem:[#allocation3 + $0x7a] sm:$0xff]
      %v4110 = vld [vmem:[#allocation3 + $0x82] sm:$0xff]
      %v4111 = vld [vmem:[#allocation3 + $0x92] sm:$0xff]
      %v4112 = vld [vmem:[#allocation3 + $0x9a] sm:$0xff]
      %v4113 = vld [vmem:[#allocation3 + $0xaa] sm:$0xff]
      %v4114 = vld [vmem:[#allocation3 + $0xb2] sm:$0xff]
      %v4115 = vld [vmem:[#allocation3 + $0xc2] sm:$0xff]
      %v4116 = vld [vmem:[#allocation3 + $0xca] sm:$0xff]
      %v4117 = vld [vmem:[#allocation3 + $0xda] sm:$0xff]
      %v4118 = vld [vmem:[#allocation3 + $0xe2] sm:$0xff]
      %v4119 = vld [vmem:[#allocation3 + $0xf2] sm:$0xff]
      %v4120 = vld [vmem:[#allocation3 + $0xfa] sm:$0xff]
      %v4121 = vld [vmem:[#allocation3 + $0x10a] sm:$0xff]
      %v4122 = vld [vmem:[#allocation3 + $0x112] sm:$0xff]
      %v4123 = vld [vmem:[#allocation3 + $0x122] sm:$0xff]
      %v4124 = vld [vmem:[#allocation3 + $0x12a] sm:$0xff]
      %v4125 = vld [vmem:[#allocation3 + $0x13a] sm:$0xff]
      %v4126 = vld [vmem:[#allocation3 + $0x142] sm:$0xff]
      %v4127 = vld [vmem:[#allocation3 + $0x152] sm:$0xff]
      %v4128 = vld [vmem:[#allocation3 + $0x15a] sm:$0xff]
      %v4129 = vld [vmem:[#allocation3 + $0x16a] sm:$0xff]
      %v4130 = vld [vmem:[#allocation3 + $0x172] sm:$0xff]
      %v4131 = vld [vmem:[%s4002] sm:$0xff]
      %v4132 = vld [vmem:[%s4002 + $0x8] sm:$0xff]
      %v4133 = vld [vmem:[%s4002 + $0x18] sm:$0xff]
      %v4134 = vld [vmem:[%s4002 + $0x20] sm:$0xff]
      %v4135 = vld [vmem:[%s4002 + $0x30] sm:$0xff]
      %v4136 = vld [vmem:[%s4002 + $0x38] sm:$0xff]
      %v4137 = vld [vmem:[%s4002 + $0x48] sm:$0xff]
      %v4138 = vld [vmem:[%s4002 + $0x50] sm:$0xff]
      %v4139 = vld [vmem:[%s4002 + $0x60] sm:$0xff]
      %v4140 = vld [vmem:[%s4002 + $0x68] sm:$0xff]
      %v4141 = vld [vmem:[%s4002 + $0x78] sm:$0xff]
      %v4142 = vld [vmem:[%s4002 + $0x80] sm:$0xff]
      %v4143 = vld [vmem:[%s4002 + $0x90] sm:$0xff]
      %v4144 = vld [vmem:[%s4002 + $0x98] sm:$0xff]
      %v4145 = vld [vmem:[%s4002 + $0xa8] sm:$0xff]
      %v4146 = vld [vmem:[%s4002 + $0xb0] sm:$0xff]
      %v4147 = vld [vmem:[%s4002 + $0xc0] sm:$0xff]
      %v4148 = vld [vmem:[%s4002 + $0xc8] sm:$0xff]
      %v4149 = vld [vmem:[%s4002 + $0xd8] sm:$0xff]
      %v4150 = vld [vmem:[%s4002 + $0xe0] sm:$0xff]
      %v4151 = vld [vmem:[%s4002 + $0xf0] sm:$0xff]
      %v4152 = vld [vmem:[%s4002 + $0xf8] sm:$0xff]
      %v4153 = vld [vmem:[%s4002 + $0x108] sm:$0xff]
      %v4154 = vld [vmem:[%s4002 + $0x110] sm:$0xff]
      %v4155 = vld [vmem:[%s4002 + $0x120] sm:$0xff]
      %v4156 = vld [vmem:[%s4002 + $0x128] sm:$0xff]
      %v4157 = vld [vmem:[%s4002 + $0x138] sm:$0xff]
      %v4158 = vld [vmem:[%s4002 + $0x140] sm:$0xff]
      %v4159 = vld [vmem:[%s4002 + $0x150] sm:$0xff]
      %v4160 = vld [vmem:[%s4002 + $0x158] sm:$0xff]
      %v4161 = vld [vmem:[%s4002 + $0x168] sm:$0xff]
      %v4162 = vld [vmem:[%s4002 + $0x170] sm:$0xff]
      %v4163 = vld [vmem:[%s4002 + $0x1] sm:$0xff]
      %v4164 = vld [vmem:[%s4002 + $0x9] sm:$0xff]
      %v4165 = vld [vmem:[%s4002 + $0x19] sm:$0xff]
      %v4166 = vld [vmem:[%s4002 + $0x21] sm:$0xff]
      %v4167 = vld [vmem:[%s4002 + $0x31] sm:$0xff]
      %v4168 = vld [vmem:[%s4002 + $0x39] sm:$0xff]
      %v4169 = vld [vmem:[%s4002 + $0x49] sm:$0xff]
      %v4170 = vld [vmem:[%s4002 + $0x51] sm:$0xff]
      %v4171 = vld [vmem:[%s4002 + $0x61] sm:$0xff]
      %v4172 = vld [vmem:[%s4002 + $0x69] sm:$0xff]
      %v4173 = vld [vmem:[%s4002 + $0x79] sm:$0xff]
      %v4174 = vld [vmem:[%s4002 + $0x81] sm:$0xff]
      %v4175 = vld [vmem:[%s4002 + $0x91] sm:$0xff]
      %v4176 = vld [vmem:[%s4002 + $0x99] sm:$0xff]
      %v4177 = vld [vmem:[%s4002 + $0xa9] sm:$0xff]
      %v4178 = vld [vmem:[%s4002 + $0xb1] sm:$0xff]
      %v4179 = vld [vmem:[%s4002 + $0xc1] sm:$0xff]
      %v4180 = vld [vmem:[%s4002 + $0xc9] sm:$0xff]
      %v4181 = vld [vmem:[%s4002 + $0xd9] sm:$0xff]
      %v4182 = vld [vmem:[%s4002 + $0xe1] sm:$0xff]
      %v4183 = vld [vmem:[%s4002 + $0xf1] sm:$0xff]
      %v4184 = vld [vmem:[%s4002 + $0xf9] sm:$0xff]
      %v4185 = vld [vmem:[%s4002 + $0x109] sm:$0xff]
      %v4186 = vld [vmem:[%s4002 + $0x111] sm:$0xff]
      %v4187 = vld [vmem:[%s4002 + $0x121] sm:$0xff]
      %v4188 = vld [vmem:[%s4002 + $0x129] sm:$0xff]
      %v4189 = vld [vmem:[%s4002 + $0x139] sm:$0xff]
      %v4190 = vld [vmem:[%s4002 + $0x141] sm:$0xff]
      %v4191 = vld [vmem:[%s4002 + $0x151] sm:$0xff]
      %v4192 = vld [vmem:[%s4002 + $0x159] sm:$0xff]
      %v4193 = vld [vmem:[%s4002 + $0x169] sm:$0xff]
      %v4194 = vld [vmem:[%s4002 + $0x171] sm:$0xff]
      %v4195 = vld [vmem:[%s4002 + $0x2] sm:$0xff]
      %v4196 = vld [vmem:[%s4002 + $0xa] sm:$0xff]
      %v4197 = vld [vmem:[%s4002 + $0x1a] sm:$0xff]
      %v4198 = vld [vmem:[%s4002 + $0x22] sm:$0xff]
      %v4199 = vld [vmem:[%s4002 + $0x32] sm:$0xff]
      %v4200 = vld [vmem:[%s4002 + $0x3a] sm:$0xff]
      %v4201 = vld [vmem:[%s4002 + $0x4a] sm:$0xff]
      %v4202 = vld [vmem:[%s4002 + $0x52] sm:$0xff]
      %v4203 = vld [vmem:[%s4002 + $0x62] sm:$0xff]
      %v4204 = vld [vmem:[%s4002 + $0x6a] sm:$0xff]
      %v4205 = vld [vmem:[%s4002 + $0x7a] sm:$0xff]
      %v4206 = vld [vmem:[%s4002 + $0x82] sm:$0xff]
      %v4207 = vld [vmem:[%s4002 + $0x92] sm:$0xff]
      %v4208 = vld [vmem:[%s4002 + $0x9a] sm:$0xff]
      %v4209 = vld [vmem:[%s4002 + $0xaa] sm:$0xff]
      %v4210 = vld [vmem:[%s4002 + $0xb2] sm:$0xff]
      %v4211 = vld [vmem:[%s4002 + $0xc2] sm:$0xff]
      %v4212 = vld [vmem:[%s4002 + $0xca] sm:$0xff]
      %v4213 = vld [vmem:[%s4002 + $0xda] sm:$0xff]
      %v4214 = vld [vmem:[%s4002 + $0xe2] sm:$0xff]
      %v4215 = vld [vmem:[%s4002 + $0xf2] sm:$0xff]
      %v4216 = vld [vmem:[%s4002 + $0xfa] sm:$0xff]
      %v4217 = vld [vmem:[%s4002 + $0x10a] sm:$0xff]
      %v4218 = vld [vmem:[%s4002 + $0x112] sm:$0xff]
      %v4219 = vld [vmem:[%s4002 + $0x122] sm:$0xff]
      %v4220 = vld [vmem:[%s4002 + $0x12a] sm:$0xff]
      %v4221 = vld [vmem:[%s4002 + $0x13a] sm:$0xff]
      %v4222 = vld [vmem:[%s4002 + $0x142] sm:$0xff]
      %v4223 = vld [vmem:[%s4002 + $0x152] sm:$0xff]
      %v4224 = vld [vmem:[%s4002 + $0x15a] sm:$0xff]
      %v4225 = vld [vmem:[%s4002 + $0x16a] sm:$0xff]
      %v4226 = vld [vmem:[%s4002 + $0x172] sm:$0xff]
      %s4227 = scalar_lea.vmem [#allocation3], 48
      %v4228 = vld [vmem:[%s4227] sm:$0xff]
      %v4229 = vld [vmem:[%s4227 + $0x8] sm:$0xff]
      %v4230 = vld [vmem:[%s4227 + $0x18] sm:$0xff]
      %v4231 = vld [vmem:[%s4227 + $0x20] sm:$0xff]
      %v4232 = vld [vmem:[%s4227 + $0x30] sm:$0xff]
      %v4233 = vld [vmem:[%s4227 + $0x38] sm:$0xff]
      %v4234 = vld [vmem:[%s4227 + $0x48] sm:$0xff]
      %v4235 = vld [vmem:[%s4227 + $0x50] sm:$0xff]
      %v4236 = vld [vmem:[%s4227 + $0x60] sm:$0xff]
      %v4237 = vld [vmem:[%s4227 + $0x68] sm:$0xff]
      %v4238 = vld [vmem:[%s4227 + $0x78] sm:$0xff]
      %v4239 = vld [vmem:[%s4227 + $0x80] sm:$0xff]
      %v4240 = vld [vmem:[%s4227 + $0x90] sm:$0xff]
      %v4241 = vld [vmem:[%s4227 + $0x98] sm:$0xff]
      %v4242 = vld [vmem:[%s4227 + $0xa8] sm:$0xff]
      %v4243 = vld [vmem:[%s4227 + $0xb0] sm:$0xff]
      %v4244 = vld [vmem:[%s4227 + $0xc0] sm:$0xff]
      %v4245 = vld [vmem:[%s4227 + $0xc8] sm:$0xff]
      %v4246 = vld [vmem:[%s4227 + $0xd8] sm:$0xff]
      %v4247 = vld [vmem:[%s4227 + $0xe0] sm:$0xff]
      %v4248 = vld [vmem:[%s4227 + $0xf0] sm:$0xff]
      %v4249 = vld [vmem:[%s4227 + $0xf8] sm:$0xff]
      %v4250 = vld [vmem:[%s4227 + $0x108] sm:$0xff]
      %v4251 = vld [vmem:[%s4227 + $0x110] sm:$0xff]
      %v4252 = vld [vmem:[%s4227 + $0x120] sm:$0xff]
      %v4253 = vld [vmem:[%s4227 + $0x128] sm:$0xff]
      %v4254 = vld [vmem:[%s4227 + $0x138] sm:$0xff]
      %v4255 = vld [vmem:[%s4227 + $0x140] sm:$0xff]
      %v4256 = vld [vmem:[%s4227 + $0x150] sm:$0xff]
      %v4257 = vld [vmem:[%s4227 + $0x158] sm:$0xff]
      %v4258 = vld [vmem:[%s4227 + $0x168] sm:$0xff]
      %v4259 = vld [vmem:[%s4227 + $0x170] sm:$0xff]
      %v4260 = vld [vmem:[%s4227 + $0x1] sm:$0xff]
      %v4261 = vld [vmem:[%s4227 + $0x9] sm:$0xff]
      %v4262 = vld [vmem:[%s4227 + $0x19] sm:$0xff]
      %v4263 = vld [vmem:[%s4227 + $0x21] sm:$0xff]
      %v4264 = vld [vmem:[%s4227 + $0x31] sm:$0xff]
      %v4265 = vld [vmem:[%s4227 + $0x39] sm:$0xff]
      %v4266 = vld [vmem:[%s4227 + $0x49] sm:$0xff]
      %v4267 = vld [vmem:[%s4227 + $0x51] sm:$0xff]
      %v4268 = vld [vmem:[%s4227 + $0x61] sm:$0xff]
      %v4269 = vld [vmem:[%s4227 + $0x69] sm:$0xff]
      %v4270 = vld [vmem:[%s4227 + $0x79] sm:$0xff]
      %v4271 = vld [vmem:[%s4227 + $0x81] sm:$0xff]
      %v4272 = vld [vmem:[%s4227 + $0x91] sm:$0xff]
      %v4273 = vld [vmem:[%s4227 + $0x99] sm:$0xff]
      %v4274 = vld [vmem:[%s4227 + $0xa9] sm:$0xff]
      %v4275 = vld [vmem:[%s4227 + $0xb1] sm:$0xff]
      %v4276 = vld [vmem:[%s4227 + $0xc1] sm:$0xff]
      %v4277 = vld [vmem:[%s4227 + $0xc9] sm:$0xff]
      %v4278 = vld [vmem:[%s4227 + $0xd9] sm:$0xff]
      %v4279 = vld [vmem:[%s4227 + $0xe1] sm:$0xff]
      %v4280 = vld [vmem:[%s4227 + $0xf1] sm:$0xff]
      %v4281 = vld [vmem:[%s4227 + $0xf9] sm:$0xff]
      %v4282 = vld [vmem:[%s4227 + $0x109] sm:$0xff]
      %v4283 = vld [vmem:[%s4227 + $0x111] sm:$0xff]
      %v4284 = vld [vmem:[%s4227 + $0x121] sm:$0xff]
      %v4285 = vld [vmem:[%s4227 + $0x129] sm:$0xff]
      %v4286 = vld [vmem:[%s4227 + $0x139] sm:$0xff]
      %v4287 = vld [vmem:[%s4227 + $0x141] sm:$0xff]
      %v4288 = vld [vmem:[%s4227 + $0x151] sm:$0xff]
      %v4289 = vld [vmem:[%s4227 + $0x159] sm:$0xff]
      %v4290 = vld [vmem:[%s4227 + $0x169] sm:$0xff]
      %v4291 = vld [vmem:[%s4227 + $0x171] sm:$0xff]
      %v4292 = vld [vmem:[%s4227 + $0x2] sm:$0xff]
      %v4293 = vld [vmem:[%s4227 + $0xa] sm:$0xff]
      %v4294 = vld [vmem:[%s4227 + $0x1a] sm:$0xff]
      %v4295 = vld [vmem:[%s4227 + $0x22] sm:$0xff]
      %v4296 = vld [vmem:[%s4227 + $0x32] sm:$0xff]
      %v4297 = vld [vmem:[%s4227 + $0x3a] sm:$0xff]
      %v4298 = vld [vmem:[%s4227 + $0x4a] sm:$0xff]
      %v4299 = vld [vmem:[%s4227 + $0x52] sm:$0xff]
      %v4300 = vld [vmem:[%s4227 + $0x62] sm:$0xff]
      %v4301 = vld [vmem:[%s4227 + $0x6a] sm:$0xff]
      %v4302 = vld [vmem:[%s4227 + $0x7a] sm:$0xff]
      %v4303 = vld [vmem:[%s4227 + $0x82] sm:$0xff]
      %v4304 = vld [vmem:[%s4227 + $0x92] sm:$0xff]
      %v4305 = vld [vmem:[%s4227 + $0x9a] sm:$0xff]
      %v4306 = vld [vmem:[%s4227 + $0xaa] sm:$0xff]
      %v4307 = vld [vmem:[%s4227 + $0xb2] sm:$0xff]
      %v4308 = vld [vmem:[%s4227 + $0xc2] sm:$0xff]
      %v4309 = vld [vmem:[%s4227 + $0xca] sm:$0xff]
      %v4310 = vld [vmem:[%s4227 + $0xda] sm:$0xff]
      %v4311 = vld [vmem:[%s4227 + $0xe2] sm:$0xff]
      %v4312 = vld [vmem:[%s4227 + $0xf2] sm:$0xff]
      %v4313 = vld [vmem:[%s4227 + $0xfa] sm:$0xff]
      %v4314 = vld [vmem:[%s4227 + $0x10a] sm:$0xff]
      %v4315 = vld [vmem:[%s4227 + $0x112] sm:$0xff]
      %v4316 = vld [vmem:[%s4227 + $0x122] sm:$0xff]
      %v4317 = vld [vmem:[%s4227 + $0x12a] sm:$0xff]
      %v4318 = vld [vmem:[%s4227 + $0x13a] sm:$0xff]
      %v4319 = vld [vmem:[%s4227 + $0x142] sm:$0xff]
      %v4320 = vld [vmem:[%s4227 + $0x152] sm:$0xff]
      %v4321 = vld [vmem:[%s4227 + $0x15a] sm:$0xff]
      %v4322 = vld [vmem:[%s4227 + $0x16a] sm:$0xff]
      %v4323 = vld [vmem:[%s4227 + $0x172] sm:$0xff]
      %4356 = vrot.lane.b32.xlu0 %v4067, 4
      %v4357 = vpop.permute.xlu0 %4356
      %4358 = vrot.lane.b32.xlu0 %v4068, 4
      %v4359 = vpop.permute.xlu0 %4358
      %4360 = vrot.lane.b32.xlu0 %v4069, 4
      %v4361 = vpop.permute.xlu0 %4360
      %4362 = vrot.lane.b32.xlu0 %v4070, 4
      %v4363 = vpop.permute.xlu0 %4362
      %4364 = vrot.lane.b32.xlu0 %v4071, 4
      %v4365 = vpop.permute.xlu0 %4364
      %4366 = vrot.lane.b32.xlu0 %v4072, 4
      %v4367 = vpop.permute.xlu0 %4366
      %4368 = vrot.lane.b32.xlu0 %v4073, 4
      %v4369 = vpop.permute.xlu0 %4368
      %4370 = vrot.lane.b32.xlu0 %v4074, 4
      %v4371 = vpop.permute.xlu0 %4370
      %4372 = vrot.lane.b32.xlu0 %v4075, 4
      %v4373 = vpop.permute.xlu0 %4372
      %4374 = vrot.lane.b32.xlu0 %v4076, 4
      %v4375 = vpop.permute.xlu0 %4374
      %4376 = vrot.lane.b32.xlu0 %v4077, 4
      %v4377 = vpop.permute.xlu0 %4376
      %4378 = vrot.lane.b32.xlu0 %v4078, 4
      %v4379 = vpop.permute.xlu0 %4378
      %4380 = vrot.lane.b32.xlu0 %v4079, 4
      %v4381 = vpop.permute.xlu0 %4380
      %4382 = vrot.lane.b32.xlu0 %v4080, 4
      %v4383 = vpop.permute.xlu0 %4382
      %4384 = vrot.lane.b32.xlu0 %v4081, 4
      %v4385 = vpop.permute.xlu0 %4384
      %4386 = vrot.lane.b32.xlu0 %v4082, 4
      %v4387 = vpop.permute.xlu0 %4386
      %4388 = vrot.lane.b32.xlu0 %v4083, 4
      %v4389 = vpop.permute.xlu0 %4388
      %4390 = vrot.lane.b32.xlu0 %v4084, 4
      %v4391 = vpop.permute.xlu0 %4390
      %4392 = vrot.lane.b32.xlu0 %v4085, 4
      %v4393 = vpop.permute.xlu0 %4392
      %4394 = vrot.lane.b32.xlu0 %v4086, 4
      %v4395 = vpop.permute.xlu0 %4394
      %4396 = vrot.lane.b32.xlu0 %v4087, 4
      %v4397 = vpop.permute.xlu0 %4396
      %4398 = vrot.lane.b32.xlu0 %v4088, 4
      %v4399 = vpop.permute.xlu0 %4398
      %4400 = vrot.lane.b32.xlu0 %v4089, 4
      %v4401 = vpop.permute.xlu0 %4400
      %4402 = vrot.lane.b32.xlu0 %v4090, 4
      %v4403 = vpop.permute.xlu0 %4402
      %4404 = vrot.lane.b32.xlu0 %v4091, 4
      %v4405 = vpop.permute.xlu0 %4404
      %4406 = vrot.lane.b32.xlu0 %v4092, 4
      %v4407 = vpop.permute.xlu0 %4406
      %4408 = vrot.lane.b32.xlu0 %v4093, 4
      %v4409 = vpop.permute.xlu0 %4408
      %4410 = vrot.lane.b32.xlu0 %v4094, 4
      %v4411 = vpop.permute.xlu0 %4410
      %4412 = vrot.lane.b32.xlu0 %v4095, 4
      %v4413 = vpop.permute.xlu0 %4412
      %4414 = vrot.lane.b32.xlu0 %v4096, 4
      %v4415 = vpop.permute.xlu0 %4414
      %4416 = vrot.lane.b32.xlu0 %v4097, 4
      %v4417 = vpop.permute.xlu0 %4416
      %4418 = vrot.lane.b32.xlu0 %v4098, 4
      %v4419 = vpop.permute.xlu0 %4418
      %4484 = vrot.lane.b32.xlu0 %v4099, 8
      %v4485 = vpop.permute.xlu0 %4484
      %4486 = vrot.lane.b32.xlu0 %v4100, 8
      %v4487 = vpop.permute.xlu0 %4486
      %4488 = vrot.lane.b32.xlu0 %v4101, 8
      %v4489 = vpop.permute.xlu0 %4488
      %4490 = vrot.lane.b32.xlu0 %v4102, 8
      %v4491 = vpop.permute.xlu0 %4490
      %4492 = vrot.lane.b32.xlu0 %v4103, 8
      %v4493 = vpop.permute.xlu0 %4492
      %4494 = vrot.lane.b32.xlu0 %v4104, 8
      %v4495 = vpop.permute.xlu0 %4494
      %4496 = vrot.lane.b32.xlu0 %v4105, 8
      %v4497 = vpop.permute.xlu0 %4496
      %4498 = vrot.lane.b32.xlu0 %v4106, 8
      %v4499 = vpop.permute.xlu0 %4498
      %4500 = vrot.lane.b32.xlu0 %v4107, 8
      %v4501 = vpop.permute.xlu0 %4500
      %4502 = vrot.lane.b32.xlu0 %v4108, 8
      %v4503 = vpop.permute.xlu0 %4502
      %4504 = vrot.lane.b32.xlu0 %v4109, 8
      %v4505 = vpop.permute.xlu0 %4504
      %4506 = vrot.lane.b32.xlu0 %v4110, 8
      %v4507 = vpop.permute.xlu0 %4506
      %4508 = vrot.lane.b32.xlu0 %v4111, 8
      %v4509 = vpop.permute.xlu0 %4508
      %4510 = vrot.lane.b32.xlu0 %v4112, 8
      %v4511 = vpop.permute.xlu0 %4510
      %4512 = vrot.lane.b32.xlu0 %v4113, 8
      %v4513 = vpop.permute.xlu0 %4512
      %4514 = vrot.lane.b32.xlu0 %v4114, 8
      %v4515 = vpop.permute.xlu0 %4514
      %4516 = vrot.lane.b32.xlu0 %v4115, 8
      %v4517 = vpop.permute.xlu0 %4516
      %4518 = vrot.lane.b32.xlu0 %v4116, 8
      %v4519 = vpop.permute.xlu0 %4518
      %4520 = vrot.lane.b32.xlu0 %v4117, 8
      %v4521 = vpop.permute.xlu0 %4520
      %4522 = vrot.lane.b32.xlu0 %v4118, 8
      %v4523 = vpop.permute.xlu0 %4522
      %4524 = vrot.lane.b32.xlu0 %v4119, 8
      %v4525 = vpop.permute.xlu0 %4524
      %4526 = vrot.lane.b32.xlu0 %v4120, 8
      %v4527 = vpop.permute.xlu0 %4526
      %4528 = vrot.lane.b32.xlu0 %v4121, 8
      %v4529 = vpop.permute.xlu0 %4528
      %4530 = vrot.lane.b32.xlu0 %v4122, 8
      %v4531 = vpop.permute.xlu0 %4530
      %4532 = vrot.lane.b32.xlu0 %v4123, 8
      %v4533 = vpop.permute.xlu0 %4532
      %4534 = vrot.lane.b32.xlu0 %v4124, 8
      %v4535 = vpop.permute.xlu0 %4534
      %4536 = vrot.lane.b32.xlu0 %v4125, 8
      %v4537 = vpop.permute.xlu0 %4536
      %4538 = vrot.lane.b32.xlu0 %v4126, 8
      %v4539 = vpop.permute.xlu0 %4538
      %4540 = vrot.lane.b32.xlu0 %v4127, 8
      %v4541 = vpop.permute.xlu0 %4540
      %4542 = vrot.lane.b32.xlu0 %v4128, 8
      %v4543 = vpop.permute.xlu0 %4542
      %4544 = vrot.lane.b32.xlu0 %v4129, 8
      %v4545 = vpop.permute.xlu0 %4544
      %4546 = vrot.lane.b32.xlu0 %v4130, 8
      %v4547 = vpop.permute.xlu0 %4546
      %4612 = vrot.lane.b32.xlu0 %v4131, 12
      %v4613 = vpop.permute.xlu0 %4612
      %4614 = vrot.lane.b32.xlu0 %v4132, 12
      %v4615 = vpop.permute.xlu0 %4614
      %4616 = vrot.lane.b32.xlu0 %v4133, 12
      %v4617 = vpop.permute.xlu0 %4616
      %4618 = vrot.lane.b32.xlu0 %v4134, 12
      %v4619 = vpop.permute.xlu0 %4618
      %4620 = vrot.lane.b32.xlu0 %v4135, 12
      %v4621 = vpop.permute.xlu0 %4620
      %4622 = vrot.lane.b32.xlu0 %v4136, 12
      %v4623 = vpop.permute.xlu0 %4622
      %4624 = vrot.lane.b32.xlu0 %v4137, 12
      %v4625 = vpop.permute.xlu0 %4624
      %4626 = vrot.lane.b32.xlu0 %v4138, 12
      %v4627 = vpop.permute.xlu0 %4626
      %4628 = vrot.lane.b32.xlu0 %v4139, 12
      %v4629 = vpop.permute.xlu0 %4628
      %4630 = vrot.lane.b32.xlu0 %v4140, 12
      %v4631 = vpop.permute.xlu0 %4630
      %4632 = vrot.lane.b32.xlu0 %v4141, 12
      %v4633 = vpop.permute.xlu0 %4632
      %4634 = vrot.lane.b32.xlu0 %v4142, 12
      %v4635 = vpop.permute.xlu0 %4634
      %4636 = vrot.lane.b32.xlu0 %v4143, 12
      %v4637 = vpop.permute.xlu0 %4636
      %4638 = vrot.lane.b32.xlu0 %v4144, 12
      %v4639 = vpop.permute.xlu0 %4638
      %4640 = vrot.lane.b32.xlu0 %v4145, 12
      %v4641 = vpop.permute.xlu0 %4640
      %4642 = vrot.lane.b32.xlu0 %v4146, 12
      %v4643 = vpop.permute.xlu0 %4642
      %4644 = vrot.lane.b32.xlu0 %v4147, 12
      %v4645 = vpop.permute.xlu0 %4644
      %4646 = vrot.lane.b32.xlu0 %v4148, 12
      %v4647 = vpop.permute.xlu0 %4646
      %4648 = vrot.lane.b32.xlu0 %v4149, 12
      %v4649 = vpop.permute.xlu0 %4648
      %4650 = vrot.lane.b32.xlu0 %v4150, 12
      %v4651 = vpop.permute.xlu0 %4650
      %4652 = vrot.lane.b32.xlu0 %v4151, 12
      %v4653 = vpop.permute.xlu0 %4652
      %4654 = vrot.lane.b32.xlu0 %v4152, 12
      %v4655 = vpop.permute.xlu0 %4654
      %4656 = vrot.lane.b32.xlu0 %v4153, 12
      %v4657 = vpop.permute.xlu0 %4656
      %4658 = vrot.lane.b32.xlu0 %v4154, 12
      %v4659 = vpop.permute.xlu0 %4658
      %4660 = vrot.lane.b32.xlu0 %v4155, 12
      %v4661 = vpop.permute.xlu0 %4660
      %4662 = vrot.lane.b32.xlu0 %v4156, 12
      %v4663 = vpop.permute.xlu0 %4662
      %4664 = vrot.lane.b32.xlu0 %v4157, 12
      %v4665 = vpop.permute.xlu0 %4664
      %4666 = vrot.lane.b32.xlu0 %v4158, 12
      %v4667 = vpop.permute.xlu0 %4666
      %4668 = vrot.lane.b32.xlu0 %v4159, 12
      %v4669 = vpop.permute.xlu0 %4668
      %4670 = vrot.lane.b32.xlu0 %v4160, 12
      %v4671 = vpop.permute.xlu0 %4670
      %4672 = vrot.lane.b32.xlu0 %v4161, 12
      %v4673 = vpop.permute.xlu0 %4672
      %4674 = vrot.lane.b32.xlu0 %v4162, 12
      %v4675 = vpop.permute.xlu0 %4674
      %4740 = vrot.lane.b32.xlu0 %v4163, 16
      %v4741 = vpop.permute.xlu0 %4740
      %4742 = vrot.lane.b32.xlu0 %v4164, 16
      %v4743 = vpop.permute.xlu0 %4742
      %4744 = vrot.lane.b32.xlu0 %v4165, 16
      %v4745 = vpop.permute.xlu0 %4744
      %4746 = vrot.lane.b32.xlu0 %v4166, 16
      %v4747 = vpop.permute.xlu0 %4746
      %4748 = vrot.lane.b32.xlu0 %v4167, 16
      %v4749 = vpop.permute.xlu0 %4748
      %4750 = vrot.lane.b32.xlu0 %v4168, 16
      %v4751 = vpop.permute.xlu0 %4750
      %4752 = vrot.lane.b32.xlu0 %v4169, 16
      %v4753 = vpop.permute.xlu0 %4752
      %4754 = vrot.lane.b32.xlu0 %v4170, 16
      %v4755 = vpop.permute.xlu0 %4754
      %4756 = vrot.lane.b32.xlu0 %v4171, 16
      %v4757 = vpop.permute.xlu0 %4756
      %4758 = vrot.lane.b32.xlu0 %v4172, 16
      %v4759 = vpop.permute.xlu0 %4758
      %4760 = vrot.lane.b32.xlu0 %v4173, 16
      %v4761 = vpop.permute.xlu0 %4760
      %4762 = vrot.lane.b32.xlu0 %v4174, 16
      %v4763 = vpop.permute.xlu0 %4762
      %4764 = vrot.lane.b32.xlu0 %v4175, 16
      %v4765 = vpop.permute.xlu0 %4764
      %4766 = vrot.lane.b32.xlu0 %v4176, 16
      %v4767 = vpop.permute.xlu0 %4766
      %4768 = vrot.lane.b32.xlu0 %v4177, 16
      %v4769 = vpop.permute.xlu0 %4768
      %4770 = vrot.lane.b32.xlu0 %v4178, 16
      %v4771 = vpop.permute.xlu0 %4770
      %4772 = vrot.lane.b32.xlu0 %v4179, 16
      %v4773 = vpop.permute.xlu0 %4772
      %4774 = vrot.lane.b32.xlu0 %v4180, 16
      %v4775 = vpop.permute.xlu0 %4774
      %4776 = vrot.lane.b32.xlu0 %v4181, 16
      %v4777 = vpop.permute.xlu0 %4776
      %4778 = vrot.lane.b32.xlu0 %v4182, 16
      %v4779 = vpop.permute.xlu0 %4778
      %4780 = vrot.lane.b32.xlu0 %v4183, 16
      %v4781 = vpop.permute.xlu0 %4780
      %4782 = vrot.lane.b32.xlu0 %v4184, 16
      %v4783 = vpop.permute.xlu0 %4782
      %4784 = vrot.lane.b32.xlu0 %v4185, 16
      %v4785 = vpop.permute.xlu0 %4784
      %4786 = vrot.lane.b32.xlu0 %v4186, 16
      %v4787 = vpop.permute.xlu0 %4786
      %4788 = vrot.lane.b32.xlu0 %v4187, 16
      %v4789 = vpop.permute.xlu0 %4788
      %4790 = vrot.lane.b32.xlu0 %v4188, 16
      %v4791 = vpop.permute.xlu0 %4790
      %4792 = vrot.lane.b32.xlu0 %v4189, 16
      %v4793 = vpop.permute.xlu0 %4792
      %4794 = vrot.lane.b32.xlu0 %v4190, 16
      %v4795 = vpop.permute.xlu0 %4794
      %4796 = vrot.lane.b32.xlu0 %v4191, 16
      %v4797 = vpop.permute.xlu0 %4796
      %4798 = vrot.lane.b32.xlu0 %v4192, 16
      %v4799 = vpop.permute.xlu0 %4798
      %4800 = vrot.lane.b32.xlu0 %v4193, 16
      %v4801 = vpop.permute.xlu0 %4800
      %4802 = vrot.lane.b32.xlu0 %v4194, 16
      %v4803 = vpop.permute.xlu0 %4802
      %4868 = vrot.lane.b32.xlu0 %v4195, 20
      %v4869 = vpop.permute.xlu0 %4868
      %4870 = vrot.lane.b32.xlu0 %v4196, 20
      %v4871 = vpop.permute.xlu0 %4870
      %4872 = vrot.lane.b32.xlu0 %v4197, 20
      %v4873 = vpop.permute.xlu0 %4872
      %4874 = vrot.lane.b32.xlu0 %v4198, 20
      %v4875 = vpop.permute.xlu0 %4874
      %4876 = vrot.lane.b32.xlu0 %v4199, 20
      %v4877 = vpop.permute.xlu0 %4876
      %4878 = vrot.lane.b32.xlu0 %v4200, 20
      %v4879 = vpop.permute.xlu0 %4878
      %4880 = vrot.lane.b32.xlu0 %v4201, 20
      %v4881 = vpop.permute.xlu0 %4880
      %4882 = vrot.lane.b32.xlu0 %v4202, 20
      %v4883 = vpop.permute.xlu0 %4882
      %4884 = vrot.lane.b32.xlu0 %v4203, 20
      %v4885 = vpop.permute.xlu0 %4884
      %4886 = vrot.lane.b32.xlu0 %v4204, 20
      %v4887 = vpop.permute.xlu0 %4886
      %4888 = vrot.lane.b32.xlu0 %v4205, 20
      %v4889 = vpop.permute.xlu0 %4888
      %4890 = vrot.lane.b32.xlu0 %v4206, 20
      %v4891 = vpop.permute.xlu0 %4890
      %4892 = vrot.lane.b32.xlu0 %v4207, 20
      %v4893 = vpop.permute.xlu0 %4892
      %4894 = vrot.lane.b32.xlu0 %v4208, 20
      %v4895 = vpop.permute.xlu0 %4894
      %4896 = vrot.lane.b32.xlu0 %v4209, 20
      %v4897 = vpop.permute.xlu0 %4896
      %4898 = vrot.lane.b32.xlu0 %v4210, 20
      %v4899 = vpop.permute.xlu0 %4898
      %4900 = vrot.lane.b32.xlu0 %v4211, 20
      %v4901 = vpop.permute.xlu0 %4900
      %4902 = vrot.lane.b32.xlu0 %v4212, 20
      %v4903 = vpop.permute.xlu0 %4902
      %4904 = vrot.lane.b32.xlu0 %v4213, 20
      %v4905 = vpop.permute.xlu0 %4904
      %4906 = vrot.lane.b32.xlu0 %v4214, 20
      %v4907 = vpop.permute.xlu0 %4906
      %4908 = vrot.lane.b32.xlu0 %v4215, 20
      %v4909 = vpop.permute.xlu0 %4908
      %4910 = vrot.lane.b32.xlu0 %v4216, 20
      %v4911 = vpop.permute.xlu0 %4910
      %4912 = vrot.lane.b32.xlu0 %v4217, 20
      %v4913 = vpop.permute.xlu0 %4912
      %4914 = vrot.lane.b32.xlu0 %v4218, 20
      %v4915 = vpop.permute.xlu0 %4914
      %4916 = vrot.lane.b32.xlu0 %v4219, 20
      %v4917 = vpop.permute.xlu0 %4916
      %4918 = vrot.lane.b32.xlu0 %v4220, 20
      %v4919 = vpop.permute.xlu0 %4918
      %4920 = vrot.lane.b32.xlu0 %v4221, 20
      %v4921 = vpop.permute.xlu0 %4920
      %4922 = vrot.lane.b32.xlu0 %v4222, 20
      %v4923 = vpop.permute.xlu0 %4922
      %4924 = vrot.lane.b32.xlu0 %v4223, 20
      %v4925 = vpop.permute.xlu0 %4924
      %4926 = vrot.lane.b32.xlu0 %v4224, 20
      %v4927 = vpop.permute.xlu0 %4926
      %4928 = vrot.lane.b32.xlu0 %v4225, 20
      %v4929 = vpop.permute.xlu0 %4928
      %4930 = vrot.lane.b32.xlu0 %v4226, 20
      %v4931 = vpop.permute.xlu0 %4930
      %4996 = vrot.lane.b32.xlu0 %v4228, 24
      %v4997 = vpop.permute.xlu0 %4996
      %4998 = vrot.lane.b32.xlu0 %v4229, 24
      %v4999 = vpop.permute.xlu0 %4998
      %5000 = vrot.lane.b32.xlu0 %v4230, 24
      %v5001 = vpop.permute.xlu0 %5000
      %5002 = vrot.lane.b32.xlu0 %v4231, 24
      %v5003 = vpop.permute.xlu0 %5002
      %5004 = vrot.lane.b32.xlu0 %v4232, 24
      %v5005 = vpop.permute.xlu0 %5004
      %5006 = vrot.lane.b32.xlu0 %v4233, 24
      %v5007 = vpop.permute.xlu0 %5006
      %5008 = vrot.lane.b32.xlu0 %v4234, 24
      %v5009 = vpop.permute.xlu0 %5008
      %5010 = vrot.lane.b32.xlu0 %v4235, 24
      %v5011 = vpop.permute.xlu0 %5010
      %5012 = vrot.lane.b32.xlu0 %v4236, 24
      %v5013 = vpop.permute.xlu0 %5012
      %5014 = vrot.lane.b32.xlu0 %v4237, 24
      %v5015 = vpop.permute.xlu0 %5014
      %5016 = vrot.lane.b32.xlu0 %v4238, 24
      %v5017 = vpop.permute.xlu0 %5016
      %5018 = vrot.lane.b32.xlu0 %v4239, 24
      %v5019 = vpop.permute.xlu0 %5018
      %5020 = vrot.lane.b32.xlu0 %v4240, 24
      %v5021 = vpop.permute.xlu0 %5020
      %5022 = vrot.lane.b32.xlu0 %v4241, 24
      %v5023 = vpop.permute.xlu0 %5022
      %5024 = vrot.lane.b32.xlu0 %v4242, 24
      %v5025 = vpop.permute.xlu0 %5024
      %5026 = vrot.lane.b32.xlu0 %v4243, 24
      %v5027 = vpop.permute.xlu0 %5026
      %5028 = vrot.lane.b32.xlu0 %v4244, 24
      %v5029 = vpop.permute.xlu0 %5028
      %5030 = vrot.lane.b32.xlu0 %v4245, 24
      %v5031 = vpop.permute.xlu0 %5030
      %5032 = vrot.lane.b32.xlu0 %v4246, 24
      %v5033 = vpop.permute.xlu0 %5032
      %5034 = vrot.lane.b32.xlu0 %v4247, 24
      %v5035 = vpop.permute.xlu0 %5034
      %5036 = vrot.lane.b32.xlu0 %v4248, 24
      %v5037 = vpop.permute.xlu0 %5036
      %5038 = vrot.lane.b32.xlu0 %v4249, 24
      %v5039 = vpop.permute.xlu0 %5038
      %5040 = vrot.lane.b32.xlu0 %v4250, 24
      %v5041 = vpop.permute.xlu0 %5040
      %5042 = vrot.lane.b32.xlu0 %v4251, 24
      %v5043 = vpop.permute.xlu0 %5042
      %5044 = vrot.lane.b32.xlu0 %v4252, 24
      %v5045 = vpop.permute.xlu0 %5044
      %5046 = vrot.lane.b32.xlu0 %v4253, 24
      %v5047 = vpop.permute.xlu0 %5046
      %5048 = vrot.lane.b32.xlu0 %v4254, 24
      %v5049 = vpop.permute.xlu0 %5048
      %5050 = vrot.lane.b32.xlu0 %v4255, 24
      %v5051 = vpop.permute.xlu0 %5050
      %5052 = vrot.lane.b32.xlu0 %v4256, 24
      %v5053 = vpop.permute.xlu0 %5052
      %5054 = vrot.lane.b32.xlu0 %v4257, 24
      %v5055 = vpop.permute.xlu0 %5054
      %5056 = vrot.lane.b32.xlu0 %v4258, 24
      %v5057 = vpop.permute.xlu0 %5056
      %5058 = vrot.lane.b32.xlu0 %v4259, 24
      %v5059 = vpop.permute.xlu0 %5058
      %5124 = vrot.lane.b32.xlu0 %v4260, 28
      %v5125 = vpop.permute.xlu0 %5124
      %5126 = vrot.lane.b32.xlu0 %v4261, 28
      %v5127 = vpop.permute.xlu0 %5126
      %5128 = vrot.lane.b32.xlu0 %v4262, 28
      %v5129 = vpop.permute.xlu0 %5128
      %5130 = vrot.lane.b32.xlu0 %v4263, 28
      %v5131 = vpop.permute.xlu0 %5130
      %5132 = vrot.lane.b32.xlu0 %v4264, 28
      %v5133 = vpop.permute.xlu0 %5132
      %5134 = vrot.lane.b32.xlu0 %v4265, 28
      %v5135 = vpop.permute.xlu0 %5134
      %5136 = vrot.lane.b32.xlu0 %v4266, 28
      %v5137 = vpop.permute.xlu0 %5136
      %5138 = vrot.lane.b32.xlu0 %v4267, 28
      %v5139 = vpop.permute.xlu0 %5138
      %5140 = vrot.lane.b32.xlu0 %v4268, 28
      %v5141 = vpop.permute.xlu0 %5140
      %5142 = vrot.lane.b32.xlu0 %v4269, 28
      %v5143 = vpop.permute.xlu0 %5142
      %5144 = vrot.lane.b32.xlu0 %v4270, 28
      %v5145 = vpop.permute.xlu0 %5144
      %5146 = vrot.lane.b32.xlu0 %v4271, 28
      %v5147 = vpop.permute.xlu0 %5146
      %5148 = vrot.lane.b32.xlu0 %v4272, 28
      %v5149 = vpop.permute.xlu0 %5148
      %5150 = vrot.lane.b32.xlu0 %v4273, 28
      %v5151 = vpop.permute.xlu0 %5150
      %5152 = vrot.lane.b32.xlu0 %v4274, 28
      %v5153 = vpop.permute.xlu0 %5152
      %5154 = vrot.lane.b32.xlu0 %v4275, 28
      %v5155 = vpop.permute.xlu0 %5154
      %5156 = vrot.lane.b32.xlu0 %v4276, 28
      %v5157 = vpop.permute.xlu0 %5156
      %5158 = vrot.lane.b32.xlu0 %v4277, 28
      %v5159 = vpop.permute.xlu0 %5158
      %5160 = vrot.lane.b32.xlu0 %v4278, 28
      %v5161 = vpop.permute.xlu0 %5160
      %5162 = vrot.lane.b32.xlu0 %v4279, 28
      %v5163 = vpop.permute.xlu0 %5162
      %5164 = vrot.lane.b32.xlu0 %v4280, 28
      %v5165 = vpop.permute.xlu0 %5164
      %5166 = vrot.lane.b32.xlu0 %v4281, 28
      %v5167 = vpop.permute.xlu0 %5166
      %5168 = vrot.lane.b32.xlu0 %v4282, 28
      %v5169 = vpop.permute.xlu0 %5168
      %5170 = vrot.lane.b32.xlu0 %v4283, 28
      %v5171 = vpop.permute.xlu0 %5170
      %5172 = vrot.lane.b32.xlu0 %v4284, 28
      %v5173 = vpop.permute.xlu0 %5172
      %5174 = vrot.lane.b32.xlu0 %v4285, 28
      %v5175 = vpop.permute.xlu0 %5174
      %5176 = vrot.lane.b32.xlu0 %v4286, 28
      %v5177 = vpop.permute.xlu0 %5176
      %5178 = vrot.lane.b32.xlu0 %v4287, 28
      %v5179 = vpop.permute.xlu0 %5178
      %5180 = vrot.lane.b32.xlu0 %v4288, 28
      %v5181 = vpop.permute.xlu0 %5180
      %5182 = vrot.lane.b32.xlu0 %v4289, 28
      %v5183 = vpop.permute.xlu0 %5182
      %5184 = vrot.lane.b32.xlu0 %v4290, 28
      %v5185 = vpop.permute.xlu0 %5184
      %5186 = vrot.lane.b32.xlu0 %v4291, 28
      %v5187 = vpop.permute.xlu0 %5186
      %5252 = vrot.lane.b32.xlu0 %v4292, 32
      %v5253 = vpop.permute.xlu0 %5252
      %5254 = vrot.lane.b32.xlu0 %v4293, 32
      %v5255 = vpop.permute.xlu0 %5254
      %5256 = vrot.lane.b32.xlu0 %v4294, 32
      %v5257 = vpop.permute.xlu0 %5256
      %5258 = vrot.lane.b32.xlu0 %v4295, 32
      %v5259 = vpop.permute.xlu0 %5258
      %5260 = vrot.lane.b32.xlu0 %v4296, 32
      %v5261 = vpop.permute.xlu0 %5260
      %5262 = vrot.lane.b32.xlu0 %v4297, 32
      %v5263 = vpop.permute.xlu0 %5262
      %5264 = vrot.lane.b32.xlu0 %v4298, 32
      %v5265 = vpop.permute.xlu0 %5264
      %5266 = vrot.lane.b32.xlu0 %v4299, 32
      %v5267 = vpop.permute.xlu0 %5266
      %5268 = vrot.lane.b32.xlu0 %v4300, 32
      %v5269 = vpop.permute.xlu0 %5268
      %5270 = vrot.lane.b32.xlu0 %v4301, 32
      %v5271 = vpop.permute.xlu0 %5270
      %5272 = vrot.lane.b32.xlu0 %v4302, 32
      %v5273 = vpop.permute.xlu0 %5272
      %5274 = vrot.lane.b32.xlu0 %v4303, 32
      %v5275 = vpop.permute.xlu0 %5274
      %5276 = vrot.lane.b32.xlu0 %v4304, 32
      %v5277 = vpop.permute.xlu0 %5276
      %5278 = vrot.lane.b32.xlu0 %v4305, 32
      %v5279 = vpop.permute.xlu0 %5278
      %5280 = vrot.lane.b32.xlu0 %v4306, 32
      %v5281 = vpop.permute.xlu0 %5280
      %5282 = vrot.lane.b32.xlu0 %v4307, 32
      %v5283 = vpop.permute.xlu0 %5282
      %5284 = vrot.lane.b32.xlu0 %v4308, 32
      %v5285 = vpop.permute.xlu0 %5284
      %5286 = vrot.lane.b32.xlu0 %v4309, 32
      %v5287 = vpop.permute.xlu0 %5286
      %5288 = vrot.lane.b32.xlu0 %v4310, 32
      %v5289 = vpop.permute.xlu0 %5288
      %5290 = vrot.lane.b32.xlu0 %v4311, 32
      %v5291 = vpop.permute.xlu0 %5290
      %5292 = vrot.lane.b32.xlu0 %v4312, 32
      %v5293 = vpop.permute.xlu0 %5292
      %5294 = vrot.lane.b32.xlu0 %v4313, 32
      %v5295 = vpop.permute.xlu0 %5294
      %5296 = vrot.lane.b32.xlu0 %v4314, 32
      %v5297 = vpop.permute.xlu0 %5296
      %5298 = vrot.lane.b32.xlu0 %v4315, 32
      %v5299 = vpop.permute.xlu0 %5298
      %5300 = vrot.lane.b32.xlu0 %v4316, 32
      %v5301 = vpop.permute.xlu0 %5300
      %5302 = vrot.lane.b32.xlu0 %v4317, 32
      %v5303 = vpop.permute.xlu0 %5302
      %5304 = vrot.lane.b32.xlu0 %v4318, 32
      %v5305 = vpop.permute.xlu0 %5304
      %5306 = vrot.lane.b32.xlu0 %v4319, 32
      %v5307 = vpop.permute.xlu0 %5306
      %5308 = vrot.lane.b32.xlu0 %v4320, 32
      %v5309 = vpop.permute.xlu0 %5308
      %5310 = vrot.lane.b32.xlu0 %v4321, 32
      %v5311 = vpop.permute.xlu0 %5310
      %5312 = vrot.lane.b32.xlu0 %v4322, 32
      %v5313 = vpop.permute.xlu0 %5312
      %5314 = vrot.lane.b32.xlu0 %v4323, 32
      %v5315 = vpop.permute.xlu0 %5314
      %v5348 = vsel %vm320, %v4035, %v4357
      %v5349 = vsel %vm320, %v4036, %v4359
      %v5350 = vsel %vm320, %v4037, %v4361
      %v5351 = vsel %vm320, %v4038, %v4363
      %v5352 = vsel %vm320, %v4039, %v4365
      %v5353 = vsel %vm320, %v4040, %v4367
      %v5354 = vsel %vm320, %v4041, %v4369
      %v5355 = vsel %vm320, %v4042, %v4371
      %v5356 = vsel %vm320, %v4043, %v4373
      %v5357 = vsel %vm320, %v4044, %v4375
      %v5358 = vsel %vm320, %v4045, %v4377
      %v5359 = vsel %vm320, %v4046, %v4379
      %v5360 = vsel %vm320, %v4047, %v4381
      %v5361 = vsel %vm320, %v4048, %v4383
      %v5362 = vsel %vm320, %v4049, %v4385
      %v5363 = vsel %vm320, %v4050, %v4387
      %v5364 = vsel %vm320, %v4051, %v4389
      %v5365 = vsel %vm320, %v4052, %v4391
      %v5366 = vsel %vm320, %v4053, %v4393
      %v5367 = vsel %vm320, %v4054, %v4395
      %v5368 = vsel %vm320, %v4055, %v4397
      %v5369 = vsel %vm320, %v4056, %v4399
      %v5370 = vsel %vm320, %v4057, %v4401
      %v5371 = vsel %vm320, %v4058, %v4403
      %v5372 = vsel %vm320, %v4059, %v4405
      %v5373 = vsel %vm320, %v4060, %v4407
      %v5374 = vsel %vm320, %v4061, %v4409
      %v5375 = vsel %vm320, %v4062, %v4411
      %v5376 = vsel %vm320, %v4063, %v4413
      %v5377 = vsel %vm320, %v4064, %v4415
      %v5378 = vsel %vm320, %v4065, %v4417
      %v5379 = vsel %vm320, %v4066, %v4419
      %v5380 = vsel %vm274, %v5348, %v4485
      %v5381 = vsel %vm274, %v5349, %v4487
      %v5382 = vsel %vm274, %v5350, %v4489
      %v5383 = vsel %vm274, %v5351, %v4491
      %v5384 = vsel %vm274, %v5352, %v4493
      %v5385 = vsel %vm274, %v5353, %v4495
      %v5386 = vsel %vm274, %v5354, %v4497
      %v5387 = vsel %vm274, %v5355, %v4499
      %v5388 = vsel %vm274, %v5356, %v4501
      %v5389 = vsel %vm274, %v5357, %v4503
      %v5390 = vsel %vm274, %v5358, %v4505
      %v5391 = vsel %vm274, %v5359, %v4507
      %v5392 = vsel %vm274, %v5360, %v4509
      %v5393 = vsel %vm274, %v5361, %v4511
      %v5394 = vsel %vm274, %v5362, %v4513
      %v5395 = vsel %vm274, %v5363, %v4515
      %v5396 = vsel %vm274, %v5364, %v4517
      %v5397 = vsel %vm274, %v5365, %v4519
      %v5398 = vsel %vm274, %v5366, %v4521
      %v5399 = vsel %vm274, %v5367, %v4523
      %v5400 = vsel %vm274, %v5368, %v4525
      %v5401 = vsel %vm274, %v5369, %v4527
      %v5402 = vsel %vm274, %v5370, %v4529
      %v5403 = vsel %vm274, %v5371, %v4531
      %v5404 = vsel %vm274, %v5372, %v4533
      %v5405 = vsel %vm274, %v5373, %v4535
      %v5406 = vsel %vm274, %v5374, %v4537
      %v5407 = vsel %vm274, %v5375, %v4539
      %v5408 = vsel %vm274, %v5376, %v4541
      %v5409 = vsel %vm274, %v5377, %v4543
      %v5410 = vsel %vm274, %v5378, %v4545
      %v5411 = vsel %vm274, %v5379, %v4547
      %vm5412 = vcmask 97280
      %v5413 = vsel %vm5412, %v5380, %v4613
      %v5414 = vsel %vm5412, %v5381, %v4615
      %v5415 = vsel %vm5412, %v5382, %v4617
      %v5416 = vsel %vm5412, %v5383, %v4619
      %v5417 = vsel %vm5412, %v5384, %v4621
      %v5418 = vsel %vm5412, %v5385, %v4623
      %v5419 = vsel %vm5412, %v5386, %v4625
      %v5420 = vsel %vm5412, %v5387, %v4627
      %v5421 = vsel %vm5412, %v5388, %v4629
      %v5422 = vsel %vm5412, %v5389, %v4631
      %v5423 = vsel %vm5412, %v5390, %v4633
      %v5424 = vsel %vm5412, %v5391, %v4635
      %v5425 = vsel %vm5412, %v5392, %v4637
      %v5426 = vsel %vm5412, %v5393, %v4639
      %v5427 = vsel %vm5412, %v5394, %v4641
      %v5428 = vsel %vm5412, %v5395, %v4643
      %v5429 = vsel %vm5412, %v5396, %v4645
      %v5430 = vsel %vm5412, %v5397, %v4647
      %v5431 = vsel %vm5412, %v5398, %v4649
      %v5432 = vsel %vm5412, %v5399, %v4651
      %v5433 = vsel %vm5412, %v5400, %v4653
      %v5434 = vsel %vm5412, %v5401, %v4655
      %v5435 = vsel %vm5412, %v5402, %v4657
      %v5436 = vsel %vm5412, %v5403, %v4659
      %v5437 = vsel %vm5412, %v5404, %v4661
      %v5438 = vsel %vm5412, %v5405, %v4663
      %v5439 = vsel %vm5412, %v5406, %v4665
      %v5440 = vsel %vm5412, %v5407, %v4667
      %v5441 = vsel %vm5412, %v5408, %v4669
      %v5442 = vsel %vm5412, %v5409, %v4671
      %v5443 = vsel %vm5412, %v5410, %v4673
      %v5444 = vsel %vm5412, %v5411, %v4675
      %v5445 = vsel %vm2839, %v5413, %v4741
      %v5446 = vsel %vm2839, %v5414, %v4743
      %v5447 = vsel %vm2839, %v5415, %v4745
      %v5448 = vsel %vm2839, %v5416, %v4747
      %v5449 = vsel %vm2839, %v5417, %v4749
      %v5450 = vsel %vm2839, %v5418, %v4751
      %v5451 = vsel %vm2839, %v5419, %v4753
      %v5452 = vsel %vm2839, %v5420, %v4755
      %v5453 = vsel %vm2839, %v5421, %v4757
      %v5454 = vsel %vm2839, %v5422, %v4759
      %v5455 = vsel %vm2839, %v5423, %v4761
      %v5456 = vsel %vm2839, %v5424, %v4763
      %v5457 = vsel %vm2839, %v5425, %v4765
      %v5458 = vsel %vm2839, %v5426, %v4767
      %v5459 = vsel %vm2839, %v5427, %v4769
      %v5460 = vsel %vm2839, %v5428, %v4771
      %v5461 = vsel %vm2839, %v5429, %v4773
      %v5462 = vsel %vm2839, %v5430, %v4775
      %v5463 = vsel %vm2839, %v5431, %v4777
      %v5464 = vsel %vm2839, %v5432, %v4779
      %v5465 = vsel %vm2839, %v5433, %v4781
      %v5466 = vsel %vm2839, %v5434, %v4783
      %v5467 = vsel %vm2839, %v5435, %v4785
      %v5468 = vsel %vm2839, %v5436, %v4787
      %v5469 = vsel %vm2839, %v5437, %v4789
      %v5470 = vsel %vm2839, %v5438, %v4791
      %v5471 = vsel %vm2839, %v5439, %v4793
      %v5472 = vsel %vm2839, %v5440, %v4795
      %v5473 = vsel %vm2839, %v5441, %v4797
      %v5474 = vsel %vm2839, %v5442, %v4799
      %v5475 = vsel %vm2839, %v5443, %v4801
      %v5476 = vsel %vm2839, %v5444, %v4803
      %vm5477 = vcmask 162816
      %v5478 = vsel %vm5477, %v5445, %v4869
      %v5479 = vsel %vm5477, %v5446, %v4871
      %v5480 = vsel %vm5477, %v5447, %v4873
      %v5481 = vsel %vm5477, %v5448, %v4875
      %v5482 = vsel %vm5477, %v5449, %v4877
      %v5483 = vsel %vm5477, %v5450, %v4879
      %v5484 = vsel %vm5477, %v5451, %v4881
      %v5485 = vsel %vm5477, %v5452, %v4883
      %v5486 = vsel %vm5477, %v5453, %v4885
      %v5487 = vsel %vm5477, %v5454, %v4887
      %v5488 = vsel %vm5477, %v5455, %v4889
      %v5489 = vsel %vm5477, %v5456, %v4891
      %v5490 = vsel %vm5477, %v5457, %v4893
      %v5491 = vsel %vm5477, %v5458, %v4895
      %v5492 = vsel %vm5477, %v5459, %v4897
      %v5493 = vsel %vm5477, %v5460, %v4899
      %v5494 = vsel %vm5477, %v5461, %v4901
      %v5495 = vsel %vm5477, %v5462, %v4903
      %v5496 = vsel %vm5477, %v5463, %v4905
      %v5497 = vsel %vm5477, %v5464, %v4907
      %v5498 = vsel %vm5477, %v5465, %v4909
      %v5499 = vsel %vm5477, %v5466, %v4911
      %v5500 = vsel %vm5477, %v5467, %v4913
      %v5501 = vsel %vm5477, %v5468, %v4915
      %v5502 = vsel %vm5477, %v5469, %v4917
      %v5503 = vsel %vm5477, %v5470, %v4919
      %v5504 = vsel %vm5477, %v5471, %v4921
      %v5505 = vsel %vm5477, %v5472, %v4923
      %v5506 = vsel %vm5477, %v5473, %v4925
      %v5507 = vsel %vm5477, %v5474, %v4927
      %v5508 = vsel %vm5477, %v5475, %v4929
      %v5509 = vsel %vm5477, %v5476, %v4931
      %v5510 = vsel %vm2872, %v5478, %v4997
      %v5511 = vsel %vm2872, %v5479, %v4999
      %v5512 = vsel %vm2872, %v5480, %v5001
      %v5513 = vsel %vm2872, %v5481, %v5003
      %v5514 = vsel %vm2872, %v5482, %v5005
      %v5515 = vsel %vm2872, %v5483, %v5007
      %v5516 = vsel %vm2872, %v5484, %v5009
      %v5517 = vsel %vm2872, %v5485, %v5011
      %v5518 = vsel %vm2872, %v5486, %v5013
      %v5519 = vsel %vm2872, %v5487, %v5015
      %v5520 = vsel %vm2872, %v5488, %v5017
      %v5521 = vsel %vm2872, %v5489, %v5019
      %v5522 = vsel %vm2872, %v5490, %v5021
      %v5523 = vsel %vm2872, %v5491, %v5023
      %v5524 = vsel %vm2872, %v5492, %v5025
      %v5525 = vsel %vm2872, %v5493, %v5027
      %v5526 = vsel %vm2872, %v5494, %v5029
      %v5527 = vsel %vm2872, %v5495, %v5031
      %v5528 = vsel %vm2872, %v5496, %v5033
      %v5529 = vsel %vm2872, %v5497, %v5035
      %v5530 = vsel %vm2872, %v5498, %v5037
      %v5531 = vsel %vm2872, %v5499, %v5039
      %v5532 = vsel %vm2872, %v5500, %v5041
      %v5533 = vsel %vm2872, %v5501, %v5043
      %v5534 = vsel %vm2872, %v5502, %v5045
      %v5535 = vsel %vm2872, %v5503, %v5047
      %v5536 = vsel %vm2872, %v5504, %v5049
      %v5537 = vsel %vm2872, %v5505, %v5051
      %v5538 = vsel %vm2872, %v5506, %v5053
      %v5539 = vsel %vm2872, %v5507, %v5055
      %v5540 = vsel %vm2872, %v5508, %v5057
      %v5541 = vsel %vm2872, %v5509, %v5059
      %vm5542 = vcmask 228352
      %v5543 = vsel %vm5542, %v5510, %v5125
      %v5544 = vsel %vm5542, %v5511, %v5127
      %v5545 = vsel %vm5542, %v5512, %v5129
      %v5546 = vsel %vm5542, %v5513, %v5131
      %v5547 = vsel %vm5542, %v5514, %v5133
      %v5548 = vsel %vm5542, %v5515, %v5135
      %v5549 = vsel %vm5542, %v5516, %v5137
      %v5550 = vsel %vm5542, %v5517, %v5139
      %v5551 = vsel %vm5542, %v5518, %v5141
      %v5552 = vsel %vm5542, %v5519, %v5143
      %v5553 = vsel %vm5542, %v5520, %v5145
      %v5554 = vsel %vm5542, %v5521, %v5147
      %v5555 = vsel %vm5542, %v5522, %v5149
      %v5556 = vsel %vm5542, %v5523, %v5151
      %v5557 = vsel %vm5542, %v5524, %v5153
      %v5558 = vsel %vm5542, %v5525, %v5155
      %v5559 = vsel %vm5542, %v5526, %v5157
      %v5560 = vsel %vm5542, %v5527, %v5159
      %v5561 = vsel %vm5542, %v5528, %v5161
      %v5562 = vsel %vm5542, %v5529, %v5163
      %v5563 = vsel %vm5542, %v5530, %v5165
      %v5564 = vsel %vm5542, %v5531, %v5167
      %v5565 = vsel %vm5542, %v5532, %v5169
      %v5566 = vsel %vm5542, %v5533, %v5171
      %v5567 = vsel %vm5542, %v5534, %v5173
      %v5568 = vsel %vm5542, %v5535, %v5175
      %v5569 = vsel %vm5542, %v5536, %v5177
      %v5570 = vsel %vm5542, %v5537, %v5179
      %v5571 = vsel %vm5542, %v5538, %v5181
      %v5572 = vsel %vm5542, %v5539, %v5183
      %v5573 = vsel %vm5542, %v5540, %v5185
      %v5574 = vsel %vm5542, %v5541, %v5187
      %v5575 = vsel %vm2905, %v5543, %v5253
      %v5576 = vsel %vm2905, %v5544, %v5255
      %v5577 = vsel %vm2905, %v5545, %v5257
      %v5578 = vsel %vm2905, %v5546, %v5259
      %v5579 = vsel %vm2905, %v5547, %v5261
      %v5580 = vsel %vm2905, %v5548, %v5263
      %v5581 = vsel %vm2905, %v5549, %v5265
      %v5582 = vsel %vm2905, %v5550, %v5267
      %v5583 = vsel %vm2905, %v5551, %v5269
      %v5584 = vsel %vm2905, %v5552, %v5271
      %v5585 = vsel %vm2905, %v5553, %v5273
      %v5586 = vsel %vm2905, %v5554, %v5275
      %v5587 = vsel %vm2905, %v5555, %v5277
      %v5588 = vsel %vm2905, %v5556, %v5279
      %v5589 = vsel %vm2905, %v5557, %v5281
      %v5590 = vsel %vm2905, %v5558, %v5283
      %v5591 = vsel %vm2905, %v5559, %v5285
      %v5592 = vsel %vm2905, %v5560, %v5287
      %v5593 = vsel %vm2905, %v5561, %v5289
      %v5594 = vsel %vm2905, %v5562, %v5291
      %v5595 = vsel %vm2905, %v5563, %v5293
      %v5596 = vsel %vm2905, %v5564, %v5295
      %v5597 = vsel %vm2905, %v5565, %v5297
      %v5598 = vsel %vm2905, %v5566, %v5299
      %v5599 = vsel %vm2905, %v5567, %v5301
      %v5600 = vsel %vm2905, %v5568, %v5303
      %v5601 = vsel %vm2905, %v5569, %v5305
      %v5602 = vsel %vm2905, %v5570, %v5307
      %v5603 = vsel %vm2905, %v5571, %v5309
      %v5604 = vsel %vm2905, %v5572, %v5311
      %v5605 = vsel %vm2905, %v5573, %v5313
      %v5606 = vsel %vm2905, %v5574, %v5315
      %v5607 = vpack.c.bf16 %v5576, %v5575
      %v5608 = vpack.c.bf16 %v5578, %v5577
      %v5609 = vpack.c.bf16 %v5580, %v5579
      %v5610 = vpack.c.bf16 %v5582, %v5581
      %v5611 = vpack.c.bf16 %v5584, %v5583
      %v5612 = vpack.c.bf16 %v5586, %v5585
      %v5613 = vpack.c.bf16 %v5588, %v5587
      %v5614 = vpack.c.bf16 %v5590, %v5589
      %v5615 = vpack.c.bf16 %v5592, %v5591
      %v5616 = vpack.c.bf16 %v5594, %v5593
      %v5617 = vpack.c.bf16 %v5596, %v5595
      %v5618 = vpack.c.bf16 %v5598, %v5597
      %v5619 = vpack.c.bf16 %v5600, %v5599
      %v5620 = vpack.c.bf16 %v5602, %v5601
      %v5621 = vpack.c.bf16 %v5604, %v5603
      %v5622 = vpack.c.bf16 %v5606, %v5605
      %v5623 = vld [vmem:[%s4] sm:$0xf]
      %v5624 = vld [vmem:[%s4 + $0x4] sm:$0xf]
      %v5625 = vld [vmem:[%s4 + $0x8] sm:$0xf]
      %v5626 = vld [vmem:[%s4 + $0xc] sm:$0xf]
      %v5627 = vld [vmem:[%s4 + $0x10] sm:$0x3]
      %v5633 = vunpack.c.l.b16 %v5623
      %v5634 = vunpack.c.l.b16 %v5624
      %v5635 = vunpack.c.l.b16 %v5625
      %v5636 = vunpack.c.l.b16 %v5626
      %v5637 = vunpack.c.l.b16 %v5627
      %v5638 = vpack.c.b16 %v5634, %v5633
      %v5639 = vpack.c.b16 %v5636, %v5635
      %v5640 = vpack.c.b16 %v5637, %v5637
      %vm5643 = vcmask 293888
      %v5645 = vsel %vm5643, %v5607, 0
      %v5648 = vsel %vm5643, %v5608, 0
      %v5651 = vsel %vm5643, %v5609, 0
      %v5654 = vsel %vm5643, %v5610, 0
      %v5657 = vsel %vm5643, %v5611, 0
      %v5660 = vsel %vm5643, %v5612, 0
      %v5663 = vsel %vm5643, %v5613, 0
      %v5666 = vsel %vm5643, %v5614, 0
      %v5669 = vsel %vm5643, %v5615, 0
      %v5672 = vsel %vm5643, %v5616, 0
      %v5675 = vsel %vm5643, %v5617, 0
      %v5678 = vsel %vm5643, %v5618, 0
      %v5681 = vsel %vm5643, %v5619, 0
      %v5684 = vsel %vm5643, %v5620, 0
      %v5687 = vsel %vm5643, %v5621, 0
      %v5690 = vsel %vm5643, %v5622, 0
      %vm5692 = vcmask 1041408
      %v5694 = vsel %vm5692, %v5640, 0
      %5696 = vmatpush.bf16.msra.mxu0 0
      %5697 = vmatpush.bf16.msra.mxu0 0
      %5698 = vmatpush.bf16.msra.mxu0 0
      %5699 = vmatpush.bf16.msra.mxu0 0
      %5700 = vmatpush.bf16.msra.mxu0 0
      %5701 = vmatpush.bf16.msra.mxu0 %v5694
      %5702 = vmatpush.bf16.msra.mxu0 %v5639
      %5703 = vmatpush.bf16.msra.mxu0 %v5638
      %5704 = vmatmul.bf16.gmra.mxu0 %v5645
      %v5705 = vpop.f32.mrf.mxu0
      %v5706 = vadd.f32 0.0, %v5705
      %v5707 = vpop.f32.mrf.mxu0
      %v5708 = vadd.f32 0.0, %v5707
      %5709 = vmatmul.bf16.gmra.mxu0 %v5648
      %v5710 = vpop.f32.mrf.mxu0
      %v5711 = vadd.f32 0.0, %v5710
      %v5712 = vpop.f32.mrf.mxu0
      %v5713 = vadd.f32 0.0, %v5712
      %5714 = vmatmul.bf16.gmra.mxu0 %v5651
      %v5715 = vpop.f32.mrf.mxu0
      %v5716 = vadd.f32 0.0, %v5715
      %v5717 = vpop.f32.mrf.mxu0
      %v5718 = vadd.f32 0.0, %v5717
      %5719 = vmatmul.bf16.gmra.mxu0 %v5654
      %v5720 = vpop.f32.mrf.mxu0
      %v5721 = vadd.f32 0.0, %v5720
      %v5722 = vpop.f32.mrf.mxu0
      %v5723 = vadd.f32 0.0, %v5722
      %5724 = vmatmul.bf16.gmra.mxu0 %v5657
      %v5725 = vpop.f32.mrf.mxu0
      %v5726 = vadd.f32 0.0, %v5725
      %v5727 = vpop.f32.mrf.mxu0
      %v5728 = vadd.f32 0.0, %v5727
      %5729 = vmatmul.bf16.gmra.mxu0 %v5660
      %v5730 = vpop.f32.mrf.mxu0
      %v5731 = vadd.f32 0.0, %v5730
      %v5732 = vpop.f32.mrf.mxu0
      %v5733 = vadd.f32 0.0, %v5732
      %5734 = vmatmul.bf16.gmra.mxu0 %v5663
      %v5735 = vpop.f32.mrf.mxu0
      %v5736 = vadd.f32 0.0, %v5735
      %v5737 = vpop.f32.mrf.mxu0
      %v5738 = vadd.f32 0.0, %v5737
      %5739 = vmatmul.bf16.gmra.mxu0 %v5666
      %v5740 = vpop.f32.mrf.mxu0
      %v5741 = vadd.f32 0.0, %v5740
      %v5742 = vpop.f32.mrf.mxu0
      %v5743 = vadd.f32 0.0, %v5742
      %5744 = vmatmul.bf16.gmra.mxu0 %v5669
      %v5745 = vpop.f32.mrf.mxu0
      %v5746 = vadd.f32 0.0, %v5745
      %v5747 = vpop.f32.mrf.mxu0
      %v5748 = vadd.f32 0.0, %v5747
      %5749 = vmatmul.bf16.gmra.mxu0 %v5672
      %v5750 = vpop.f32.mrf.mxu0
      %v5751 = vadd.f32 0.0, %v5750
      %v5752 = vpop.f32.mrf.mxu0
      %v5753 = vadd.f32 0.0, %v5752
      %5754 = vmatmul.bf16.gmra.mxu0 %v5675
      %v5755 = vpop.f32.mrf.mxu0
      %v5756 = vadd.f32 0.0, %v5755
      %v5757 = vpop.f32.mrf.mxu0
      %v5758 = vadd.f32 0.0, %v5757
      %5759 = vmatmul.bf16.gmra.mxu0 %v5678
      %v5760 = vpop.f32.mrf.mxu0
      %v5761 = vadd.f32 0.0, %v5760
      %v5762 = vpop.f32.mrf.mxu0
      %v5763 = vadd.f32 0.0, %v5762
      %5764 = vmatmul.bf16.gmra.mxu0 %v5681
      %v5765 = vpop.f32.mrf.mxu0
      %v5766 = vadd.f32 0.0, %v5765
      %v5767 = vpop.f32.mrf.mxu0
      %v5768 = vadd.f32 0.0, %v5767
      %5769 = vmatmul.bf16.gmra.mxu0 %v5684
      %v5770 = vpop.f32.mrf.mxu0
      %v5771 = vadd.f32 0.0, %v5770
      %v5772 = vpop.f32.mrf.mxu0
      %v5773 = vadd.f32 0.0, %v5772
      %5774 = vmatmul.bf16.gmra.mxu0 %v5687
      %v5775 = vpop.f32.mrf.mxu0
      %v5776 = vadd.f32 0.0, %v5775
      %v5777 = vpop.f32.mrf.mxu0
      %v5778 = vadd.f32 0.0, %v5777
      %5779 = vmatmul.bf16.gmra.mxu0 %v5690
      %v5780 = vpop.f32.mrf.mxu0
      %v5781 = vadd.f32 0.0, %v5780
      %v5782 = vpop.f32.mrf.mxu0
      %v5783 = vadd.f32 0.0, %v5782
      %5784 = vdwg.mxu0
      %v5785 = vsel %vm320, %v5706, 0.0
      %v5786 = vsel %vm320, %v5708, 0.0
      %v5787 = vadd.f32 %v5785, %v5786
      %v5788 = vsel %vm320, %v5711, 0.0
      %v5789 = vadd.f32 %v5787, %v5788
      %v5790 = vsel %vm320, %v5713, 0.0
      %v5791 = vadd.f32 %v5789, %v5790
      %v5792 = vsel %vm320, %v5716, 0.0
      %v5793 = vadd.f32 %v5791, %v5792
      %v5794 = vsel %vm320, %v5718, 0.0
      %v5795 = vadd.f32 %v5793, %v5794
      %v5796 = vsel %vm320, %v5721, 0.0
      %v5797 = vadd.f32 %v5795, %v5796
      %v5798 = vsel %vm320, %v5723, 0.0
      %v5799 = vadd.f32 %v5797, %v5798
      %v5800 = vsel %vm320, %v5726, 0.0
      %v5801 = vadd.f32 %v5799, %v5800
      %v5802 = vsel %vm320, %v5728, 0.0
      %v5803 = vadd.f32 %v5801, %v5802
      %v5804 = vsel %vm320, %v5731, 0.0
      %v5805 = vadd.f32 %v5803, %v5804
      %v5806 = vsel %vm320, %v5733, 0.0
      %v5807 = vadd.f32 %v5805, %v5806
      %v5808 = vsel %vm320, %v5736, 0.0
      %v5809 = vadd.f32 %v5807, %v5808
      %v5810 = vsel %vm320, %v5738, 0.0
      %v5811 = vadd.f32 %v5809, %v5810
      %v5812 = vsel %vm320, %v5741, 0.0
      %v5813 = vadd.f32 %v5811, %v5812
      %v5814 = vsel %vm320, %v5743, 0.0
      %v5815 = vadd.f32 %v5813, %v5814
      %v5816 = vsel %vm320, %v5746, 0.0
      %v5817 = vadd.f32 %v5815, %v5816
      %v5818 = vsel %vm320, %v5748, 0.0
      %v5819 = vadd.f32 %v5817, %v5818
      %v5820 = vsel %vm320, %v5751, 0.0
      %v5821 = vadd.f32 %v5819, %v5820
      %v5822 = vsel %vm320, %v5753, 0.0
      %v5823 = vadd.f32 %v5821, %v5822
      %v5824 = vsel %vm320, %v5756, 0.0
      %v5825 = vadd.f32 %v5823, %v5824
      %v5826 = vsel %vm320, %v5758, 0.0
      %v5827 = vadd.f32 %v5825, %v5826
      %v5828 = vsel %vm320, %v5761, 0.0
      %v5829 = vadd.f32 %v5827, %v5828
      %v5830 = vsel %vm320, %v5763, 0.0
      %v5831 = vadd.f32 %v5829, %v5830
      %v5832 = vsel %vm320, %v5766, 0.0
      %v5833 = vadd.f32 %v5831, %v5832
      %v5834 = vsel %vm320, %v5768, 0.0
      %v5835 = vadd.f32 %v5833, %v5834
      %v5836 = vsel %vm320, %v5771, 0.0
      %v5837 = vadd.f32 %v5835, %v5836
      %v5838 = vsel %vm320, %v5773, 0.0
      %v5839 = vadd.f32 %v5837, %v5838
      %v5840 = vsel %vm320, %v5776, 0.0
      %v5841 = vadd.f32 %v5839, %v5840
      %v5842 = vsel %vm320, %v5778, 0.0
      %v5843 = vadd.f32 %v5841, %v5842
      %v5844 = vsel %vm320, %v5781, 0.0
      %v5845 = vadd.f32 %v5843, %v5844
      %v5846 = vsel %vm320, %v5783, 0.0
      %v5847 = vadd.f32 %v5845, %v5846
      %v5848 = vrot.slane %v5847, 4
      %v5849 = vadd.f32 %v5847, %v5848
      %v5850 = vrot.slane %v5849, 2
      %v5851 = vadd.f32 %v5849, %v5850
      %v5852 = vrot.slane %v5851, 1
      %v5853 = vadd.f32 %v5851, %v5852
      %v5854 = vmul.f32 %v5853, %v3339
      %v5855 = vsub.f32 %v5706, %v5854
      %v5856 = vsub.f32 %v5708, %v5854
      %v5857 = vsub.f32 %v5711, %v5854
      %v5858 = vsub.f32 %v5713, %v5854
      %v5859 = vsub.f32 %v5716, %v5854
      %v5860 = vsub.f32 %v5718, %v5854
      %v5861 = vsub.f32 %v5721, %v5854
      %v5862 = vsub.f32 %v5723, %v5854
      %v5863 = vsub.f32 %v5726, %v5854
      %v5864 = vsub.f32 %v5728, %v5854
      %v5865 = vsub.f32 %v5731, %v5854
      %v5866 = vsub.f32 %v5733, %v5854
      %v5867 = vsub.f32 %v5736, %v5854
      %v5868 = vsub.f32 %v5738, %v5854
      %v5869 = vsub.f32 %v5741, %v5854
      %v5870 = vsub.f32 %v5743, %v5854
      %v5871 = vsub.f32 %v5746, %v5854
      %v5872 = vsub.f32 %v5748, %v5854
      %v5873 = vsub.f32 %v5751, %v5854
      %v5874 = vsub.f32 %v5753, %v5854
      %v5875 = vsub.f32 %v5756, %v5854
      %v5876 = vsub.f32 %v5758, %v5854
      %v5877 = vsub.f32 %v5761, %v5854
      %v5878 = vsub.f32 %v5763, %v5854
      %v5879 = vsub.f32 %v5766, %v5854
      %v5880 = vsub.f32 %v5768, %v5854
      %v5881 = vsub.f32 %v5771, %v5854
      %v5882 = vsub.f32 %v5773, %v5854
      %v5883 = vsub.f32 %v5776, %v5854
      %v5884 = vsub.f32 %v5778, %v5854
      %v5885 = vsub.f32 %v5781, %v5854
      %v5886 = vsub.f32 %v5783, %v5854
      %v5887 = vmul.f32 %v5855, %v5855
      %v5888 = vmul.f32 %v5856, %v5856
      %v5889 = vmul.f32 %v5857, %v5857
      %v5890 = vmul.f32 %v5858, %v5858
      %v5891 = vmul.f32 %v5859, %v5859
      %v5892 = vmul.f32 %v5860, %v5860
      %v5893 = vmul.f32 %v5861, %v5861
      %v5894 = vmul.f32 %v5862, %v5862
      %v5895 = vmul.f32 %v5863, %v5863
      %v5896 = vmul.f32 %v5864, %v5864
      %v5897 = vmul.f32 %v5865, %v5865
      %v5898 = vmul.f32 %v5866, %v5866
      %v5899 = vmul.f32 %v5867, %v5867
      %v5900 = vmul.f32 %v5868, %v5868
      %v5901 = vmul.f32 %v5869, %v5869
      %v5902 = vmul.f32 %v5870, %v5870
      %v5903 = vmul.f32 %v5871, %v5871
      %v5904 = vmul.f32 %v5872, %v5872
      %v5905 = vmul.f32 %v5873, %v5873
      %v5906 = vmul.f32 %v5874, %v5874
      %v5907 = vmul.f32 %v5875, %v5875
      %v5908 = vmul.f32 %v5876, %v5876
      %v5909 = vmul.f32 %v5877, %v5877
      %v5910 = vmul.f32 %v5878, %v5878
      %v5911 = vmul.f32 %v5879, %v5879
      %v5912 = vmul.f32 %v5880, %v5880
      %v5913 = vmul.f32 %v5881, %v5881
      %v5914 = vmul.f32 %v5882, %v5882
      %v5915 = vmul.f32 %v5883, %v5883
      %v5916 = vmul.f32 %v5884, %v5884
      %v5917 = vmul.f32 %v5885, %v5885
      %v5918 = vmul.f32 %v5886, %v5886
      %v5919 = vsel %vm320, %v5887, 0.0
      %v5920 = vsel %vm320, %v5888, 0.0
      %v5921 = vadd.f32 %v5919, %v5920
      %v5922 = vsel %vm320, %v5889, 0.0
      %v5923 = vadd.f32 %v5921, %v5922
      %v5924 = vsel %vm320, %v5890, 0.0
      %v5925 = vadd.f32 %v5923, %v5924
      %v5926 = vsel %vm320, %v5891, 0.0
      %v5927 = vadd.f32 %v5925, %v5926
      %v5928 = vsel %vm320, %v5892, 0.0
      %v5929 = vadd.f32 %v5927, %v5928
      %v5930 = vsel %vm320, %v5893, 0.0
      %v5931 = vadd.f32 %v5929, %v5930
      %v5932 = vsel %vm320, %v5894, 0.0
      %v5933 = vadd.f32 %v5931, %v5932
      %v5934 = vsel %vm320, %v5895, 0.0
      %v5935 = vadd.f32 %v5933, %v5934
      %v5936 = vsel %vm320, %v5896, 0.0
      %v5937 = vadd.f32 %v5935, %v5936
      %v5938 = vsel %vm320, %v5897, 0.0
      %v5939 = vadd.f32 %v5937, %v5938
      %v5940 = vsel %vm320, %v5898, 0.0
      %v5941 = vadd.f32 %v5939, %v5940
      %v5942 = vsel %vm320, %v5899, 0.0
      %v5943 = vadd.f32 %v5941, %v5942
      %v5944 = vsel %vm320, %v5900, 0.0
      %v5945 = vadd.f32 %v5943, %v5944
      %v5946 = vsel %vm320, %v5901, 0.0
      %v5947 = vadd.f32 %v5945, %v5946
      %v5948 = vsel %vm320, %v5902, 0.0
      %v5949 = vadd.f32 %v5947, %v5948
      %v5950 = vsel %vm320, %v5903, 0.0
      %v5951 = vadd.f32 %v5949, %v5950
      %v5952 = vsel %vm320, %v5904, 0.0
      %v5953 = vadd.f32 %v5951, %v5952
      %v5954 = vsel %vm320, %v5905, 0.0
      %v5955 = vadd.f32 %v5953, %v5954
      %v5956 = vsel %vm320, %v5906, 0.0
      %v5957 = vadd.f32 %v5955, %v5956
      %v5958 = vsel %vm320, %v5907, 0.0
      %v5959 = vadd.f32 %v5957, %v5958
      %v5960 = vsel %vm320, %v5908, 0.0
      %v5961 = vadd.f32 %v5959, %v5960
      %v5962 = vsel %vm320, %v5909, 0.0
      %v5963 = vadd.f32 %v5961, %v5962
      %v5964 = vsel %vm320, %v5910, 0.0
      %v5965 = vadd.f32 %v5963, %v5964
      %v5966 = vsel %vm320, %v5911, 0.0
      %v5967 = vadd.f32 %v5965, %v5966
      %v5968 = vsel %vm320, %v5912, 0.0
      %v5969 = vadd.f32 %v5967, %v5968
      %v5970 = vsel %vm320, %v5913, 0.0
      %v5971 = vadd.f32 %v5969, %v5970
      %v5972 = vsel %vm320, %v5914, 0.0
      %v5973 = vadd.f32 %v5971, %v5972
      %v5974 = vsel %vm320, %v5915, 0.0
      %v5975 = vadd.f32 %v5973, %v5974
      %v5976 = vsel %vm320, %v5916, 0.0
      %v5977 = vadd.f32 %v5975, %v5976
      %v5978 = vsel %vm320, %v5917, 0.0
      %v5979 = vadd.f32 %v5977, %v5978
      %v5980 = vsel %vm320, %v5918, 0.0
      %v5981 = vadd.f32 %v5979, %v5980
      %v5982 = vrot.slane %v5981, 4
      %v5983 = vadd.f32 %v5981, %v5982
      %v5984 = vrot.slane %v5983, 2
      %v5985 = vadd.f32 %v5983, %v5984
      %v5986 = vrot.slane %v5985, 1
      %v5987 = vadd.f32 %v5985, %v5986
      %v5988 = vmul.f32 %v5987, %v3339
      %v5989 = vadd.f32 %v5988, 1e-05
      %v5990 = vrsqrt.pop %v5989
      %v5991 = vmul.f32 %v5990, %v5989
      %v5992 = vmul.f32 %v5991, %v5990
      %v5993 = vmul.f32 0.5, %v5992
      %v5994 = vsub.f32 1.5, %v5993
      %v5995 = vmul.f32 %v5990, %v5994
      %vm5996 = vweird.f32 %v5989
      %vm5997 = vweird.f32 %v5990
      %vm5998 = vmor %vm5996, %vm5997
      %v5999 = vsel %vm5998, %v5990, %v5995
      %v6000 = vmul.f32 %v5855, %v5999
      %v6001 = vmul.f32 %v5856, %v5999
      %v6002 = vmul.f32 %v5857, %v5999
      %v6003 = vmul.f32 %v5858, %v5999
      %v6004 = vmul.f32 %v5859, %v5999
      %v6005 = vmul.f32 %v5860, %v5999
      %v6006 = vmul.f32 %v5861, %v5999
      %v6007 = vmul.f32 %v5862, %v5999
      %v6008 = vmul.f32 %v5863, %v5999
      %v6009 = vmul.f32 %v5864, %v5999
      %v6010 = vmul.f32 %v5865, %v5999
      %v6011 = vmul.f32 %v5866, %v5999
      %v6012 = vmul.f32 %v5867, %v5999
      %v6013 = vmul.f32 %v5868, %v5999
      %v6014 = vmul.f32 %v5869, %v5999
      %v6015 = vmul.f32 %v5870, %v5999
      %v6016 = vmul.f32 %v5871, %v5999
      %v6017 = vmul.f32 %v5872, %v5999
      %v6018 = vmul.f32 %v5873, %v5999
      %v6019 = vmul.f32 %v5874, %v5999
      %v6020 = vmul.f32 %v5875, %v5999
      %v6021 = vmul.f32 %v5876, %v5999
      %v6022 = vmul.f32 %v5877, %v5999
      %v6023 = vmul.f32 %v5878, %v5999
      %v6024 = vmul.f32 %v5879, %v5999
      %v6025 = vmul.f32 %v5880, %v5999
      %v6026 = vmul.f32 %v5881, %v5999
      %v6027 = vmul.f32 %v5882, %v5999
      %v6028 = vmul.f32 %v5883, %v5999
      %v6029 = vmul.f32 %v5884, %v5999
      %v6030 = vmul.f32 %v5885, %v5999
      %v6031 = vmul.f32 %v5886, %v5999
      %v6032 = vperm.slane %v273, 2
      %v6033 = vmul.f32 %v6000, %v6032
      %v6034 = vmul.f32 %v6001, %v6032
      %v6035 = vmul.f32 %v6002, %v6032
      %v6036 = vmul.f32 %v6003, %v6032
      %v6037 = vmul.f32 %v6004, %v6032
      %v6038 = vmul.f32 %v6005, %v6032
      %v6039 = vmul.f32 %v6006, %v6032
      %v6040 = vmul.f32 %v6007, %v6032
      %v6041 = vmul.f32 %v6008, %v6032
      %v6042 = vmul.f32 %v6009, %v6032
      %v6043 = vmul.f32 %v6010, %v6032
      %v6044 = vmul.f32 %v6011, %v6032
      %v6045 = vmul.f32 %v6012, %v6032
      %v6046 = vmul.f32 %v6013, %v6032
      %v6047 = vmul.f32 %v6014, %v6032
      %v6048 = vmul.f32 %v6015, %v6032
      %v6049 = vmul.f32 %v6016, %v6032
      %v6050 = vmul.f32 %v6017, %v6032
      %v6051 = vmul.f32 %v6018, %v6032
      %v6052 = vmul.f32 %v6019, %v6032
      %v6053 = vmul.f32 %v6020, %v6032
      %v6054 = vmul.f32 %v6021, %v6032
      %v6055 = vmul.f32 %v6022, %v6032
      %v6056 = vmul.f32 %v6023, %v6032
      %v6057 = vmul.f32 %v6024, %v6032
      %v6058 = vmul.f32 %v6025, %v6032
      %v6059 = vmul.f32 %v6026, %v6032
      %v6060 = vmul.f32 %v6027, %v6032
      %v6061 = vmul.f32 %v6028, %v6032
      %v6062 = vmul.f32 %v6029, %v6032
      %v6063 = vmul.f32 %v6030, %v6032
      %v6064 = vmul.f32 %v6031, %v6032
      %v6065 = vperm.slane %v273, 3
      %v6066 = vadd.f32 %v6033, %v6065
      %v6067 = vadd.f32 %v6034, %v6065
      %v6068 = vadd.f32 %v6035, %v6065
      %v6069 = vadd.f32 %v6036, %v6065
      %v6070 = vadd.f32 %v6037, %v6065
      %v6071 = vadd.f32 %v6038, %v6065
      %v6072 = vadd.f32 %v6039, %v6065
      %v6073 = vadd.f32 %v6040, %v6065
      %v6074 = vadd.f32 %v6041, %v6065
      %v6075 = vadd.f32 %v6042, %v6065
      %v6076 = vadd.f32 %v6043, %v6065
      %v6077 = vadd.f32 %v6044, %v6065
      %v6078 = vadd.f32 %v6045, %v6065
      %v6079 = vadd.f32 %v6046, %v6065
      %v6080 = vadd.f32 %v6047, %v6065
      %v6081 = vadd.f32 %v6048, %v6065
      %v6082 = vadd.f32 %v6049, %v6065
      %v6083 = vadd.f32 %v6050, %v6065
      %v6084 = vadd.f32 %v6051, %v6065
      %v6085 = vadd.f32 %v6052, %v6065
      %v6086 = vadd.f32 %v6053, %v6065
      %v6087 = vadd.f32 %v6054, %v6065
      %v6088 = vadd.f32 %v6055, %v6065
      %v6089 = vadd.f32 %v6056, %v6065
      %v6090 = vadd.f32 %v6057, %v6065
      %v6091 = vadd.f32 %v6058, %v6065
      %v6092 = vadd.f32 %v6059, %v6065
      %v6093 = vadd.f32 %v6060, %v6065
      %v6094 = vadd.f32 %v6061, %v6065
      %v6095 = vadd.f32 %v6062, %v6065
      %v6096 = vadd.f32 %v6063, %v6065
      %v6097 = vadd.f32 %v6064, %v6065
      %6130 = vrot.lane.b32.xlu0 %v3970, 124
      %v6131 = vpop.permute.xlu0 %6130
      %6132 = vrot.lane.b32.xlu0 %v3971, 124
      %v6133 = vpop.permute.xlu0 %6132
      %6134 = vrot.lane.b32.xlu0 %v3972, 124
      %v6135 = vpop.permute.xlu0 %6134
      %6136 = vrot.lane.b32.xlu0 %v3973, 124
      %v6137 = vpop.permute.xlu0 %6136
      %6138 = vrot.lane.b32.xlu0 %v3974, 124
      %v6139 = vpop.permute.xlu0 %6138
      %6140 = vrot.lane.b32.xlu0 %v3975, 124
      %v6141 = vpop.permute.xlu0 %6140
      %6142 = vrot.lane.b32.xlu0 %v3976, 124
      %v6143 = vpop.permute.xlu0 %6142
      %6144 = vrot.lane.b32.xlu0 %v3977, 124
      %v6145 = vpop.permute.xlu0 %6144
      %6146 = vrot.lane.b32.xlu0 %v3978, 124
      %v6147 = vpop.permute.xlu0 %6146
      %6148 = vrot.lane.b32.xlu0 %v3979, 124
      %v6149 = vpop.permute.xlu0 %6148
      %6150 = vrot.lane.b32.xlu0 %v3980, 124
      %v6151 = vpop.permute.xlu0 %6150
      %6152 = vrot.lane.b32.xlu0 %v3981, 124
      %v6153 = vpop.permute.xlu0 %6152
      %6154 = vrot.lane.b32.xlu0 %v3982, 124
      %v6155 = vpop.permute.xlu0 %6154
      %6156 = vrot.lane.b32.xlu0 %v3983, 124
      %v6157 = vpop.permute.xlu0 %6156
      %6158 = vrot.lane.b32.xlu0 %v3984, 124
      %v6159 = vpop.permute.xlu0 %6158
      %6160 = vrot.lane.b32.xlu0 %v3985, 124
      %v6161 = vpop.permute.xlu0 %6160
      %6162 = vrot.lane.b32.xlu0 %v3986, 124
      %v6163 = vpop.permute.xlu0 %6162
      %6164 = vrot.lane.b32.xlu0 %v3987, 124
      %v6165 = vpop.permute.xlu0 %6164
      %6166 = vrot.lane.b32.xlu0 %v3988, 124
      %v6167 = vpop.permute.xlu0 %6166
      %6168 = vrot.lane.b32.xlu0 %v3989, 124
      %v6169 = vpop.permute.xlu0 %6168
      %6170 = vrot.lane.b32.xlu0 %v3990, 124
      %v6171 = vpop.permute.xlu0 %6170
      %6172 = vrot.lane.b32.xlu0 %v3991, 124
      %v6173 = vpop.permute.xlu0 %6172
      %6174 = vrot.lane.b32.xlu0 %v3992, 124
      %v6175 = vpop.permute.xlu0 %6174
      %6176 = vrot.lane.b32.xlu0 %v3993, 124
      %v6177 = vpop.permute.xlu0 %6176
      %6178 = vrot.lane.b32.xlu0 %v3994, 124
      %v6179 = vpop.permute.xlu0 %6178
      %6180 = vrot.lane.b32.xlu0 %v3995, 124
      %v6181 = vpop.permute.xlu0 %6180
      %6182 = vrot.lane.b32.xlu0 %v3996, 124
      %v6183 = vpop.permute.xlu0 %6182
      %6184 = vrot.lane.b32.xlu0 %v3997, 124
      %v6185 = vpop.permute.xlu0 %6184
      %6186 = vrot.lane.b32.xlu0 %v3998, 124
      %v6187 = vpop.permute.xlu0 %6186
      %6188 = vrot.lane.b32.xlu0 %v3999, 124
      %v6189 = vpop.permute.xlu0 %6188
      %6190 = vrot.lane.b32.xlu0 %v4000, 124
      %v6191 = vpop.permute.xlu0 %6190
      %6192 = vrot.lane.b32.xlu0 %v4001, 124
      %v6193 = vpop.permute.xlu0 %6192
      %v6226 = vadd.f32 %v6066, %v6131
      %v6227 = vadd.f32 %v6067, %v6133
      %v6228 = vadd.f32 %v6068, %v6135
      %v6229 = vadd.f32 %v6069, %v6137
      %v6230 = vadd.f32 %v6070, %v6139
      %v6231 = vadd.f32 %v6071, %v6141
      %v6232 = vadd.f32 %v6072, %v6143
      %v6233 = vadd.f32 %v6073, %v6145
      %v6234 = vadd.f32 %v6074, %v6147
      %v6235 = vadd.f32 %v6075, %v6149
      %v6236 = vadd.f32 %v6076, %v6151
      %v6237 = vadd.f32 %v6077, %v6153
      %v6238 = vadd.f32 %v6078, %v6155
      %v6239 = vadd.f32 %v6079, %v6157
      %v6240 = vadd.f32 %v6080, %v6159
      %v6241 = vadd.f32 %v6081, %v6161
      %v6242 = vadd.f32 %v6082, %v6163
      %v6243 = vadd.f32 %v6083, %v6165
      %v6244 = vadd.f32 %v6084, %v6167
      %v6245 = vadd.f32 %v6085, %v6169
      %v6246 = vadd.f32 %v6086, %v6171
      %v6247 = vadd.f32 %v6087, %v6173
      %v6248 = vadd.f32 %v6088, %v6175
      %v6249 = vadd.f32 %v6089, %v6177
      %v6250 = vadd.f32 %v6090, %v6179
      %v6251 = vadd.f32 %v6091, %v6181
      %v6252 = vadd.f32 %v6092, %v6183
      %v6253 = vadd.f32 %v6093, %v6185
      %v6254 = vadd.f32 %v6094, %v6187
      %v6255 = vadd.f32 %v6095, %v6189
      %v6256 = vadd.f32 %v6096, %v6191
      %v6257 = vadd.f32 %v6097, %v6193
      %vm6258 = vcmp.ge.f32.partialorder %v6226, 0.0
      %vm6259 = vcmp.ge.f32.partialorder %v6227, 0.0
      %vm6260 = vcmp.ge.f32.partialorder %v6228, 0.0
      %vm6261 = vcmp.ge.f32.partialorder %v6229, 0.0
      %vm6262 = vcmp.ge.f32.partialorder %v6230, 0.0
      %vm6263 = vcmp.ge.f32.partialorder %v6231, 0.0
      %vm6264 = vcmp.ge.f32.partialorder %v6232, 0.0
      %vm6265 = vcmp.ge.f32.partialorder %v6233, 0.0
      %vm6266 = vcmp.ge.f32.partialorder %v6234, 0.0
      %vm6267 = vcmp.ge.f32.partialorder %v6235, 0.0
      %vm6268 = vcmp.ge.f32.partialorder %v6236, 0.0
      %vm6269 = vcmp.ge.f32.partialorder %v6237, 0.0
      %vm6270 = vcmp.ge.f32.partialorder %v6238, 0.0
      %vm6271 = vcmp.ge.f32.partialorder %v6239, 0.0
      %vm6272 = vcmp.ge.f32.partialorder %v6240, 0.0
      %vm6273 = vcmp.ge.f32.partialorder %v6241, 0.0
      %vm6274 = vcmp.ge.f32.partialorder %v6242, 0.0
      %vm6275 = vcmp.ge.f32.partialorder %v6243, 0.0
      %vm6276 = vcmp.ge.f32.partialorder %v6244, 0.0
      %vm6277 = vcmp.ge.f32.partialorder %v6245, 0.0
      %vm6278 = vcmp.ge.f32.partialorder %v6246, 0.0
      %vm6279 = vcmp.ge.f32.partialorder %v6247, 0.0
      %vm6280 = vcmp.ge.f32.partialorder %v6248, 0.0
      %vm6281 = vcmp.ge.f32.partialorder %v6249, 0.0
      %vm6282 = vcmp.ge.f32.partialorder %v6250, 0.0
      %vm6283 = vcmp.ge.f32.partialorder %v6251, 0.0
      %vm6284 = vcmp.ge.f32.partialorder %v6252, 0.0
      %vm6285 = vcmp.ge.f32.partialorder %v6253, 0.0
      %vm6286 = vcmp.ge.f32.partialorder %v6254, 0.0
      %vm6287 = vcmp.ge.f32.partialorder %v6255, 0.0
      %vm6288 = vcmp.ge.f32.partialorder %v6256, 0.0
      %vm6289 = vcmp.ge.f32.partialorder %v6257, 0.0
      %v6290 = vmul.f32 %v6226, 0.01
      %v6291 = vmul.f32 %v6227, 0.01
      %v6292 = vmul.f32 %v6228, 0.01
      %v6293 = vmul.f32 %v6229, 0.01
      %v6294 = vmul.f32 %v6230, 0.01
      %v6295 = vmul.f32 %v6231, 0.01
      %v6296 = vmul.f32 %v6232, 0.01
      %v6297 = vmul.f32 %v6233, 0.01
      %v6298 = vmul.f32 %v6234, 0.01
      %v6299 = vmul.f32 %v6235, 0.01
      %v6300 = vmul.f32 %v6236, 0.01
      %v6301 = vmul.f32 %v6237, 0.01
      %v6302 = vmul.f32 %v6238, 0.01
      %v6303 = vmul.f32 %v6239, 0.01
      %v6304 = vmul.f32 %v6240, 0.01
      %v6305 = vmul.f32 %v6241, 0.01
      %v6306 = vmul.f32 %v6242, 0.01
      %v6307 = vmul.f32 %v6243, 0.01
      %v6308 = vmul.f32 %v6244, 0.01
      %v6309 = vmul.f32 %v6245, 0.01
      %v6310 = vmul.f32 %v6246, 0.01
      %v6311 = vmul.f32 %v6247, 0.01
      %v6312 = vmul.f32 %v6248, 0.01
      %v6313 = vmul.f32 %v6249, 0.01
      %v6314 = vmul.f32 %v6250, 0.01
      %v6315 = vmul.f32 %v6251, 0.01
      %v6316 = vmul.f32 %v6252, 0.01
      %v6317 = vmul.f32 %v6253, 0.01
      %v6318 = vmul.f32 %v6254, 0.01
      %v6319 = vmul.f32 %v6255, 0.01
      %v6320 = vmul.f32 %v6256, 0.01
      %v6321 = vmul.f32 %v6257, 0.01
      %v6322 = vsel %vm6258, %v6226, %v6290
      %v6323 = vsel %vm6259, %v6227, %v6291
      %v6324 = vsel %vm6260, %v6228, %v6292
      %v6325 = vsel %vm6261, %v6229, %v6293
      %v6326 = vsel %vm6262, %v6230, %v6294
      %v6327 = vsel %vm6263, %v6231, %v6295
      %v6328 = vsel %vm6264, %v6232, %v6296
      %v6329 = vsel %vm6265, %v6233, %v6297
      %v6330 = vsel %vm6266, %v6234, %v6298
      %v6331 = vsel %vm6267, %v6235, %v6299
      %v6332 = vsel %vm6268, %v6236, %v6300
      %v6333 = vsel %vm6269, %v6237, %v6301
      %v6334 = vsel %vm6270, %v6238, %v6302
      %v6335 = vsel %vm6271, %v6239, %v6303
      %v6336 = vsel %vm6272, %v6240, %v6304
      %v6337 = vsel %vm6273, %v6241, %v6305
      %v6338 = vsel %vm6274, %v6242, %v6306
      %v6339 = vsel %vm6275, %v6243, %v6307
      %v6340 = vsel %vm6276, %v6244, %v6308
      %v6341 = vsel %vm6277, %v6245, %v6309
      %v6342 = vsel %vm6278, %v6246, %v6310
      %v6343 = vsel %vm6279, %v6247, %v6311
      %v6344 = vsel %vm6280, %v6248, %v6312
      %v6345 = vsel %vm6281, %v6249, %v6313
      %v6346 = vsel %vm6282, %v6250, %v6314
      %v6347 = vsel %vm6283, %v6251, %v6315
      %v6348 = vsel %vm6284, %v6252, %v6316
      %v6349 = vsel %vm6285, %v6253, %v6317
      %v6350 = vsel %vm6286, %v6254, %v6318
      %v6351 = vsel %vm6287, %v6255, %v6319
      %v6352 = vsel %vm6288, %v6256, %v6320
      %v6353 = vsel %vm6289, %v6257, %v6321
      %6354 = vst.msk [vmem:[%s271] sm:$0xff] %vm320, %v6322
      %6355 = vst.msk [vmem:[%s271 + $0x8] sm:$0xff] %vm320, %v6323
      %6356 = vst.msk [vmem:[%s271 + $0x10] sm:$0xff] %vm320, %v6324
      %6357 = vst.msk [vmem:[%s271 + $0x18] sm:$0xff] %vm320, %v6325
      %6358 = vst.msk [vmem:[%s271 + $0x20] sm:$0xff] %vm320, %v6326
      %6359 = vst.msk [vmem:[%s271 + $0x28] sm:$0xff] %vm320, %v6327
      %6360 = vst.msk [vmem:[%s271 + $0x30] sm:$0xff] %vm320, %v6328
      %6361 = vst.msk [vmem:[%s271 + $0x38] sm:$0xff] %vm320, %v6329
      %6362 = vst.msk [vmem:[%s271 + $0x40] sm:$0xff] %vm320, %v6330
      %6363 = vst.msk [vmem:[%s271 + $0x48] sm:$0xff] %vm320, %v6331
      %6364 = vst.msk [vmem:[%s271 + $0x50] sm:$0xff] %vm320, %v6332
      %6365 = vst.msk [vmem:[%s271 + $0x58] sm:$0xff] %vm320, %v6333
      %6366 = vst.msk [vmem:[%s271 + $0x60] sm:$0xff] %vm320, %v6334
      %6367 = vst.msk [vmem:[%s271 + $0x68] sm:$0xff] %vm320, %v6335
      %6368 = vst.msk [vmem:[%s271 + $0x70] sm:$0xff] %vm320, %v6336
      %6369 = vst.msk [vmem:[%s271 + $0x78] sm:$0xff] %vm320, %v6337
      %6370 = vst.msk [vmem:[%s271 + $0x80] sm:$0xff] %vm320, %v6338
      %6371 = vst.msk [vmem:[%s271 + $0x88] sm:$0xff] %vm320, %v6339
      %6372 = vst.msk [vmem:[%s271 + $0x90] sm:$0xff] %vm320, %v6340
      %6373 = vst.msk [vmem:[%s271 + $0x98] sm:$0xff] %vm320, %v6341
      %6374 = vst.msk [vmem:[%s271 + $0xa0] sm:$0xff] %vm320, %v6342
      %6375 = vst.msk [vmem:[%s271 + $0xa8] sm:$0xff] %vm320, %v6343
      %6376 = vst.msk [vmem:[%s271 + $0xb0] sm:$0xff] %vm320, %v6344
      %6377 = vst.msk [vmem:[%s271 + $0xb8] sm:$0xff] %vm320, %v6345
      %6378 = vst.msk [vmem:[%s271 + $0xc0] sm:$0xff] %vm320, %v6346
      %6379 = vst.msk [vmem:[%s271 + $0xc8] sm:$0xff] %vm320, %v6347
      %6380 = vst.msk [vmem:[%s271 + $0xd0] sm:$0xff] %vm320, %v6348
      %6381 = vst.msk [vmem:[%s271 + $0xd8] sm:$0xff] %vm320, %v6349
      %6382 = vst.msk [vmem:[%s271 + $0xe0] sm:$0xff] %vm320, %v6350
      %6383 = vst.msk [vmem:[%s271 + $0xe8] sm:$0xff] %vm320, %v6351
      %6384 = vst.msk [vmem:[%s271 + $0xf0] sm:$0xff] %vm320, %v6352
      %6385 = vst.msk [vmem:[%s271 + $0xf8] sm:$0xff] %vm320, %v6353
      %p6386 = scmp.lt.s32.totalorder %s17, 1
      %s6387 = scalar_select %p6386, %s17, 1
      %s6388 = smul.addr %s6387, 32
      %s6389 = smul.addr %s6388, 8
      %s6390 = scalar_lea.vmem %s6, %s6389
      // Predicated region
      $region45: #{tpu_custom_call.1} parent=43 // pred_check
        %p6391 = pneg %p171
      $region46: #{tpu_custom_call.1} parent=43 // pred_check_branch
        %6393 = sbr.rel (%p6391) target = $region48
      $region47: #{tpu_custom_call.1} parent=43 // pred_region
        _
      $region48: #{tpu_custom_call.1} parent=43 // pred_fallthru
        _
    $region44: #{tpu_custom_call.1} parent=5 // pred_fallthru
      _
    %p6394 = scmp.le.s32.totalorder 2, %s12
    // Predicated region
    $region49: #{tpu_custom_call.1} parent=5 // pred_check
      %p6395 = pneg %p6394
    $region50: #{tpu_custom_call.1} parent=5 // pred_check_branch
      %6397 = sbr.rel (%p6395) target = $region52
    $region51: #{tpu_custom_call.1} parent=5 // pred_region
      %s6398 = ssub.s32 %s12, 2
      // Predicated region
      $region53: #{tpu_custom_call.1} parent=51 // pred_check
        %p6399 = pneg %p177
      $region54: #{tpu_custom_call.1} parent=51 // pred_check_branch
        %6401 = sbr.rel (%p6399) target = $region56
      $region55: #{tpu_custom_call.1} parent=51 // pred_region
        %p6402 = scmp.lt.s32.totalorder %s18, 1
        %s6403 = scalar_select %p6402, %s18, 1
        %s6404 = smul.addr %s6403, 32
        %s6405 = smul.addr %s6404, 8
        %s6406 = scalar_lea.vmem %s6, %s6405
      $region56: #{tpu_custom_call.1} parent=51 // pred_fallthru
        _
    $region52: #{tpu_custom_call.1} parent=5 // pred_fallthru
      _
  $region6: #{tpu_custom_call.1} parent=0 // loop_footer
    %s16 = sadd.s32 1, %s12
  $region7: #{tpu_custom_call.1} parent=0 // loop_footer_branch
    %11 = sbr.rel target = $region3
  $region8: #{tpu_custom_call.1} parent=0 // loop_exit
    _

</llo_original>
